<compile_context>
chip_gen: v7x
topology: tpu7x:2x2x1
jax: 0.10.0
libtpu: 0.0.40
codegen_flags: <defaults>
</compile_context>

<pallas_src>
import functools

import numpy as np

import jax
import jax.numpy as jnp
from jax.experimental import pallas as pl
from jax.experimental.pallas import tpu as pltpu


# ----------------------------- static geometry ----------------------------- #
C_IN, H_IN, W_IN = 2, 80, 80           # conv1 input (NCHW)
C1, K1, S1 = 4, 6, 2                   # conv1: 2->4,  k=6, s=2  -> 38x38
C2, K2, S2 = 16, 6, 4                  # conv2: 4->16, k=6, s=4  -> 9x9
OH1 = (H_IN - K1) // S1 + 1            # 38
OH2 = (OH1 - K2) // S2 + 1             # 9
FLAT_SIZE = C2 * OH2 * OH2             # 1296  (matches Policy.size)
FC1_OUT = 256
LANES = 128

# Kernel-internal padded geometry:
#  * x8[i, j, (e*8+f)*2+ci] = x[ci, 8i+e, 8j+f]   (stride-8 space-to-depth)
#  * conv1 output kept phase-decomposed: lane (v*4+w)*8+co1 <-> output pixel
#    (4u+v, 4t+w); the per-phase (u,t) grid is padded to (UP, TP) = (10, 24).
#  * conv2 output rows s = oh*16 + ow (ow padded 9->16), channels in lanes.
UP, TP = 10, 24
XR, XC = UP + 1, TP + 1                # space-to-depth spatial extent (11, 25)
S_PAD = 16                             # padded conv2 output width
N_S = OH2 * S_PAD                      # 144 conv2 rows inside the kernel


# ------------------------------- the kernel -------------------------------- #
def _policy_kernel(x8_ref, w1_ref, b1_ref, w2_ref, b2_ref,
                   wf1_ref, bf1_ref, wf2_ref, bf2_ref, out_ref):
    f32 = jnp.float32
    x8 = x8_ref[0]                                            # (11, 25, 128)

    # conv1 (+ReLU): 4 shifted slabs x folded (128,128) weights -> (240, 128)
    h1 = None
    for a in range(2):
        for b in range(2):
            slab = x8[a:a + UP, b:b + TP, :].reshape(UP * TP, LANES)
            part = jnp.dot(slab, w1_ref[2 * a + b], preferred_element_type=f32)
            h1 = part if h1 is None else h1 + part
    h1 = jnp.maximum(h1 + b1_ref[...], 0.0)                   # (240, 128)
    h1 = h1.reshape(UP, TP, LANES)

    # conv2 (+ReLU): 4 shifted slabs of h1 x folded weights -> (144, 128)
    y2 = None
    for a in range(2):
        for b in range(2):
            slab = h1[a:a + OH2, b:b + S_PAD, :].reshape(N_S, LANES)
            part = jnp.dot(slab, w2_ref[2 * a + b], preferred_element_type=f32)
            y2 = part if y2 is None else y2 + part
    y2 = jnp.maximum(y2 + b2_ref[...], 0.0)                   # (144, 128)

    # channel-major flatten: pad rows 144->256, transpose, gather the 16 real
    # channel rows into one lane-dense (1, 4096) feature row.
    y2 = jnp.concatenate([y2, jnp.zeros((256 - N_S, LANES), f32)], axis=0)
    y2t = jnp.transpose(y2, (1, 0))                           # (128, 256)
    feat = jnp.concatenate([y2t[c:c + 1, :] for c in range(C2)], axis=1)  # (1,4096)

    # fc1 (+ReLU) and fc2 (logits, 128 padded lanes)
    h3 = jnp.dot(feat, wf1_ref[...], preferred_element_type=f32) + bf1_ref[...]
    h3 = jnp.maximum(h3, 0.0)                                 # (1, 256)
    out_ref[0] = jnp.dot(h3, wf2_ref[...], preferred_element_type=f32) + bf2_ref[...]


# ------------------------------ host wrapper -------------------------------- #
def _space_to_depth8(x):
    """(B, 2, 80, 80) NCHW -> (B, 11, 25, 128); lane index = (e*8+f)*2 + ci."""
    B = x.shape[0]
    xp = jnp.pad(x, ((0, 0), (0, 0), (0, 8 * XR - H_IN), (0, 8 * XC - W_IN)))
    xp = xp.reshape(B, C_IN, XR, 8, XC, 8)
    xp = jnp.transpose(xp, (0, 2, 4, 3, 5, 1))                # (B, 11, 25, 8, 8, 2)
    return xp.reshape(B, XR, XC, LANES).astype(jnp.float32)


def policy_forward(packed, x, *, output_dim):
    B = x.shape[0]
    x8 = _space_to_depth8(x.astype(jnp.float32))

    full = pl.pallas_call(
        _policy_kernel,
        out_shape=jax.ShapeDtypeStruct((B, 1, LANES), jnp.float32),
        grid_spec=pltpu.PrefetchScalarGridSpec(
            num_scalar_prefetch=0,
            grid=(B,),
            in_specs=[
                pl.BlockSpec((1, XR, XC, LANES), lambda i: (i, 0, 0, 0)),
                pl.BlockSpec((4, LANES, LANES), lambda i: (0, 0, 0)),   # conv1 w
                pl.BlockSpec((1, LANES), lambda i: (0, 0)),             # conv1 b
                pl.BlockSpec((4, LANES, LANES), lambda i: (0, 0, 0)),   # conv2 w
                pl.BlockSpec((1, LANES), lambda i: (0, 0)),             # conv2 b
                pl.BlockSpec((C2 * 256, FC1_OUT), lambda i: (0, 0)),    # fc1 w
                pl.BlockSpec((1, FC1_OUT), lambda i: (0, 0)),           # fc1 b
                pl.BlockSpec((FC1_OUT, LANES), lambda i: (0, 0)),       # fc2 w
                pl.BlockSpec((1, LANES), lambda i: (0, 0)),             # fc2 b
            ],
            out_specs=pl.BlockSpec((1, 1, LANES), lambda i: (i, 0, 0)),
        ),
        compiler_params=pltpu.CompilerParams(
            dimension_semantics=("parallel",),
            vmem_limit_bytes=32 * 1024 * 1024,
        ),
    )(x8, packed["w1"], packed["b1"], packed["w2"], packed["b2"],
      packed["wf1"], packed["bf1"], packed["wf2"], packed["bf2"])
    return full[:, 0, :output_dim]


# -------------------------- one-time weight packing ------------------------- #
def pack_params(params, output_dim):
    """Fold conv tap/channel selection into zero-padded, lane-aligned matrices."""
    f32 = jnp.float32
    w1 = params["conv1_w"].astype(f32)     # (4, 2, 6, 6)
    b1 = params["conv1_b"].astype(f32)     # (4,)
    w2 = params["conv2_w"].astype(f32)     # (16, 4, 6, 6)
    b2 = params["conv2_b"].astype(f32)     # (16,)
    wf1 = params["fc1_w"].astype(f32)      # (1296, 256), in-index = c*81+oh*9+ow
    bf1 = params["fc1_b"].astype(f32)      # (256,)
    wf2 = params["fc2_w"].astype(f32)      # (256, A)
    bf2 = params["fc2_b"].astype(f32)      # (A,)

    # conv1 -> (4, 128, 128): [slab=a*2+b, ch=(e*8+f)*2+ci, col=(v*4+w)*8+co]
    idx1 = np.zeros((4, LANES, LANES), np.int32)
    val1 = np.zeros((4, LANES, LANES), np.bool_)
    for a in range(2):
        for b in range(2):
            s = a * 2 + b
            for e in range(8):
                for f in range(8):
                    for ci in range(C_IN):
                        ch = (e * 8 + f) * 2 + ci
                        for v in range(4):
                            kh = e + 8 * a - 2 * v
                            if not (0 <= kh < K1):
                                continue
                            for w in range(4):
                                kw = f + 8 * b - 2 * w
                                if not (0 <= kw < K1):
                                    continue
                                for co in range(C1):
                                    col = (v * 4 + w) * 8 + co
                                    idx1[s, ch, col] = ((co * C_IN + ci) * K1 + kh) * K1 + kw
                                    val1[s, ch, col] = True
    w1p = jnp.where(jnp.asarray(val1), w1.reshape(-1)[jnp.asarray(idx1)], 0.0)
    b1p = jnp.tile(jnp.concatenate([b1, jnp.zeros((4,), f32)]), 16).reshape(1, LANES)

    # conv2 -> (4, 128, 128): [slab=a*2+b, lane=(v*4+w)*8+co1, col=co2]
    idx2 = np.zeros((4, LANES, LANES), np.int32)
    val2 = np.zeros((4, LANES, LANES), np.bool_)
    for a in range(2):
        for b in range(2):
            s = a * 2 + b
            for v in range(4):
                kh = 4 * a + v
                if kh >= K2:
                    continue
                for w in range(4):
                    kw = 4 * b + w
                    if kw >= K2:
                        continue
                    for co1 in range(C1):
                        lane = (v * 4 + w) * 8 + co1
                        for co2 in range(C2):
                            idx2[s, lane, co2] = ((co2 * C1 + co1) * K2 + kh) * K2 + kw
                            val2[s, lane, co2] = True
    w2p = jnp.where(jnp.asarray(val2), w2.reshape(-1)[jnp.asarray(idx2)], 0.0)
    b2p = jnp.concatenate([b2, jnp.zeros((LANES - C2,), f32)]).reshape(1, LANES)

    # fc1 -> (4096, 256): row = co2*256 + oh*16 + ow  (zero rows at padding)
    wf1r = wf1.reshape(C2, OH2, OH2, FC1_OUT)
    wf1r = jnp.pad(wf1r, ((0, 0), (0, 0), (0, S_PAD - OH2), (0, 0)))
    wf1r = wf1r.reshape(C2, N_S, FC1_OUT)
    wf1r = jnp.pad(wf1r, ((0, 0), (0, 256 - N_S), (0, 0)))
    wf1p = wf1r.reshape(C2 * 256, FC1_OUT)
    bf1p = bf1.reshape(1, FC1_OUT)

    # fc2 -> (256, 128) padded logits
    wf2p = jnp.pad(wf2, ((0, 0), (0, LANES - output_dim)))
    bf2p = jnp.pad(bf2, ((0, LANES - output_dim),)).reshape(1, LANES)

    return dict(w1=w1p, b1=b1p, w2=w2p, b2=b2p,
                wf1=wf1p, bf1=bf1p, wf2=wf2p, bf2=bf2p)


# ----------------------------- reference / init ----------------------------- #
def policy_reference(params, x):
    """Pure-JAX reference matching the PyTorch Policy.forward."""
    dn = ("NCHW", "OIHW", "NCHW")
    hp = jax.lax.Precision.HIGHEST
    h = jax.lax.conv_general_dilated(x, params["conv1_w"], (S1, S1), "VALID",
                                     dimension_numbers=dn, precision=hp)
    h = jax.nn.relu(h + params["conv1_b"][None, :, None, None])
    h = jax.lax.conv_general_dilated(h, params["conv2_w"], (S2, S2), "VALID",
                                     dimension_numbers=dn, precision=hp)
    h = jax.nn.relu(h + params["conv2_b"][None, :, None, None])
    h = h.reshape(h.shape[0], FLAT_SIZE)                       # NCHW flatten
    h = jax.nn.relu(jnp.dot(h, params["fc1_w"], precision=hp) + params["fc1_b"])
    return jnp.dot(h, params["fc2_w"], precision=hp) + params["fc2_b"]


def init_params(key, output_dim):
    """Deterministic fan-in-uniform init (PyTorch-default-style scale)."""
    def uni(k, shape, fan_in):
        bound = 1.0 / jnp.sqrt(float(fan_in))
        return jax.random.uniform(k, shape, jnp.float32, -bound, bound)

    ks = jax.random.split(key, 8)
    return {
        "conv1_w": uni(ks[0], (C1, C_IN, K1, K1), C_IN * K1 * K1),
        "conv1_b": uni(ks[1], (C1,), C_IN * K1 * K1),
        "conv2_w": uni(ks[2], (C2, C1, K2, K2), C1 * K2 * K2),
        "conv2_b": uni(ks[3], (C2,), C1 * K2 * K2),
        "fc1_w": uni(ks[4], (FLAT_SIZE, FC1_OUT), FLAT_SIZE),   # stored (in, out)
        "fc1_b": uni(ks[5], (FC1_OUT,), FLAT_SIZE),
        "fc2_w": uni(ks[6], (FC1_OUT, output_dim), FC1_OUT),
        "fc2_b": uni(ks[7], (output_dim,), FC1_OUT),
    }


if __name__ == "__main__":
    key = jax.random.PRNGKey(0)
    k_params, k_x = jax.random.split(key)

    output_dim = 4          # Breakout action space
    batch = 2
    x = jax.random.normal(k_x, (batch, C_IN, H_IN, W_IN), dtype=jnp.float32)

    params = init_params(k_params, output_dim)
    packed = pack_params(params, output_dim)

    fwd = jax.jit(functools.partial(policy_forward, output_dim=output_dim))
    logits = fwd(packed, x)
    jax.block_until_ready(logits)

    assert logits.shape == (batch, output_dim), logits.shape
    assert logits.dtype == jnp.float32

    ref = policy_reference(params, x)
    err = float(jnp.max(jnp.abs(logits - ref)))
    assert err < 3e-2, f"kernel/reference mismatch: max abs err = {err}"

    print("KERNEL_OK")
</pallas_src>

<mosaic_0001>
module attributes {stable_mosaic.version = 11 : i64} {
  func.func @_policy_kernel(%arg0: i32, %arg1: memref<1x11x25x128xf32, #tpu.memory_space<vmem>>, %arg2: memref<4x128x128xf32, #tpu.memory_space<vmem>>, %arg3: memref<1x128xf32, #tpu.memory_space<vmem>>, %arg4: memref<4x128x128xf32, #tpu.memory_space<vmem>>, %arg5: memref<1x128xf32, #tpu.memory_space<vmem>>, %arg6: memref<4096x256xf32, #tpu.memory_space<vmem>>, %arg7: memref<1x256xf32, #tpu.memory_space<vmem>>, %arg8: memref<256x128xf32, #tpu.memory_space<vmem>>, %arg9: memref<1x128xf32, #tpu.memory_space<vmem>>, %arg10: memref<1x1x128xf32, #tpu.memory_space<vmem>>) attributes {dimension_semantics = [#tpu.dimension_semantics<parallel>], iteration_bounds = array<i64: 2>, scalar_prefetch = 0 : i64, scratch_operands = 0 : i64, tpu.core_type = #tpu.core_type<tc>, window_params = [{transform_indices = @transform_0, window_bounds = array<i64: 1, 11, 25, 128>}, {pipeline_mode = #tpu.pipeline_mode<synchronous>, transform_indices = @transform_1, window_bounds = array<i64: 4, 128, 128>}, {pipeline_mode = #tpu.pipeline_mode<synchronous>, transform_indices = @transform_2, window_bounds = array<i64: 1, 128>}, {pipeline_mode = #tpu.pipeline_mode<synchronous>, transform_indices = @transform_3, window_bounds = array<i64: 4, 128, 128>}, {pipeline_mode = #tpu.pipeline_mode<synchronous>, transform_indices = @transform_4, window_bounds = array<i64: 1, 128>}, {pipeline_mode = #tpu.pipeline_mode<synchronous>, transform_indices = @transform_5, window_bounds = array<i64: 4096, 256>}, {pipeline_mode = #tpu.pipeline_mode<synchronous>, transform_indices = @transform_6, window_bounds = array<i64: 1, 256>}, {pipeline_mode = #tpu.pipeline_mode<synchronous>, transform_indices = @transform_7, window_bounds = array<i64: 256, 128>}, {pipeline_mode = #tpu.pipeline_mode<synchronous>, transform_indices = @transform_8, window_bounds = array<i64: 1, 128>}, {transform_indices = @transform_9, window_bounds = array<i64: 1, 1, 128>}]} {
    %c0 = arith.constant 0 : index
    %c0_0 = arith.constant 0 : index
    %c0_1 = arith.constant 0 : index
    %c0_2 = arith.constant 0 : index
    %0 = vector.load %arg1[%c0, %c0_0, %c0_1, %c0_2] : memref<1x11x25x128xf32, #tpu.memory_space<vmem>>, vector<1x11x25x128xf32>
    %1 = vector.shape_cast %0 : vector<1x11x25x128xf32> to vector<11x25x128xf32>
    %2 = vector.extract_strided_slice %1 {offsets = [0, 0, 0], sizes = [10, 24, 128], strides = [1, 1, 1]} : vector<11x25x128xf32> to vector<10x24x128xf32>
    %3 = vector.shape_cast %2 : vector<10x24x128xf32> to vector<240x128xf32>
    %c0_3 = arith.constant 0 : index
    %c0_4 = arith.constant 0 : index
    %c0_5 = arith.constant 0 : index
    %4 = vector.load %arg2[%c0_3, %c0_4, %c0_5] : memref<4x128x128xf32, #tpu.memory_space<vmem>>, vector<1x128x128xf32>
    %5 = vector.shape_cast %4 : vector<1x128x128xf32> to vector<128x128xf32>
    %cst = arith.constant dense<0.000000e+00> : vector<240x128xf32>
    %6 = tpu.matmul %3, %5, %cst {dimension_numbers = #tpu.dot_dimension_numbers<[1], [0], [0], [1], [0, 0, 1, 1], [], []>} : vector<240x128xf32>, vector<128x128xf32>, vector<240x128xf32> -> vector<240x128xf32>
    %7 = vector.extract_strided_slice %1 {offsets = [0, 1, 0], sizes = [10, 24, 128], strides = [1, 1, 1]} : vector<11x25x128xf32> to vector<10x24x128xf32>
    %8 = vector.shape_cast %7 : vector<10x24x128xf32> to vector<240x128xf32>
    %c1 = arith.constant 1 : index
    %c0_6 = arith.constant 0 : index
    %c0_7 = arith.constant 0 : index
    %9 = vector.load %arg2[%c1, %c0_6, %c0_7] : memref<4x128x128xf32, #tpu.memory_space<vmem>>, vector<1x128x128xf32>
    %10 = vector.shape_cast %9 : vector<1x128x128xf32> to vector<128x128xf32>
    %cst_8 = arith.constant dense<0.000000e+00> : vector<240x128xf32>
    %11 = tpu.matmul %8, %10, %cst_8 {dimension_numbers = #tpu.dot_dimension_numbers<[1], [0], [0], [1], [0, 0, 1, 1], [], []>} : vector<240x128xf32>, vector<128x128xf32>, vector<240x128xf32> -> vector<240x128xf32>
    %12 = arith.addf %6, %11 : vector<240x128xf32>
    %13 = vector.extract_strided_slice %1 {offsets = [1, 0, 0], sizes = [10, 24, 128], strides = [1, 1, 1]} : vector<11x25x128xf32> to vector<10x24x128xf32>
    %14 = vector.shape_cast %13 : vector<10x24x128xf32> to vector<240x128xf32>
    %c2 = arith.constant 2 : index
    %c0_9 = arith.constant 0 : index
    %c0_10 = arith.constant 0 : index
    %15 = vector.load %arg2[%c2, %c0_9, %c0_10] : memref<4x128x128xf32, #tpu.memory_space<vmem>>, vector<1x128x128xf32>
    %16 = vector.shape_cast %15 : vector<1x128x128xf32> to vector<128x128xf32>
    %cst_11 = arith.constant dense<0.000000e+00> : vector<240x128xf32>
    %17 = tpu.matmul %14, %16, %cst_11 {dimension_numbers = #tpu.dot_dimension_numbers<[1], [0], [0], [1], [0, 0, 1, 1], [], []>} : vector<240x128xf32>, vector<128x128xf32>, vector<240x128xf32> -> vector<240x128xf32>
    %18 = arith.addf %12, %17 : vector<240x128xf32>
    %19 = vector.extract_strided_slice %1 {offsets = [1, 1, 0], sizes = [10, 24, 128], strides = [1, 1, 1]} : vector<11x25x128xf32> to vector<10x24x128xf32>
    %20 = vector.shape_cast %19 : vector<10x24x128xf32> to vector<240x128xf32>
    %c3 = arith.constant 3 : index
    %c0_12 = arith.constant 0 : index
    %c0_13 = arith.constant 0 : index
    %21 = vector.load %arg2[%c3, %c0_12, %c0_13] : memref<4x128x128xf32, #tpu.memory_space<vmem>>, vector<1x128x128xf32>
    %22 = vector.shape_cast %21 : vector<1x128x128xf32> to vector<128x128xf32>
    %cst_14 = arith.constant dense<0.000000e+00> : vector<240x128xf32>
    %23 = tpu.matmul %20, %22, %cst_14 {dimension_numbers = #tpu.dot_dimension_numbers<[1], [0], [0], [1], [0, 0, 1, 1], [], []>} : vector<240x128xf32>, vector<128x128xf32>, vector<240x128xf32> -> vector<240x128xf32>
    %24 = arith.addf %18, %23 : vector<240x128xf32>
    %c0_15 = arith.constant 0 : index
    %c0_16 = arith.constant 0 : index
    %25 = vector.load %arg3[%c0_15, %c0_16] : memref<1x128xf32, #tpu.memory_space<vmem>>, vector<1x128xf32>
    %26 = vector.broadcast %25 : vector<1x128xf32> to vector<240x128xf32>
    %27 = arith.addf %24, %26 : vector<240x128xf32>
    %cst_17 = arith.constant 0.000000e+00 : f32
    %28 = vector.broadcast %cst_17 : f32 to vector<240x128xf32>
    %29 = arith.maximumf %27, %28 : vector<240x128xf32>
    %30 = vector.shape_cast %29 : vector<240x128xf32> to vector<10x24x128xf32>
    %31 = vector.extract_strided_slice %30 {offsets = [0, 0, 0], sizes = [9, 16, 128], strides = [1, 1, 1]} : vector<10x24x128xf32> to vector<9x16x128xf32>
    %32 = vector.shape_cast %31 : vector<9x16x128xf32> to vector<144x128xf32>
    %c0_18 = arith.constant 0 : index
    %c0_19 = arith.constant 0 : index
    %c0_20 = arith.constant 0 : index
    %33 = vector.load %arg4[%c0_18, %c0_19, %c0_20] : memref<4x128x128xf32, #tpu.memory_space<vmem>>, vector<1x128x128xf32>
    %34 = vector.shape_cast %33 : vector<1x128x128xf32> to vector<128x128xf32>
    %cst_21 = arith.constant dense<0.000000e+00> : vector<144x128xf32>
    %35 = tpu.matmul %32, %34, %cst_21 {dimension_numbers = #tpu.dot_dimension_numbers<[1], [0], [0], [1], [0, 0, 1, 1], [], []>} : vector<144x128xf32>, vector<128x128xf32>, vector<144x128xf32> -> vector<144x128xf32>
    %36 = vector.extract_strided_slice %30 {offsets = [0, 1, 0], sizes = [9, 16, 128], strides = [1, 1, 1]} : vector<10x24x128xf32> to vector<9x16x128xf32>
    %37 = vector.shape_cast %36 : vector<9x16x128xf32> to vector<144x128xf32>
    %c1_22 = arith.constant 1 : index
    %c0_23 = arith.constant 0 : index
    %c0_24 = arith.constant 0 : index
    %38 = vector.load %arg4[%c1_22, %c0_23, %c0_24] : memref<4x128x128xf32, #tpu.memory_space<vmem>>, vector<1x128x128xf32>
    %39 = vector.shape_cast %38 : vector<1x128x128xf32> to vector<128x128xf32>
    %cst_25 = arith.constant dense<0.000000e+00> : vector<144x128xf32>
    %40 = tpu.matmul %37, %39, %cst_25 {dimension_numbers = #tpu.dot_dimension_numbers<[1], [0], [0], [1], [0, 0, 1, 1], [], []>} : vector<144x128xf32>, vector<128x128xf32>, vector<144x128xf32> -> vector<144x128xf32>
    %41 = arith.addf %35, %40 : vector<144x128xf32>
    %42 = vector.extract_strided_slice %30 {offsets = [1, 0, 0], sizes = [9, 16, 128], strides = [1, 1, 1]} : vector<10x24x128xf32> to vector<9x16x128xf32>
    %43 = vector.shape_cast %42 : vector<9x16x128xf32> to vector<144x128xf32>
    %c2_26 = arith.constant 2 : index
    %c0_27 = arith.constant 0 : index
    %c0_28 = arith.constant 0 : index
    %44 = vector.load %arg4[%c2_26, %c0_27, %c0_28] : memref<4x128x128xf32, #tpu.memory_space<vmem>>, vector<1x128x128xf32>
    %45 = vector.shape_cast %44 : vector<1x128x128xf32> to vector<128x128xf32>
    %cst_29 = arith.constant dense<0.000000e+00> : vector<144x128xf32>
    %46 = tpu.matmul %43, %45, %cst_29 {dimension_numbers = #tpu.dot_dimension_numbers<[1], [0], [0], [1], [0, 0, 1, 1], [], []>} : vector<144x128xf32>, vector<128x128xf32>, vector<144x128xf32> -> vector<144x128xf32>
    %47 = arith.addf %41, %46 : vector<144x128xf32>
    %48 = vector.extract_strided_slice %30 {offsets = [1, 1, 0], sizes = [9, 16, 128], strides = [1, 1, 1]} : vector<10x24x128xf32> to vector<9x16x128xf32>
    %49 = vector.shape_cast %48 : vector<9x16x128xf32> to vector<144x128xf32>
    %c3_30 = arith.constant 3 : index
    %c0_31 = arith.constant 0 : index
    %c0_32 = arith.constant 0 : index
    %50 = vector.load %arg4[%c3_30, %c0_31, %c0_32] : memref<4x128x128xf32, #tpu.memory_space<vmem>>, vector<1x128x128xf32>
    %51 = vector.shape_cast %50 : vector<1x128x128xf32> to vector<128x128xf32>
    %cst_33 = arith.constant dense<0.000000e+00> : vector<144x128xf32>
    %52 = tpu.matmul %49, %51, %cst_33 {dimension_numbers = #tpu.dot_dimension_numbers<[1], [0], [0], [1], [0, 0, 1, 1], [], []>} : vector<144x128xf32>, vector<128x128xf32>, vector<144x128xf32> -> vector<144x128xf32>
    %53 = arith.addf %47, %52 : vector<144x128xf32>
    %c0_34 = arith.constant 0 : index
    %c0_35 = arith.constant 0 : index
    %54 = vector.load %arg5[%c0_34, %c0_35] : memref<1x128xf32, #tpu.memory_space<vmem>>, vector<1x128xf32>
    %55 = vector.broadcast %54 : vector<1x128xf32> to vector<144x128xf32>
    %56 = arith.addf %53, %55 : vector<144x128xf32>
    %cst_36 = arith.constant 0.000000e+00 : f32
    %57 = vector.broadcast %cst_36 : f32 to vector<144x128xf32>
    %58 = arith.maximumf %56, %57 : vector<144x128xf32>
    %cst_37 = arith.constant 0.000000e+00 : f32
    %59 = vector.broadcast %cst_37 : f32 to vector<112x128xf32>
    %60 = tpu.concatenate %58, %59 in 0 : vector<144x128xf32>, vector<112x128xf32> -> vector<256x128xf32>
    %61 = tpu.transpose %60, [1, 0] : vector<256x128xf32> -> vector<128x256xf32>
    %62 = vector.extract_strided_slice %61 {offsets = [0, 0], sizes = [1, 256], strides = [1, 1]} : vector<128x256xf32> to vector<1x256xf32>
    %63 = vector.extract_strided_slice %61 {offsets = [1, 0], sizes = [1, 256], strides = [1, 1]} : vector<128x256xf32> to vector<1x256xf32>
    %64 = vector.extract_strided_slice %61 {offsets = [2, 0], sizes = [1, 256], strides = [1, 1]} : vector<128x256xf32> to vector<1x256xf32>
    %65 = vector.extract_strided_slice %61 {offsets = [3, 0], sizes = [1, 256], strides = [1, 1]} : vector<128x256xf32> to vector<1x256xf32>
    %66 = vector.extract_strided_slice %61 {offsets = [4, 0], sizes = [1, 256], strides = [1, 1]} : vector<128x256xf32> to vector<1x256xf32>
    %67 = vector.extract_strided_slice %61 {offsets = [5, 0], sizes = [1, 256], strides = [1, 1]} : vector<128x256xf32> to vector<1x256xf32>
    %68 = vector.extract_strided_slice %61 {offsets = [6, 0], sizes = [1, 256], strides = [1, 1]} : vector<128x256xf32> to vector<1x256xf32>
    %69 = vector.extract_strided_slice %61 {offsets = [7, 0], sizes = [1, 256], strides = [1, 1]} : vector<128x256xf32> to vector<1x256xf32>
    %70 = vector.extract_strided_slice %61 {offsets = [8, 0], sizes = [1, 256], strides = [1, 1]} : vector<128x256xf32> to vector<1x256xf32>
    %71 = vector.extract_strided_slice %61 {offsets = [9, 0], sizes = [1, 256], strides = [1, 1]} : vector<128x256xf32> to vector<1x256xf32>
    %72 = vector.extract_strided_slice %61 {offsets = [10, 0], sizes = [1, 256], strides = [1, 1]} : vector<128x256xf32> to vector<1x256xf32>
    %73 = vector.extract_strided_slice %61 {offsets = [11, 0], sizes = [1, 256], strides = [1, 1]} : vector<128x256xf32> to vector<1x256xf32>
    %74 = vector.extract_strided_slice %61 {offsets = [12, 0], sizes = [1, 256], strides = [1, 1]} : vector<128x256xf32> to vector<1x256xf32>
    %75 = vector.extract_strided_slice %61 {offsets = [13, 0], sizes = [1, 256], strides = [1, 1]} : vector<128x256xf32> to vector<1x256xf32>
    %76 = vector.extract_strided_slice %61 {offsets = [14, 0], sizes = [1, 256], strides = [1, 1]} : vector<128x256xf32> to vector<1x256xf32>
    %77 = vector.extract_strided_slice %61 {offsets = [15, 0], sizes = [1, 256], strides = [1, 1]} : vector<128x256xf32> to vector<1x256xf32>
    %78 = tpu.concatenate %62, %63, %64, %65, %66, %67, %68, %69, %70, %71, %72, %73, %74, %75, %76, %77 in 1 : vector<1x256xf32>, vector<1x256xf32>, vector<1x256xf32>, vector<1x256xf32>, vector<1x256xf32>, vector<1x256xf32>, vector<1x256xf32>, vector<1x256xf32>, vector<1x256xf32>, vector<1x256xf32>, vector<1x256xf32>, vector<1x256xf32>, vector<1x256xf32>, vector<1x256xf32>, vector<1x256xf32>, vector<1x256xf32> -> vector<1x4096xf32>
    %c0_38 = arith.constant 0 : index
    %c0_39 = arith.constant 0 : index
    %79 = vector.load %arg6[%c0_38, %c0_39] : memref<4096x256xf32, #tpu.memory_space<vmem>>, vector<4096x256xf32>
    %cst_40 = arith.constant dense<0.000000e+00> : vector<1x256xf32>
    %80 = tpu.matmul %78, %79, %cst_40 {dimension_numbers = #tpu.dot_dimension_numbers<[1], [0], [0], [1], [0, 0, 1, 1], [], []>} : vector<1x4096xf32>, vector<4096x256xf32>, vector<1x256xf32> -> vector<1x256xf32>
    %c0_41 = arith.constant 0 : index
    %c0_42 = arith.constant 0 : index
    %81 = vector.load %arg7[%c0_41, %c0_42] : memref<1x256xf32, #tpu.memory_space<vmem>>, vector<1x256xf32>
    %82 = arith.addf %80, %81 : vector<1x256xf32>
    %cst_43 = arith.constant 0.000000e+00 : f32
    %83 = vector.broadcast %cst_43 : f32 to vector<1x256xf32>
    %84 = arith.maximumf %82, %83 : vector<1x256xf32>
    %c0_44 = arith.constant 0 : index
    %c0_45 = arith.constant 0 : index
    %85 = vector.load %arg8[%c0_44, %c0_45] : memref<256x128xf32, #tpu.memory_space<vmem>>, vector<256x128xf32>
    %cst_46 = arith.constant dense<0.000000e+00> : vector<1x128xf32>
    %86 = tpu.matmul %84, %85, %cst_46 {dimension_numbers = #tpu.dot_dimension_numbers<[1], [0], [0], [1], [0, 0, 1, 1], [], []>} : vector<1x256xf32>, vector<256x128xf32>, vector<1x128xf32> -> vector<1x128xf32>
    %c0_47 = arith.constant 0 : index
    %c0_48 = arith.constant 0 : index
    %87 = vector.load %arg9[%c0_47, %c0_48] : memref<1x128xf32, #tpu.memory_space<vmem>>, vector<1x128xf32>
    %88 = arith.addf %86, %87 : vector<1x128xf32>
    %c0_49 = arith.constant 0 : index
    %c0_50 = arith.constant 0 : index
    %c0_51 = arith.constant 0 : index
    %89 = vector.load %arg10[%c0_49, %c0_50, %c0_51] : memref<1x1x128xf32, #tpu.memory_space<vmem>>, vector<1x1x128xf32>
    %90 = vector.shape_cast %89 : vector<1x1x128xf32> to vector<1x128xf32>
    %91 = vector.shape_cast %88 : vector<1x128xf32> to vector<1x1x128xf32>
    tpu.vector_store %arg10[%c0_49, %c0_50, %c0_51], %91 {strides = array<i32>} : memref<1x1x128xf32, #tpu.memory_space<vmem>>, vector<1x1x128xf32>,
    return
  }
  func.func @transform_0(%arg0: i32) -> (i32, i32, i32, i32) {
    %c0_i32 = arith.constant 0 : i32
    %c0_i32_0 = arith.constant 0 : i32
    %c0_i32_1 = arith.constant 0 : i32
    %c0_i32_2 = arith.constant 0 : i32
    return %arg0, %c0_i32, %c0_i32_0, %c0_i32_1 : i32, i32, i32, i32
  }
  func.func @transform_1(%arg0: i32) -> (i32, i32, i32) {
    %c0_i32 = arith.constant 0 : i32
    %c0_i32_0 = arith.constant 0 : i32
    %c0_i32_1 = arith.constant 0 : i32
    %c0_i32_2 = arith.constant 0 : i32
    return %c0_i32, %c0_i32_0, %c0_i32_1 : i32, i32, i32
  }
  func.func @transform_2(%arg0: i32) -> (i32, i32) {
    %c0_i32 = arith.constant 0 : i32
    %c0_i32_0 = arith.constant 0 : i32
    %c0_i32_1 = arith.constant 0 : i32
    return %c0_i32, %c0_i32_0 : i32, i32
  }
  func.func @transform_3(%arg0: i32) -> (i32, i32, i32) {
    %c0_i32 = arith.constant 0 : i32
    %c0_i32_0 = arith.constant 0 : i32
    %c0_i32_1 = arith.constant 0 : i32
    %c0_i32_2 = arith.constant 0 : i32
    return %c0_i32, %c0_i32_0, %c0_i32_1 : i32, i32, i32
  }
  func.func @transform_4(%arg0: i32) -> (i32, i32) {
    %c0_i32 = arith.constant 0 : i32
    %c0_i32_0 = arith.constant 0 : i32
    %c0_i32_1 = arith.constant 0 : i32
    return %c0_i32, %c0_i32_0 : i32, i32
  }
  func.func @transform_5(%arg0: i32) -> (i32, i32) {
    %c0_i32 = arith.constant 0 : i32
    %c0_i32_0 = arith.constant 0 : i32
    %c0_i32_1 = arith.constant 0 : i32
    return %c0_i32, %c0_i32_0 : i32, i32
  }
  func.func @transform_6(%arg0: i32) -> (i32, i32) {
    %c0_i32 = arith.constant 0 : i32
    %c0_i32_0 = arith.constant 0 : i32
    %c0_i32_1 = arith.constant 0 : i32
    return %c0_i32, %c0_i32_0 : i32, i32
  }
  func.func @transform_7(%arg0: i32) -> (i32, i32) {
    %c0_i32 = arith.constant 0 : i32
    %c0_i32_0 = arith.constant 0 : i32
    %c0_i32_1 = arith.constant 0 : i32
    return %c0_i32, %c0_i32_0 : i32, i32
  }
  func.func @transform_8(%arg0: i32) -> (i32, i32) {
    %c0_i32 = arith.constant 0 : i32
    %c0_i32_0 = arith.constant 0 : i32
    %c0_i32_1 = arith.constant 0 : i32
    return %c0_i32, %c0_i32_0 : i32, i32
  }
  func.func @transform_9(%arg0: i32) -> (i32, i32, i32) {
    %c0_i32 = arith.constant 0 : i32
    %c0_i32_0 = arith.constant 0 : i32
    %c0_i32_1 = arith.constant 0 : i32
    return %arg0, %c0_i32, %c0_i32_0 : i32, i32, i32
  }
}

</mosaic_0001>

<llo_original>
// kernel: policy_forward.1
$region0: #{policy_forward.1}
  #allocation0 [shape = 'u32[]', space=smem, size = 0x4, offset = 0x4, fixed_abs, tag = 'smem constant byte address 0x4 - core index']
  #allocation1 [shape = 'u32[144,128]{1,0:T(1,128)}', space=vmem, size = 0x12000, scoped, tag = 'internal scratch']
  %s0 = inlined_call_operand.vmem [shape: f32[2,11,25,128], index: 0, kind: input, shape index: {}]
  %s1 = inlined_call_operand.vmem [shape: f32[4,128,128], index: 1, kind: input, shape index: {}]
  %s2 = inlined_call_operand.vmem [shape: f32[1,128], index: 2, kind: input, shape index: {}]
  %s3 = inlined_call_operand.vmem [shape: f32[4,128,128], index: 3, kind: input, shape index: {}]
  %s4 = inlined_call_operand.vmem [shape: f32[1,128], index: 4, kind: input, shape index: {}]
  %s5 = inlined_call_operand.vmem [shape: f32[4096,256], index: 5, kind: input, shape index: {}]
  %s6 = inlined_call_operand.vmem [shape: f32[1,256], index: 6, kind: input, shape index: {}]
  %s7 = inlined_call_operand.vmem [shape: f32[256,128], index: 7, kind: input, shape index: {}]
  %s8 = inlined_call_operand.vmem [shape: f32[1,128], index: 8, kind: input, shape index: {}]
  %s9 = inlined_call_operand.hbm [shape: f32[2,1,128], index: 9, kind: output, shape index: {}]
  %s10 = sld [smem:[#allocation0]]
  $region69: #{policy_forward.1} parent=0
    _
  %s12 = ssub.s32 1, %s10
  %s13 = scalar_select 0, %s12, %s10
  $region1: #{policy_forward.1} parent=0
    #allocation2 [shape = 'u8[1024]{0}', space=vmem, size = 0x400, scoped, tag = 'output window, operand 0']
    #allocation3 [shape = 's32[2]{0}', space=sflag, size = 0x8, scoped, tag = 'scoped memory for policy_forward.1']
    %14 = vsyncpa [#allocation3], 0
    %s15 = scalar_lea.sflag [#allocation3], 1
    %16 = vsyncpa %s15, 0
    loop: start=0, step=1, limit=4
    $region2: #{policy_forward.1} parent=1 // loop_pre_header
      _
    $region3: #{policy_forward.1} parent=1 // loop_header
      %s18 = sphi 0, %s22
      %p19 = scmp.ge.s32.totalorder %s18, 4
      %s28 = sphi 0, %s30
      %s31 = sphi 0, %s28
      %s32 = sphi 0, %s31
      %s48 = sphi 0, %s32
      %s52 = sphi 0, %s52
      %s54 = sphi 0, %s52
      %s55 = sphi 0, %s54
      %s69 = sphi 0, %s55
      %s73 = sphi 0, %s73
      %s75 = sphi 0, %s73
      %s76 = sphi 0, %s75
      %s90 = sphi 0, %s76
      %s94 = sphi 0, %s94
      %s96 = sphi 0, %s94
      %s97 = sphi 0, %s96
      %s111 = sphi 0, %s97
      %s115 = sphi 0, %s115
      %s117 = sphi 0, %s115
      %s118 = sphi 0, %s117
      %s132 = sphi 0, %s118
      %s136 = sphi 0, %s136
      %s138 = sphi 0, %s136
      %s139 = sphi 0, %s138
      %s153 = sphi 0, %s139
      %s157 = sphi 0, %s157
      %s159 = sphi 0, %s157
      %s160 = sphi 0, %s159
      %s174 = sphi 0, %s160
      %s178 = sphi 0, %s178
      %s180 = sphi 0, %s178
      %s181 = sphi 0, %s180
      %s195 = sphi 0, %s181
      %s199 = sphi 0, %s199
      %s201 = sphi 0, %s199
      %s202 = sphi 0, %s201
      %s216 = sphi 0, %s202
      %s222 = sphi 0, %s224
      %s225 = sphi 0, %s222
      %s226 = sphi 0, %s225
      %s242 = sphi 0, %s226
    $region4: #{policy_forward.1} parent=1 // loop_header_branch
      %21 = sbr.rel (%p19) target = $region8
    $region5: #{policy_forward.1} parent=1 // loop_body
      %s23 = ssub.s32 %s18, 1
      %s24 = ssub.s32 %s18, 2
      %s25 = sadd.s32 %s18, 1
      %s26 = ssub.s32 %s18, %s25
      %p27 = scmp.eq.s32.totalorder %s26, 0
      %s29 = sadd.s32 %s28, 1
      %s30 = scalar_select %p27, %s28, %s29
      %p33 = pneg %p27
      %p34 = scmp.eq.s32.totalorder %s18, 1
      %p35 = por %p33, %p34
      %p36 = scmp.ne.s32.totalorder %s28, %s31
      %p37 = scmp.eq.s32.totalorder %s18, 0
      %p38 = por %p36, %p37
      %p39 = scmp.ne.s32.totalorder %s28, %s31
      %p40 = scmp.eq.s32.totalorder %s23, 1
      %p41 = por %p39, %p40
      %p42 = scmp.ne.s32.totalorder %s31, %s32
      %p43 = scmp.eq.s32.totalorder %s23, 0
      %p44 = por %p42, %p43
      %p45 = scmp.ne.s32.totalorder %s31, %s32
      %p46 = scmp.eq.s32.totalorder %s24, 1
      %p47 = por %p45, %p46
      %p49 = scmp.ne.s32.totalorder %s32, %s48
      %p50 = scmp.eq.s32.totalorder %s24, 0
      %p51 = por %p49, %p50
      %s53 = sadd.s32 %s52, 1
      %p56 = scmp.eq.s32.totalorder %s18, 1
      %p57 = scmp.ne.s32.totalorder %s52, %s54
      %p58 = scmp.eq.s32.totalorder %s18, 0
      %p59 = por %p57, %p58
      %p60 = scmp.ne.s32.totalorder %s52, %s54
      %p61 = scmp.eq.s32.totalorder %s23, 1
      %p62 = por %p60, %p61
      %p63 = scmp.ne.s32.totalorder %s54, %s55
      %p64 = scmp.eq.s32.totalorder %s23, 0
      %p65 = por %p63, %p64
      %p66 = scmp.ne.s32.totalorder %s54, %s55
      %p67 = scmp.eq.s32.totalorder %s24, 1
      %p68 = por %p66, %p67
      %p70 = scmp.ne.s32.totalorder %s55, %s69
      %p71 = scmp.eq.s32.totalorder %s24, 0
      %p72 = por %p70, %p71
      %s74 = sadd.s32 %s73, 1
      %p77 = scmp.eq.s32.totalorder %s18, 1
      %p78 = scmp.ne.s32.totalorder %s73, %s75
      %p79 = scmp.eq.s32.totalorder %s18, 0
      %p80 = por %p78, %p79
      %p81 = scmp.ne.s32.totalorder %s73, %s75
      %p82 = scmp.eq.s32.totalorder %s23, 1
      %p83 = por %p81, %p82
      %p84 = scmp.ne.s32.totalorder %s75, %s76
      %p85 = scmp.eq.s32.totalorder %s23, 0
      %p86 = por %p84, %p85
      %p87 = scmp.ne.s32.totalorder %s75, %s76
      %p88 = scmp.eq.s32.totalorder %s24, 1
      %p89 = por %p87, %p88
      %p91 = scmp.ne.s32.totalorder %s76, %s90
      %p92 = scmp.eq.s32.totalorder %s24, 0
      %p93 = por %p91, %p92
      %s95 = sadd.s32 %s94, 1
      %p98 = scmp.eq.s32.totalorder %s18, 1
      %p99 = scmp.ne.s32.totalorder %s94, %s96
      %p100 = scmp.eq.s32.totalorder %s18, 0
      %p101 = por %p99, %p100
      %p102 = scmp.ne.s32.totalorder %s94, %s96
      %p103 = scmp.eq.s32.totalorder %s23, 1
      %p104 = por %p102, %p103
      %p105 = scmp.ne.s32.totalorder %s96, %s97
      %p106 = scmp.eq.s32.totalorder %s23, 0
      %p107 = por %p105, %p106
      %p108 = scmp.ne.s32.totalorder %s96, %s97
      %p109 = scmp.eq.s32.totalorder %s24, 1
      %p110 = por %p108, %p109
      %p112 = scmp.ne.s32.totalorder %s97, %s111
      %p113 = scmp.eq.s32.totalorder %s24, 0
      %p114 = por %p112, %p113
      %s116 = sadd.s32 %s115, 1
      %p119 = scmp.eq.s32.totalorder %s18, 1
      %p120 = scmp.ne.s32.totalorder %s115, %s117
      %p121 = scmp.eq.s32.totalorder %s18, 0
      %p122 = por %p120, %p121
      %p123 = scmp.ne.s32.totalorder %s115, %s117
      %p124 = scmp.eq.s32.totalorder %s23, 1
      %p125 = por %p123, %p124
      %p126 = scmp.ne.s32.totalorder %s117, %s118
      %p127 = scmp.eq.s32.totalorder %s23, 0
      %p128 = por %p126, %p127
      %p129 = scmp.ne.s32.totalorder %s117, %s118
      %p130 = scmp.eq.s32.totalorder %s24, 1
      %p131 = por %p129, %p130
      %p133 = scmp.ne.s32.totalorder %s118, %s132
      %p134 = scmp.eq.s32.totalorder %s24, 0
      %p135 = por %p133, %p134
      %s137 = sadd.s32 %s136, 1
      %p140 = scmp.eq.s32.totalorder %s18, 1
      %p141 = scmp.ne.s32.totalorder %s136, %s138
      %p142 = scmp.eq.s32.totalorder %s18, 0
      %p143 = por %p141, %p142
      %p144 = scmp.ne.s32.totalorder %s136, %s138
      %p145 = scmp.eq.s32.totalorder %s23, 1
      %p146 = por %p144, %p145
      %p147 = scmp.ne.s32.totalorder %s138, %s139
      %p148 = scmp.eq.s32.totalorder %s23, 0
      %p149 = por %p147, %p148
      %p150 = scmp.ne.s32.totalorder %s138, %s139
      %p151 = scmp.eq.s32.totalorder %s24, 1
      %p152 = por %p150, %p151
      %p154 = scmp.ne.s32.totalorder %s139, %s153
      %p155 = scmp.eq.s32.totalorder %s24, 0
      %p156 = por %p154, %p155
      %s158 = sadd.s32 %s157, 1
      %p161 = scmp.eq.s32.totalorder %s18, 1
      %p162 = scmp.ne.s32.totalorder %s157, %s159
      %p163 = scmp.eq.s32.totalorder %s18, 0
      %p164 = por %p162, %p163
      %p165 = scmp.ne.s32.totalorder %s157, %s159
      %p166 = scmp.eq.s32.totalorder %s23, 1
      %p167 = por %p165, %p166
      %p168 = scmp.ne.s32.totalorder %s159, %s160
      %p169 = scmp.eq.s32.totalorder %s23, 0
      %p170 = por %p168, %p169
      %p171 = scmp.ne.s32.totalorder %s159, %s160
      %p172 = scmp.eq.s32.totalorder %s24, 1
      %p173 = por %p171, %p172
      %p175 = scmp.ne.s32.totalorder %s160, %s174
      %p176 = scmp.eq.s32.totalorder %s24, 0
      %p177 = por %p175, %p176
      %s179 = sadd.s32 %s178, 1
      %p182 = scmp.eq.s32.totalorder %s18, 1
      %p183 = scmp.ne.s32.totalorder %s178, %s180
      %p184 = scmp.eq.s32.totalorder %s18, 0
      %p185 = por %p183, %p184
      %p186 = scmp.ne.s32.totalorder %s178, %s180
      %p187 = scmp.eq.s32.totalorder %s23, 1
      %p188 = por %p186, %p187
      %p189 = scmp.ne.s32.totalorder %s180, %s181
      %p190 = scmp.eq.s32.totalorder %s23, 0
      %p191 = por %p189, %p190
      %p192 = scmp.ne.s32.totalorder %s180, %s181
      %p193 = scmp.eq.s32.totalorder %s24, 1
      %p194 = por %p192, %p193
      %p196 = scmp.ne.s32.totalorder %s181, %s195
      %p197 = scmp.eq.s32.totalorder %s24, 0
      %p198 = por %p196, %p197
      %s200 = sadd.s32 %s199, 1
      %p203 = scmp.eq.s32.totalorder %s18, 1
      %p204 = scmp.ne.s32.totalorder %s199, %s201
      %p205 = scmp.eq.s32.totalorder %s18, 0
      %p206 = por %p204, %p205
      %p207 = scmp.ne.s32.totalorder %s199, %s201
      %p208 = scmp.eq.s32.totalorder %s23, 1
      %p209 = por %p207, %p208
      %p210 = scmp.ne.s32.totalorder %s201, %s202
      %p211 = scmp.eq.s32.totalorder %s23, 0
      %p212 = por %p210, %p211
      %p213 = scmp.ne.s32.totalorder %s201, %s202
      %p214 = scmp.eq.s32.totalorder %s24, 1
      %p215 = por %p213, %p214
      %p217 = scmp.ne.s32.totalorder %s202, %s216
      %p218 = scmp.eq.s32.totalorder %s24, 0
      %p219 = por %p217, %p218
      %s220 = ssub.s32 %s18, %s25
      %p221 = scmp.eq.s32.totalorder %s220, 0
      %s223 = sadd.s32 %s222, 1
      %s224 = scalar_select %p221, %s222, %s223
      %p227 = pneg %p221
      %p228 = scmp.eq.s32.totalorder %s18, 1
      %p229 = por %p227, %p228
      %p230 = scmp.ne.s32.totalorder %s222, %s225
      %p231 = scmp.eq.s32.totalorder %s18, 0
      %p232 = por %p230, %p231
      %p233 = scmp.ne.s32.totalorder %s222, %s225
      %p234 = scmp.eq.s32.totalorder %s23, 1
      %p235 = por %p233, %p234
      %p236 = scmp.ne.s32.totalorder %s225, %s226
      %p237 = scmp.eq.s32.totalorder %s23, 0
      %p238 = por %p236, %p237
      %p239 = scmp.ne.s32.totalorder %s225, %s226
      %p240 = scmp.eq.s32.totalorder %s24, 1
      %p241 = por %p239, %p240
      %p243 = scmp.ne.s32.totalorder %s226, %s242
      %p244 = scmp.eq.s32.totalorder %s24, 0
      %p245 = por %p243, %p244
      %p246 = scmp.le.s32.totalorder 1, %s18
      %p247 = scmp.lt.s32.totalorder %s18, 3
      %p248 = pnand %p246, %p247
      %p249 = pneg %p248
      // Predicated region
      $region9: #{policy_forward.1} parent=5 // pred_check
        _
      $region10: #{policy_forward.1} parent=5 // pred_check_branch
        %251 = sbr.rel (%p248) target = $region12
      $region11: #{policy_forward.1} parent=5 // pred_region
        %s252 = ssub.s32 %s18, 1
        // Predicated region
        $region13: #{policy_forward.1} parent=11 // pred_check
          %p253 = pneg %p65
        $region14: #{policy_forward.1} parent=11 // pred_check_branch
          %255 = sbr.rel (%p253) target = $region16
        $region15: #{policy_forward.1} parent=11 // pred_region
          _
        $region16: #{policy_forward.1} parent=11 // pred_fallthru
          _
        // Predicated region
        $region17: #{policy_forward.1} parent=11 // pred_check
          %p256 = pneg %p86
        $region18: #{policy_forward.1} parent=11 // pred_check_branch
          %258 = sbr.rel (%p256) target = $region20
        $region19: #{policy_forward.1} parent=11 // pred_region
          _
        $region20: #{policy_forward.1} parent=11 // pred_fallthru
          _
        // Predicated region
        $region21: #{policy_forward.1} parent=11 // pred_check
          %p259 = pneg %p107
        $region22: #{policy_forward.1} parent=11 // pred_check_branch
          %261 = sbr.rel (%p259) target = $region24
        $region23: #{policy_forward.1} parent=11 // pred_region
          _
        $region24: #{policy_forward.1} parent=11 // pred_fallthru
          _
        // Predicated region
        $region25: #{policy_forward.1} parent=11 // pred_check
          %p262 = pneg %p128
        $region26: #{policy_forward.1} parent=11 // pred_check_branch
          %264 = sbr.rel (%p262) target = $region28
        $region27: #{policy_forward.1} parent=11 // pred_region
          _
        $region28: #{policy_forward.1} parent=11 // pred_fallthru
          _
        // Predicated region
        $region29: #{policy_forward.1} parent=11 // pred_check
          %p265 = pneg %p149
        $region30: #{policy_forward.1} parent=11 // pred_check_branch
          %267 = sbr.rel (%p265) target = $region32
        $region31: #{policy_forward.1} parent=11 // pred_region
          _
        $region32: #{policy_forward.1} parent=11 // pred_fallthru
          _
        // Predicated region
        $region33: #{policy_forward.1} parent=11 // pred_check
          %p268 = pneg %p170
        $region34: #{policy_forward.1} parent=11 // pred_check_branch
          %270 = sbr.rel (%p268) target = $region36
        $region35: #{policy_forward.1} parent=11 // pred_region
          _
        $region36: #{policy_forward.1} parent=11 // pred_fallthru
          _
        // Predicated region
        $region37: #{policy_forward.1} parent=11 // pred_check
          %p271 = pneg %p191
        $region38: #{policy_forward.1} parent=11 // pred_check_branch
          %273 = sbr.rel (%p271) target = $region40
        $region39: #{policy_forward.1} parent=11 // pred_region
          _
        $region40: #{policy_forward.1} parent=11 // pred_fallthru
          _
        // Predicated region
        $region41: #{policy_forward.1} parent=11 // pred_check
          %p274 = pneg %p212
        $region42: #{policy_forward.1} parent=11 // pred_check_branch
          %276 = sbr.rel (%p274) target = $region44
        $region43: #{policy_forward.1} parent=11 // pred_region
          _
        $region44: #{policy_forward.1} parent=11 // pred_fallthru
          _
      $region12: #{policy_forward.1} parent=5 // pred_fallthru
        _
      %p277 = scmp.lt.s32.totalorder %s18, 2
      // Predicated region
      $region45: #{policy_forward.1} parent=5 // pred_check
        %p278 = pneg %p277
      $region46: #{policy_forward.1} parent=5 // pred_check_branch
        %280 = sbr.rel (%p278) target = $region48
      $region47: #{policy_forward.1} parent=5 // pred_region
        // Predicated region
        $region49: #{policy_forward.1} parent=47 // pred_check
          %p281 = pneg %p38
        $region50: #{policy_forward.1} parent=47 // pred_check_branch
          %283 = sbr.rel (%p281) target = $region52
        $region51: #{policy_forward.1} parent=47 // pred_region
          %p284 = scmp.lt.s32.totalorder %s18, 1
          %s285 = scalar_select %p284, %s18, 1
          %s286 = smul.addr %s285, 44
          %s287 = smul.addr %s286, 8
          %s288 = scalar_lea.vmem %s0, %s287
        $region52: #{policy_forward.1} parent=47 // pred_fallthru
          _
      $region48: #{policy_forward.1} parent=5 // pred_fallthru
        _
      %p289 = scmp.le.s32.totalorder 1, %s18
      %p290 = scmp.lt.s32.totalorder %s18, 3
      %p291 = pnand %p289, %p290
      %p292 = pneg %p291
      // Predicated region
      $region53: #{policy_forward.1} parent=5 // pred_check
        _
      $region54: #{policy_forward.1} parent=5 // pred_check_branch
        %294 = sbr.rel (%p291) target = $region56
      $region55: #{policy_forward.1} parent=5 // pred_region
        %s295 = ssub.s32 %s18, 1
        %p296 = scmp.lt.s32.totalorder %s23, 1
        %s297 = scalar_select %p296, %s23, 1
        %s298 = smul.addr %s297, 44
        %s299 = smul.addr %s298, 8
        %s300 = scalar_lea.vmem %s0, %s299
        %p301 = pneg %p44
        %p302 = pneg %p41
        %p303 = pneg %p65
        %p304 = pneg %p62
        %p305 = pneg %p86
        %p306 = pneg %p83
        %p307 = pneg %p107
        %p308 = pneg %p104
        %p309 = pneg %p128
        %p310 = pneg %p125
        %p311 = pneg %p149
        %p312 = pneg %p146
        %p313 = pneg %p170
        %p314 = pneg %p167
        %p315 = pneg %p191
        %p316 = pneg %p188
        %p317 = pneg %p212
        %p318 = pneg %p209
        %p319 = pneg %p238
        %p320 = pneg %p235
        %s321 = sand.u32 %s225, 1
        %s322 = scalar_lea.sflag [#allocation3], %s321
        %s323 = sand.u32 %s225, 1
        %s324 = scalar_lea.vmem [#allocation2], %s323
        %p325 = scmp.lt.s32.totalorder %s23, 1
        %s326 = scalar_select %p325, %s23, 1
        %s327 = smul.addr %s326, 44
        %s328 = smul.addr %s327, 8
        %s329 = scalar_lea.vmem %s0, %s328
        %v330 = vld [vmem:[%s329] sm:$0xff]
        %v331 = vld [vmem:[%s329 + $0x8] sm:$0xff]
        %v332 = vld [vmem:[%s329 + $0x10] sm:$0xff]
        %v333 = vld [vmem:[%s329 + $0x18] sm:$0x1]
        %v334 = vld [vmem:[%s329 + $0x20] sm:$0xff]
        %v335 = vld [vmem:[%s329 + $0x28] sm:$0xff]
        %v336 = vld [vmem:[%s329 + $0x30] sm:$0xff]
        %v337 = vld [vmem:[%s329 + $0x38] sm:$0x1]
        %v338 = vld [vmem:[%s329 + $0x40] sm:$0xff]
        %v339 = vld [vmem:[%s329 + $0x48] sm:$0xff]
        %v340 = vld [vmem:[%s329 + $0x50] sm:$0xff]
        %v341 = vld [vmem:[%s329 + $0x58] sm:$0x1]
        %v342 = vld [vmem:[%s329 + $0x60] sm:$0xff]
        %v343 = vld [vmem:[%s329 + $0x68] sm:$0xff]
        %v344 = vld [vmem:[%s329 + $0x70] sm:$0xff]
        %v345 = vld [vmem:[%s329 + $0x78] sm:$0x1]
        %v346 = vld [vmem:[%s329 + $0x80] sm:$0xff]
        %v347 = vld [vmem:[%s329 + $0x88] sm:$0xff]
        %v348 = vld [vmem:[%s329 + $0x90] sm:$0xff]
        %v349 = vld [vmem:[%s329 + $0x98] sm:$0x1]
        %v350 = vld [vmem:[%s329 + $0xa0] sm:$0xff]
        %v351 = vld [vmem:[%s329 + $0xa8] sm:$0xff]
        %v352 = vld [vmem:[%s329 + $0xb0] sm:$0xff]
        %v353 = vld [vmem:[%s329 + $0xb8] sm:$0x1]
        %v354 = vld [vmem:[%s329 + $0xc0] sm:$0xff]
        %v355 = vld [vmem:[%s329 + $0xc8] sm:$0xff]
        %v356 = vld [vmem:[%s329 + $0xd0] sm:$0xff]
        %v357 = vld [vmem:[%s329 + $0xd8] sm:$0x1]
        %v358 = vld [vmem:[%s329 + $0xe0] sm:$0xff]
        %v359 = vld [vmem:[%s329 + $0xe8] sm:$0xff]
        %v360 = vld [vmem:[%s329 + $0xf0] sm:$0xff]
        %v361 = vld [vmem:[%s329 + $0xf8] sm:$0x1]
        %v362 = vld [vmem:[%s329 + $0x100] sm:$0xff]
        %v363 = vld [vmem:[%s329 + $0x108] sm:$0xff]
        %v364 = vld [vmem:[%s329 + $0x110] sm:$0xff]
        %v365 = vld [vmem:[%s329 + $0x118] sm:$0x1]
        %v366 = vld [vmem:[%s329 + $0x120] sm:$0xff]
        %v367 = vld [vmem:[%s329 + $0x128] sm:$0xff]
        %v368 = vld [vmem:[%s329 + $0x130] sm:$0xff]
        %v369 = vld [vmem:[%s329 + $0x138] sm:$0x1]
        %v370 = vld [vmem:[%s329 + $0x140] sm:$0xff]
        %v371 = vld [vmem:[%s329 + $0x148] sm:$0xff]
        %v372 = vld [vmem:[%s329 + $0x150] sm:$0xff]
        %v373 = vld [vmem:[%s329 + $0x158] sm:$0x1]
        %v374 = vld [vmem:[%s1] sm:$0xff]
        %v375 = vld [vmem:[%s1 + $0x8] sm:$0xff]
        %v376 = vld [vmem:[%s1 + $0x10] sm:$0xff]
        %v377 = vld [vmem:[%s1 + $0x18] sm:$0xff]
        %v378 = vld [vmem:[%s1 + $0x20] sm:$0xff]
        %v379 = vld [vmem:[%s1 + $0x28] sm:$0xff]
        %v380 = vld [vmem:[%s1 + $0x30] sm:$0xff]
        %v381 = vld [vmem:[%s1 + $0x38] sm:$0xff]
        %v382 = vld [vmem:[%s1 + $0x40] sm:$0xff]
        %v383 = vld [vmem:[%s1 + $0x48] sm:$0xff]
        %v384 = vld [vmem:[%s1 + $0x50] sm:$0xff]
        %v385 = vld [vmem:[%s1 + $0x58] sm:$0xff]
        %v386 = vld [vmem:[%s1 + $0x60] sm:$0xff]
        %v387 = vld [vmem:[%s1 + $0x68] sm:$0xff]
        %v388 = vld [vmem:[%s1 + $0x70] sm:$0xff]
        %v389 = vld [vmem:[%s1 + $0x78] sm:$0xff]
        %vm430 = vcmask 1046528
        %v431 = vrot.slane %v330, 1
        %v432 = vrot.slane %v331, 1
        %v433 = vsel %vm430, %v431, %v432
        %v434 = vrot.slane %v332, 1
        %v435 = vsel %vm430, %v432, %v434
        %v436 = vrot.slane %v333, 1
        %v437 = vsel %vm430, %v434, %v436
        %v438 = vrot.slane %v334, 1
        %v439 = vrot.slane %v335, 1
        %v440 = vsel %vm430, %v438, %v439
        %v441 = vrot.slane %v336, 1
        %v442 = vsel %vm430, %v439, %v441
        %v443 = vrot.slane %v337, 1
        %v444 = vsel %vm430, %v441, %v443
        %v445 = vrot.slane %v338, 1
        %v446 = vrot.slane %v339, 1
        %v447 = vsel %vm430, %v445, %v446
        %v448 = vrot.slane %v340, 1
        %v449 = vsel %vm430, %v446, %v448
        %v450 = vrot.slane %v341, 1
        %v451 = vsel %vm430, %v448, %v450
        %v452 = vrot.slane %v342, 1
        %v453 = vrot.slane %v343, 1
        %v454 = vsel %vm430, %v452, %v453
        %v455 = vrot.slane %v344, 1
        %v456 = vsel %vm430, %v453, %v455
        %v457 = vrot.slane %v345, 1
        %v458 = vsel %vm430, %v455, %v457
        %v459 = vrot.slane %v346, 1
        %v460 = vrot.slane %v347, 1
        %v461 = vsel %vm430, %v459, %v460
        %v462 = vrot.slane %v348, 1
        %v463 = vsel %vm430, %v460, %v462
        %v464 = vrot.slane %v349, 1
        %v465 = vsel %vm430, %v462, %v464
        %v466 = vrot.slane %v350, 1
        %v467 = vrot.slane %v351, 1
        %v468 = vsel %vm430, %v466, %v467
        %v469 = vrot.slane %v352, 1
        %v470 = vsel %vm430, %v467, %v469
        %v471 = vrot.slane %v353, 1
        %v472 = vsel %vm430, %v469, %v471
        %v473 = vrot.slane %v354, 1
        %v474 = vrot.slane %v355, 1
        %v475 = vsel %vm430, %v473, %v474
        %v476 = vrot.slane %v356, 1
        %v477 = vsel %vm430, %v474, %v476
        %v478 = vrot.slane %v357, 1
        %v479 = vsel %vm430, %v476, %v478
        %v480 = vrot.slane %v358, 1
        %v481 = vrot.slane %v359, 1
        %v482 = vsel %vm430, %v480, %v481
        %v483 = vrot.slane %v360, 1
        %v484 = vsel %vm430, %v481, %v483
        %v485 = vrot.slane %v361, 1
        %v486 = vsel %vm430, %v483, %v485
        %v487 = vrot.slane %v362, 1
        %v488 = vrot.slane %v363, 1
        %v489 = vsel %vm430, %v487, %v488
        %v490 = vrot.slane %v364, 1
        %v491 = vsel %vm430, %v488, %v490
        %v492 = vrot.slane %v365, 1
        %v493 = vsel %vm430, %v490, %v492
        %v494 = vrot.slane %v366, 1
        %v495 = vrot.slane %v367, 1
        %v496 = vsel %vm430, %v494, %v495
        %v497 = vrot.slane %v368, 1
        %v498 = vsel %vm430, %v495, %v497
        %v499 = vrot.slane %v369, 1
        %v500 = vsel %vm430, %v497, %v499
        %s531 = scalar_lea.vmem %s1, 128
        %v532 = vld [vmem:[%s531] sm:$0xff]
        %v533 = vld [vmem:[%s531 + $0x8] sm:$0xff]
        %v534 = vld [vmem:[%s531 + $0x10] sm:$0xff]
        %v535 = vld [vmem:[%s531 + $0x18] sm:$0xff]
        %v536 = vld [vmem:[%s531 + $0x20] sm:$0xff]
        %v537 = vld [vmem:[%s531 + $0x28] sm:$0xff]
        %v538 = vld [vmem:[%s531 + $0x30] sm:$0xff]
        %v539 = vld [vmem:[%s531 + $0x38] sm:$0xff]
        %v540 = vld [vmem:[%s531 + $0x40] sm:$0xff]
        %v541 = vld [vmem:[%s531 + $0x48] sm:$0xff]
        %v542 = vld [vmem:[%s531 + $0x50] sm:$0xff]
        %v543 = vld [vmem:[%s531 + $0x58] sm:$0xff]
        %v544 = vld [vmem:[%s531 + $0x60] sm:$0xff]
        %v545 = vld [vmem:[%s531 + $0x68] sm:$0xff]
        %v546 = vld [vmem:[%s531 + $0x70] sm:$0xff]
        %v547 = vld [vmem:[%s531 + $0x78] sm:$0xff]
        %548 = vmatprep.subr.mxu0 0.0
        %549 = vmatpush1.msra.mxu0 %v532
        %550 = vmatprep.subr.mxu0 0.0
        %551 = vmatpush1.msra.mxu0 %v533
        %552 = vmatprep.subr.mxu0 0.0
        %553 = vmatpush1.msra.mxu0 %v534
        %554 = vmatprep.subr.mxu0 0.0
        %555 = vmatpush1.msra.mxu0 %v535
        %556 = vmatprep.subr.mxu0 0.0
        %557 = vmatpush1.msra.mxu0 %v536
        %558 = vmatprep.subr.mxu0 0.0
        %559 = vmatpush1.msra.mxu0 %v537
        %560 = vmatprep.subr.mxu0 0.0
        %561 = vmatpush1.msra.mxu0 %v538
        %562 = vmatprep.subr.mxu0 0.0
        %563 = vmatpush1.msra.mxu0 %v539
        %564 = vmatprep.subr.mxu0 0.0
        %565 = vmatpush1.msra.mxu0 %v540
        %566 = vmatprep.subr.mxu0 0.0
        %567 = vmatpush1.msra.mxu0 %v541
        %568 = vmatprep.subr.mxu0 0.0
        %569 = vmatpush1.msra.mxu0 %v542
        %570 = vmatprep.subr.mxu0 0.0
        %571 = vmatpush1.msra.mxu0 %v543
        %572 = vmatprep.subr.mxu0 0.0
        %573 = vmatpush1.msra.mxu0 %v544
        %574 = vmatprep.subr.mxu0 0.0
        %575 = vmatpush1.msra.mxu0 %v545
        %576 = vmatprep.subr.mxu0 0.0
        %577 = vmatpush1.msra.mxu0 %v546
        %578 = vmatprep.subr.mxu0 0.0
        %579 = vmatpush1.msra.mxu0 %v547
        %580 = vmatprep.subr.mxu0 0.0
        %581 = vmatpush1.msra.mxu0 0.0
        %582 = vmatprep.subr.mxu0 0.0
        %583 = vmatpush1.msra.mxu0 0.0
        %584 = vmatprep.subr.mxu0 0.0
        %585 = vmatpush1.msra.mxu0 0.0
        %586 = vmatprep.subr.mxu0 0.0
        %587 = vmatpush1.msra.mxu0 0.0
        %588 = vmatprep.subr.mxu0 0.0
        %589 = vmatpush1.msra.mxu0 0.0
        %590 = vmatprep.subr.mxu0 0.0
        %591 = vmatpush1.msra.mxu0 0.0
        %592 = vmatprep.subr.mxu0 0.0
        %593 = vmatpush1.msra.mxu0 0.0
        %594 = vmatprep.subr.mxu0 0.0
        %595 = vmatpush1.msra.mxu0 0.0
        %596 = vmatprep.subr.mxu0 0.0
        %597 = vmatpush1.msra.mxu0 0.0
        %598 = vmatprep.subr.mxu0 0.0
        %599 = vmatpush1.msra.mxu0 0.0
        %600 = vmatprep.subr.mxu0 0.0
        %601 = vmatpush1.msra.mxu0 0.0
        %602 = vmatprep.subr.mxu0 0.0
        %603 = vmatpush1.msra.mxu0 0.0
        %604 = vmatprep.subr.mxu0 0.0
        %605 = vmatpush1.msra.mxu0 0.0
        %606 = vmatprep.subr.mxu0 0.0
        %607 = vmatpush1.msra.mxu0 0.0
        %608 = vmatprep.subr.mxu0 0.0
        %609 = vmatpush1.msra.mxu0 0.0
        %610 = vmatprep.subr.mxu0 0.0
        %611 = vmatpush1.msra.mxu0 0.0
        %612 = vmatprep.mubr.f32.mxu0 0.0
        %613 = vmatmul.mubr.f32.gmra.mrb[0].mxu0 %v433
        %v614 = vpop.f32.mrb[0].mxu0
        %v615 = vadd.f32 0.0, %v614
        %v616 = vpop.f32.mrb[0].mxu0
        %617 = vmatprep.mubr.f32.mxu0 0.0
        %618 = vmatmul.mubr.f32.gmra.mrb[0].mxu0 %v435
        %v619 = vpop.f32.mrb[0].mxu0
        %v620 = vadd.f32 0.0, %v619
        %v621 = vpop.f32.mrb[0].mxu0
        %622 = vmatprep.mubr.f32.mxu0 0.0
        %623 = vmatmul.mubr.f32.gmra.mrb[0].mxu0 %v437
        %v624 = vpop.f32.mrb[0].mxu0
        %v625 = vadd.f32 0.0, %v624
        %v626 = vpop.f32.mrb[0].mxu0
        %627 = vmatprep.mubr.f32.mxu0 0.0
        %628 = vmatmul.mubr.f32.gmra.mrb[0].mxu0 %v440
        %v629 = vpop.f32.mrb[0].mxu0
        %v630 = vadd.f32 0.0, %v629
        %v631 = vpop.f32.mrb[0].mxu0
        %632 = vmatprep.mubr.f32.mxu0 0.0
        %633 = vmatmul.mubr.f32.gmra.mrb[0].mxu0 %v442
        %v634 = vpop.f32.mrb[0].mxu0
        %v635 = vadd.f32 0.0, %v634
        %v636 = vpop.f32.mrb[0].mxu0
        %637 = vmatprep.mubr.f32.mxu0 0.0
        %638 = vmatmul.mubr.f32.gmra.mrb[0].mxu0 %v444
        %v639 = vpop.f32.mrb[0].mxu0
        %v640 = vadd.f32 0.0, %v639
        %v641 = vpop.f32.mrb[0].mxu0
        %642 = vmatprep.mubr.f32.mxu0 0.0
        %643 = vmatmul.mubr.f32.gmra.mrb[0].mxu0 %v447
        %v644 = vpop.f32.mrb[0].mxu0
        %v645 = vadd.f32 0.0, %v644
        %v646 = vpop.f32.mrb[0].mxu0
        %647 = vmatprep.mubr.f32.mxu0 0.0
        %648 = vmatmul.mubr.f32.gmra.mrb[0].mxu0 %v449
        %v649 = vpop.f32.mrb[0].mxu0
        %v650 = vadd.f32 0.0, %v649
        %v651 = vpop.f32.mrb[0].mxu0
        %652 = vmatprep.mubr.f32.mxu0 0.0
        %653 = vmatmul.mubr.f32.gmra.mrb[0].mxu0 %v451
        %v654 = vpop.f32.mrb[0].mxu0
        %v655 = vadd.f32 0.0, %v654
        %v656 = vpop.f32.mrb[0].mxu0
        %657 = vmatprep.mubr.f32.mxu0 0.0
        %658 = vmatmul.mubr.f32.gmra.mrb[0].mxu0 %v454
        %v659 = vpop.f32.mrb[0].mxu0
        %v660 = vadd.f32 0.0, %v659
        %v661 = vpop.f32.mrb[0].mxu0
        %662 = vmatprep.mubr.f32.mxu0 0.0
        %663 = vmatmul.mubr.f32.gmra.mrb[0].mxu0 %v456
        %v664 = vpop.f32.mrb[0].mxu0
        %v665 = vadd.f32 0.0, %v664
        %v666 = vpop.f32.mrb[0].mxu0
        %667 = vmatprep.mubr.f32.mxu0 0.0
        %668 = vmatmul.mubr.f32.gmra.mrb[0].mxu0 %v458
        %v669 = vpop.f32.mrb[0].mxu0
        %v670 = vadd.f32 0.0, %v669
        %v671 = vpop.f32.mrb[0].mxu0
        %672 = vmatprep.mubr.f32.mxu0 0.0
        %673 = vmatmul.mubr.f32.gmra.mrb[0].mxu0 %v461
        %v674 = vpop.f32.mrb[0].mxu0
        %v675 = vadd.f32 0.0, %v674
        %v676 = vpop.f32.mrb[0].mxu0
        %677 = vmatprep.mubr.f32.mxu0 0.0
        %678 = vmatmul.mubr.f32.gmra.mrb[0].mxu0 %v463
        %v679 = vpop.f32.mrb[0].mxu0
        %v680 = vadd.f32 0.0, %v679
        %v681 = vpop.f32.mrb[0].mxu0
        %682 = vmatprep.mubr.f32.mxu0 0.0
        %683 = vmatmul.mubr.f32.gmra.mrb[0].mxu0 %v465
        %v684 = vpop.f32.mrb[0].mxu0
        %v685 = vadd.f32 0.0, %v684
        %v686 = vpop.f32.mrb[0].mxu0
        %687 = vmatprep.mubr.f32.mxu0 0.0
        %688 = vmatmul.mubr.f32.gmra.mrb[0].mxu0 %v468
        %v689 = vpop.f32.mrb[0].mxu0
        %v690 = vadd.f32 0.0, %v689
        %v691 = vpop.f32.mrb[0].mxu0
        %692 = vmatprep.mubr.f32.mxu0 0.0
        %693 = vmatmul.mubr.f32.gmra.mrb[0].mxu0 %v470
        %v694 = vpop.f32.mrb[0].mxu0
        %v695 = vadd.f32 0.0, %v694
        %v696 = vpop.f32.mrb[0].mxu0
        %697 = vmatprep.mubr.f32.mxu0 0.0
        %698 = vmatmul.mubr.f32.gmra.mrb[0].mxu0 %v472
        %v699 = vpop.f32.mrb[0].mxu0
        %v700 = vadd.f32 0.0, %v699
        %v701 = vpop.f32.mrb[0].mxu0
        %702 = vmatprep.mubr.f32.mxu0 0.0
        %703 = vmatmul.mubr.f32.gmra.mrb[0].mxu0 %v475
        %v704 = vpop.f32.mrb[0].mxu0
        %v705 = vadd.f32 0.0, %v704
        %v706 = vpop.f32.mrb[0].mxu0
        %707 = vmatprep.mubr.f32.mxu0 0.0
        %708 = vmatmul.mubr.f32.gmra.mrb[0].mxu0 %v477
        %v709 = vpop.f32.mrb[0].mxu0
        %v710 = vadd.f32 0.0, %v709
        %v711 = vpop.f32.mrb[0].mxu0
        %712 = vmatprep.mubr.f32.mxu0 0.0
        %713 = vmatmul.mubr.f32.gmra.mrb[0].mxu0 %v479
        %v714 = vpop.f32.mrb[0].mxu0
        %v715 = vadd.f32 0.0, %v714
        %v716 = vpop.f32.mrb[0].mxu0
        %717 = vmatprep.mubr.f32.mxu0 0.0
        %718 = vmatmul.mubr.f32.gmra.mrb[0].mxu0 %v482
        %v719 = vpop.f32.mrb[0].mxu0
        %v720 = vadd.f32 0.0, %v719
        %v721 = vpop.f32.mrb[0].mxu0
        %722 = vmatprep.mubr.f32.mxu0 0.0
        %723 = vmatmul.mubr.f32.gmra.mrb[0].mxu0 %v484
        %v724 = vpop.f32.mrb[0].mxu0
        %v725 = vadd.f32 0.0, %v724
        %v726 = vpop.f32.mrb[0].mxu0
        %727 = vmatprep.mubr.f32.mxu0 0.0
        %728 = vmatmul.mubr.f32.gmra.mrb[0].mxu0 %v486
        %v729 = vpop.f32.mrb[0].mxu0
        %v730 = vadd.f32 0.0, %v729
        %v731 = vpop.f32.mrb[0].mxu0
        %732 = vmatprep.mubr.f32.mxu0 0.0
        %733 = vmatmul.mubr.f32.gmra.mrb[0].mxu0 %v489
        %v734 = vpop.f32.mrb[0].mxu0
        %v735 = vadd.f32 0.0, %v734
        %v736 = vpop.f32.mrb[0].mxu0
        %737 = vmatprep.mubr.f32.mxu0 0.0
        %738 = vmatmul.mubr.f32.gmra.mrb[0].mxu0 %v491
        %v739 = vpop.f32.mrb[0].mxu0
        %v740 = vadd.f32 0.0, %v739
        %v741 = vpop.f32.mrb[0].mxu0
        %742 = vmatprep.mubr.f32.mxu0 0.0
        %743 = vmatmul.mubr.f32.gmra.mrb[0].mxu0 %v493
        %v744 = vpop.f32.mrb[0].mxu0
        %v745 = vadd.f32 0.0, %v744
        %v746 = vpop.f32.mrb[0].mxu0
        %747 = vmatprep.mubr.f32.mxu0 0.0
        %748 = vmatmul.mubr.f32.gmra.mrb[0].mxu0 %v496
        %v749 = vpop.f32.mrb[0].mxu0
        %v750 = vadd.f32 0.0, %v749
        %v751 = vpop.f32.mrb[0].mxu0
        %752 = vmatprep.mubr.f32.mxu0 0.0
        %753 = vmatmul.mubr.f32.gmra.mrb[0].mxu0 %v498
        %v754 = vpop.f32.mrb[0].mxu0
        %v755 = vadd.f32 0.0, %v754
        %v756 = vpop.f32.mrb[0].mxu0
        %757 = vmatprep.mubr.f32.mxu0 0.0
        %758 = vmatmul.mubr.f32.gmra.mrb[0].mxu0 %v500
        %v759 = vpop.f32.mrb[0].mxu0
        %v760 = vadd.f32 0.0, %v759
        %v761 = vpop.f32.mrb[0].mxu0
        %762 = vdwg.mxu0
        %763 = vmatprep.subr.mxu0 0.0
        %764 = vmatpush1.msra.mxu0 %v374
        %765 = vmatprep.subr.mxu0 0.0
        %766 = vmatpush1.msra.mxu0 %v375
        %767 = vmatprep.subr.mxu0 0.0
        %768 = vmatpush1.msra.mxu0 %v376
        %769 = vmatprep.subr.mxu0 0.0
        %770 = vmatpush1.msra.mxu0 %v377
        %771 = vmatprep.subr.mxu0 0.0
        %772 = vmatpush1.msra.mxu0 %v378
        %773 = vmatprep.subr.mxu0 0.0
        %774 = vmatpush1.msra.mxu0 %v379
        %775 = vmatprep.subr.mxu0 0.0
        %776 = vmatpush1.msra.mxu0 %v380
        %777 = vmatprep.subr.mxu0 0.0
        %778 = vmatpush1.msra.mxu0 %v381
        %779 = vmatprep.subr.mxu0 0.0
        %780 = vmatpush1.msra.mxu0 %v382
        %781 = vmatprep.subr.mxu0 0.0
        %782 = vmatpush1.msra.mxu0 %v383
        %783 = vmatprep.subr.mxu0 0.0
        %784 = vmatpush1.msra.mxu0 %v384
        %785 = vmatprep.subr.mxu0 0.0
        %786 = vmatpush1.msra.mxu0 %v385
        %787 = vmatprep.subr.mxu0 0.0
        %788 = vmatpush1.msra.mxu0 %v386
        %789 = vmatprep.subr.mxu0 0.0
        %790 = vmatpush1.msra.mxu0 %v387
        %791 = vmatprep.subr.mxu0 0.0
        %792 = vmatpush1.msra.mxu0 %v388
        %793 = vmatprep.subr.mxu0 0.0
        %794 = vmatpush1.msra.mxu0 %v389
        %795 = vmatprep.subr.mxu0 0.0
        %796 = vmatpush1.msra.mxu0 0.0
        %797 = vmatprep.subr.mxu0 0.0
        %798 = vmatpush1.msra.mxu0 0.0
        %799 = vmatprep.subr.mxu0 0.0
        %800 = vmatpush1.msra.mxu0 0.0
        %801 = vmatprep.subr.mxu0 0.0
        %802 = vmatpush1.msra.mxu0 0.0
        %803 = vmatprep.subr.mxu0 0.0
        %804 = vmatpush1.msra.mxu0 0.0
        %805 = vmatprep.subr.mxu0 0.0
        %806 = vmatpush1.msra.mxu0 0.0
        %807 = vmatprep.subr.mxu0 0.0
        %808 = vmatpush1.msra.mxu0 0.0
        %809 = vmatprep.subr.mxu0 0.0
        %810 = vmatpush1.msra.mxu0 0.0
        %811 = vmatprep.subr.mxu0 0.0
        %812 = vmatpush1.msra.mxu0 0.0
        %813 = vmatprep.subr.mxu0 0.0
        %814 = vmatpush1.msra.mxu0 0.0
        %815 = vmatprep.subr.mxu0 0.0
        %816 = vmatpush1.msra.mxu0 0.0
        %817 = vmatprep.subr.mxu0 0.0
        %818 = vmatpush1.msra.mxu0 0.0
        %819 = vmatprep.subr.mxu0 0.0
        %820 = vmatpush1.msra.mxu0 0.0
        %821 = vmatprep.subr.mxu0 0.0
        %822 = vmatpush1.msra.mxu0 0.0
        %823 = vmatprep.subr.mxu0 0.0
        %824 = vmatpush1.msra.mxu0 0.0
        %825 = vmatprep.subr.mxu0 0.0
        %826 = vmatpush1.msra.mxu0 0.0
        %827 = vmatprep.mubr.f32.mxu0 0.0
        %828 = vmatmul.mubr.f32.gmra.mrb[0].mxu0 %v330
        %v829 = vpop.f32.mrb[0].mxu0
        %v830 = vadd.f32 %v615, %v829
        %v831 = vpop.f32.mrb[0].mxu0
        %832 = vmatprep.mubr.f32.mxu0 0.0
        %833 = vmatmul.mubr.f32.gmra.mrb[0].mxu0 %v331
        %v834 = vpop.f32.mrb[0].mxu0
        %v835 = vadd.f32 %v620, %v834
        %v836 = vpop.f32.mrb[0].mxu0
        %837 = vmatprep.mubr.f32.mxu0 0.0
        %838 = vmatmul.mubr.f32.gmra.mrb[0].mxu0 %v332
        %v839 = vpop.f32.mrb[0].mxu0
        %v840 = vadd.f32 %v625, %v839
        %v841 = vpop.f32.mrb[0].mxu0
        %842 = vmatprep.mubr.f32.mxu0 0.0
        %843 = vmatmul.mubr.f32.gmra.mrb[0].mxu0 %v334
        %v844 = vpop.f32.mrb[0].mxu0
        %v845 = vadd.f32 %v630, %v844
        %v846 = vpop.f32.mrb[0].mxu0
        %847 = vmatprep.mubr.f32.mxu0 0.0
        %848 = vmatmul.mubr.f32.gmra.mrb[0].mxu0 %v335
        %v849 = vpop.f32.mrb[0].mxu0
        %v850 = vadd.f32 %v635, %v849
        %v851 = vpop.f32.mrb[0].mxu0
        %852 = vmatprep.mubr.f32.mxu0 0.0
        %853 = vmatmul.mubr.f32.gmra.mrb[0].mxu0 %v336
        %v854 = vpop.f32.mrb[0].mxu0
        %v855 = vadd.f32 %v640, %v854
        %v856 = vpop.f32.mrb[0].mxu0
        %857 = vmatprep.mubr.f32.mxu0 0.0
        %858 = vmatmul.mubr.f32.gmra.mrb[0].mxu0 %v338
        %v859 = vpop.f32.mrb[0].mxu0
        %v860 = vadd.f32 %v645, %v859
        %v861 = vpop.f32.mrb[0].mxu0
        %862 = vmatprep.mubr.f32.mxu0 0.0
        %863 = vmatmul.mubr.f32.gmra.mrb[0].mxu0 %v339
        %v864 = vpop.f32.mrb[0].mxu0
        %v865 = vadd.f32 %v650, %v864
        %v866 = vpop.f32.mrb[0].mxu0
        %867 = vmatprep.mubr.f32.mxu0 0.0
        %868 = vmatmul.mubr.f32.gmra.mrb[0].mxu0 %v340
        %v869 = vpop.f32.mrb[0].mxu0
        %v870 = vadd.f32 %v655, %v869
        %v871 = vpop.f32.mrb[0].mxu0
        %872 = vmatprep.mubr.f32.mxu0 0.0
        %873 = vmatmul.mubr.f32.gmra.mrb[0].mxu0 %v342
        %v874 = vpop.f32.mrb[0].mxu0
        %v875 = vadd.f32 %v660, %v874
        %v876 = vpop.f32.mrb[0].mxu0
        %877 = vmatprep.mubr.f32.mxu0 0.0
        %878 = vmatmul.mubr.f32.gmra.mrb[0].mxu0 %v343
        %v879 = vpop.f32.mrb[0].mxu0
        %v880 = vadd.f32 %v665, %v879
        %v881 = vpop.f32.mrb[0].mxu0
        %882 = vmatprep.mubr.f32.mxu0 0.0
        %883 = vmatmul.mubr.f32.gmra.mrb[0].mxu0 %v344
        %v884 = vpop.f32.mrb[0].mxu0
        %v885 = vadd.f32 %v670, %v884
        %v886 = vpop.f32.mrb[0].mxu0
        %887 = vmatprep.mubr.f32.mxu0 0.0
        %888 = vmatmul.mubr.f32.gmra.mrb[0].mxu0 %v346
        %v889 = vpop.f32.mrb[0].mxu0
        %v890 = vadd.f32 %v675, %v889
        %v891 = vpop.f32.mrb[0].mxu0
        %892 = vmatprep.mubr.f32.mxu0 0.0
        %893 = vmatmul.mubr.f32.gmra.mrb[0].mxu0 %v347
        %v894 = vpop.f32.mrb[0].mxu0
        %v895 = vadd.f32 %v680, %v894
        %v896 = vpop.f32.mrb[0].mxu0
        %897 = vmatprep.mubr.f32.mxu0 0.0
        %898 = vmatmul.mubr.f32.gmra.mrb[0].mxu0 %v348
        %v899 = vpop.f32.mrb[0].mxu0
        %v900 = vadd.f32 %v685, %v899
        %v901 = vpop.f32.mrb[0].mxu0
        %902 = vmatprep.mubr.f32.mxu0 0.0
        %903 = vmatmul.mubr.f32.gmra.mrb[0].mxu0 %v350
        %v904 = vpop.f32.mrb[0].mxu0
        %v905 = vadd.f32 %v690, %v904
        %v906 = vpop.f32.mrb[0].mxu0
        %907 = vmatprep.mubr.f32.mxu0 0.0
        %908 = vmatmul.mubr.f32.gmra.mrb[0].mxu0 %v351
        %v909 = vpop.f32.mrb[0].mxu0
        %v910 = vadd.f32 %v695, %v909
        %v911 = vpop.f32.mrb[0].mxu0
        %912 = vmatprep.mubr.f32.mxu0 0.0
        %913 = vmatmul.mubr.f32.gmra.mrb[0].mxu0 %v352
        %v914 = vpop.f32.mrb[0].mxu0
        %v915 = vadd.f32 %v700, %v914
        %v916 = vpop.f32.mrb[0].mxu0
        %917 = vmatprep.mubr.f32.mxu0 0.0
        %918 = vmatmul.mubr.f32.gmra.mrb[0].mxu0 %v354
        %v919 = vpop.f32.mrb[0].mxu0
        %v920 = vadd.f32 %v705, %v919
        %v921 = vpop.f32.mrb[0].mxu0
        %922 = vmatprep.mubr.f32.mxu0 0.0
        %923 = vmatmul.mubr.f32.gmra.mrb[0].mxu0 %v355
        %v924 = vpop.f32.mrb[0].mxu0
        %v925 = vadd.f32 %v710, %v924
        %v926 = vpop.f32.mrb[0].mxu0
        %927 = vmatprep.mubr.f32.mxu0 0.0
        %928 = vmatmul.mubr.f32.gmra.mrb[0].mxu0 %v356
        %v929 = vpop.f32.mrb[0].mxu0
        %v930 = vadd.f32 %v715, %v929
        %v931 = vpop.f32.mrb[0].mxu0
        %932 = vmatprep.mubr.f32.mxu0 0.0
        %933 = vmatmul.mubr.f32.gmra.mrb[0].mxu0 %v358
        %v934 = vpop.f32.mrb[0].mxu0
        %v935 = vadd.f32 %v720, %v934
        %v936 = vpop.f32.mrb[0].mxu0
        %937 = vmatprep.mubr.f32.mxu0 0.0
        %938 = vmatmul.mubr.f32.gmra.mrb[0].mxu0 %v359
        %v939 = vpop.f32.mrb[0].mxu0
        %v940 = vadd.f32 %v725, %v939
        %v941 = vpop.f32.mrb[0].mxu0
        %942 = vmatprep.mubr.f32.mxu0 0.0
        %943 = vmatmul.mubr.f32.gmra.mrb[0].mxu0 %v360
        %v944 = vpop.f32.mrb[0].mxu0
        %v945 = vadd.f32 %v730, %v944
        %v946 = vpop.f32.mrb[0].mxu0
        %947 = vmatprep.mubr.f32.mxu0 0.0
        %948 = vmatmul.mubr.f32.gmra.mrb[0].mxu0 %v362
        %v949 = vpop.f32.mrb[0].mxu0
        %v950 = vadd.f32 %v735, %v949
        %v951 = vpop.f32.mrb[0].mxu0
        %952 = vmatprep.mubr.f32.mxu0 0.0
        %953 = vmatmul.mubr.f32.gmra.mrb[0].mxu0 %v363
        %v954 = vpop.f32.mrb[0].mxu0
        %v955 = vadd.f32 %v740, %v954
        %v956 = vpop.f32.mrb[0].mxu0
        %957 = vmatprep.mubr.f32.mxu0 0.0
        %958 = vmatmul.mubr.f32.gmra.mrb[0].mxu0 %v364
        %v959 = vpop.f32.mrb[0].mxu0
        %v960 = vadd.f32 %v745, %v959
        %v961 = vpop.f32.mrb[0].mxu0
        %962 = vmatprep.mubr.f32.mxu0 0.0
        %963 = vmatmul.mubr.f32.gmra.mrb[0].mxu0 %v366
        %v964 = vpop.f32.mrb[0].mxu0
        %v965 = vadd.f32 %v750, %v964
        %v966 = vpop.f32.mrb[0].mxu0
        %967 = vmatprep.mubr.f32.mxu0 0.0
        %968 = vmatmul.mubr.f32.gmra.mrb[0].mxu0 %v367
        %v969 = vpop.f32.mrb[0].mxu0
        %v970 = vadd.f32 %v755, %v969
        %v971 = vpop.f32.mrb[0].mxu0
        %972 = vmatprep.mubr.f32.mxu0 0.0
        %973 = vmatmul.mubr.f32.gmra.mrb[0].mxu0 %v368
        %v974 = vpop.f32.mrb[0].mxu0
        %v975 = vadd.f32 %v760, %v974
        %v976 = vpop.f32.mrb[0].mxu0
        %977 = vdwg.mxu0
        %s978 = scalar_lea.vmem %s1, 256
        %v979 = vld [vmem:[%s978] sm:$0xff]
        %v980 = vld [vmem:[%s978 + $0x8] sm:$0xff]
        %v981 = vld [vmem:[%s978 + $0x10] sm:$0xff]
        %v982 = vld [vmem:[%s978 + $0x18] sm:$0xff]
        %v983 = vld [vmem:[%s978 + $0x20] sm:$0xff]
        %v984 = vld [vmem:[%s978 + $0x28] sm:$0xff]
        %v985 = vld [vmem:[%s978 + $0x30] sm:$0xff]
        %v986 = vld [vmem:[%s978 + $0x38] sm:$0xff]
        %v987 = vld [vmem:[%s978 + $0x40] sm:$0xff]
        %v988 = vld [vmem:[%s978 + $0x48] sm:$0xff]
        %v989 = vld [vmem:[%s978 + $0x50] sm:$0xff]
        %v990 = vld [vmem:[%s978 + $0x58] sm:$0xff]
        %v991 = vld [vmem:[%s978 + $0x60] sm:$0xff]
        %v992 = vld [vmem:[%s978 + $0x68] sm:$0xff]
        %v993 = vld [vmem:[%s978 + $0x70] sm:$0xff]
        %v994 = vld [vmem:[%s978 + $0x78] sm:$0xff]
        %995 = vmatprep.subr.mxu0 0.0
        %996 = vmatpush1.msra.mxu0 %v979
        %997 = vmatprep.subr.mxu0 0.0
        %998 = vmatpush1.msra.mxu0 %v980
        %999 = vmatprep.subr.mxu0 0.0
        %1000 = vmatpush1.msra.mxu0 %v981
        %1001 = vmatprep.subr.mxu0 0.0
        %1002 = vmatpush1.msra.mxu0 %v982
        %1003 = vmatprep.subr.mxu0 0.0
        %1004 = vmatpush1.msra.mxu0 %v983
        %1005 = vmatprep.subr.mxu0 0.0
        %1006 = vmatpush1.msra.mxu0 %v984
        %1007 = vmatprep.subr.mxu0 0.0
        %1008 = vmatpush1.msra.mxu0 %v985
        %1009 = vmatprep.subr.mxu0 0.0
        %1010 = vmatpush1.msra.mxu0 %v986
        %1011 = vmatprep.subr.mxu0 0.0
        %1012 = vmatpush1.msra.mxu0 %v987
        %1013 = vmatprep.subr.mxu0 0.0
        %1014 = vmatpush1.msra.mxu0 %v988
        %1015 = vmatprep.subr.mxu0 0.0
        %1016 = vmatpush1.msra.mxu0 %v989
        %1017 = vmatprep.subr.mxu0 0.0
        %1018 = vmatpush1.msra.mxu0 %v990
        %1019 = vmatprep.subr.mxu0 0.0
        %1020 = vmatpush1.msra.mxu0 %v991
        %1021 = vmatprep.subr.mxu0 0.0
        %1022 = vmatpush1.msra.mxu0 %v992
        %1023 = vmatprep.subr.mxu0 0.0
        %1024 = vmatpush1.msra.mxu0 %v993
        %1025 = vmatprep.subr.mxu0 0.0
        %1026 = vmatpush1.msra.mxu0 %v994
        %1027 = vmatprep.subr.mxu0 0.0
        %1028 = vmatpush1.msra.mxu0 0.0
        %1029 = vmatprep.subr.mxu0 0.0
        %1030 = vmatpush1.msra.mxu0 0.0
        %1031 = vmatprep.subr.mxu0 0.0
        %1032 = vmatpush1.msra.mxu0 0.0
        %1033 = vmatprep.subr.mxu0 0.0
        %1034 = vmatpush1.msra.mxu0 0.0
        %1035 = vmatprep.subr.mxu0 0.0
        %1036 = vmatpush1.msra.mxu0 0.0
        %1037 = vmatprep.subr.mxu0 0.0
        %1038 = vmatpush1.msra.mxu0 0.0
        %1039 = vmatprep.subr.mxu0 0.0
        %1040 = vmatpush1.msra.mxu0 0.0
        %1041 = vmatprep.subr.mxu0 0.0
        %1042 = vmatpush1.msra.mxu0 0.0
        %1043 = vmatprep.subr.mxu0 0.0
        %1044 = vmatpush1.msra.mxu0 0.0
        %1045 = vmatprep.subr.mxu0 0.0
        %1046 = vmatpush1.msra.mxu0 0.0
        %1047 = vmatprep.subr.mxu0 0.0
        %1048 = vmatpush1.msra.mxu0 0.0
        %1049 = vmatprep.subr.mxu0 0.0
        %1050 = vmatpush1.msra.mxu0 0.0
        %1051 = vmatprep.subr.mxu0 0.0
        %1052 = vmatpush1.msra.mxu0 0.0
        %1053 = vmatprep.subr.mxu0 0.0
        %1054 = vmatpush1.msra.mxu0 0.0
        %1055 = vmatprep.subr.mxu0 0.0
        %1056 = vmatpush1.msra.mxu0 0.0
        %1057 = vmatprep.subr.mxu0 0.0
        %1058 = vmatpush1.msra.mxu0 0.0
        %1059 = vmatprep.mubr.f32.mxu0 0.0
        %1060 = vmatmul.mubr.f32.gmra.mrb[0].mxu0 %v334
        %v1061 = vpop.f32.mrb[0].mxu0
        %v1062 = vadd.f32 0.0, %v1061
        %v1063 = vpop.f32.mrb[0].mxu0
        %1064 = vmatprep.mubr.f32.mxu0 0.0
        %1065 = vmatmul.mubr.f32.gmra.mrb[0].mxu0 %v335
        %v1066 = vpop.f32.mrb[0].mxu0
        %v1067 = vadd.f32 0.0, %v1066
        %v1068 = vpop.f32.mrb[0].mxu0
        %1069 = vmatprep.mubr.f32.mxu0 0.0
        %1070 = vmatmul.mubr.f32.gmra.mrb[0].mxu0 %v336
        %v1071 = vpop.f32.mrb[0].mxu0
        %v1072 = vadd.f32 0.0, %v1071
        %v1073 = vpop.f32.mrb[0].mxu0
        %1074 = vmatprep.mubr.f32.mxu0 0.0
        %1075 = vmatmul.mubr.f32.gmra.mrb[0].mxu0 %v338
        %v1076 = vpop.f32.mrb[0].mxu0
        %v1077 = vadd.f32 0.0, %v1076
        %v1078 = vpop.f32.mrb[0].mxu0
        %1079 = vmatprep.mubr.f32.mxu0 0.0
        %1080 = vmatmul.mubr.f32.gmra.mrb[0].mxu0 %v339
        %v1081 = vpop.f32.mrb[0].mxu0
        %v1082 = vadd.f32 0.0, %v1081
        %v1083 = vpop.f32.mrb[0].mxu0
        %1084 = vmatprep.mubr.f32.mxu0 0.0
        %1085 = vmatmul.mubr.f32.gmra.mrb[0].mxu0 %v340
        %v1086 = vpop.f32.mrb[0].mxu0
        %v1087 = vadd.f32 0.0, %v1086
        %v1088 = vpop.f32.mrb[0].mxu0
        %1089 = vmatprep.mubr.f32.mxu0 0.0
        %1090 = vmatmul.mubr.f32.gmra.mrb[0].mxu0 %v342
        %v1091 = vpop.f32.mrb[0].mxu0
        %v1092 = vadd.f32 0.0, %v1091
        %v1093 = vpop.f32.mrb[0].mxu0
        %1094 = vmatprep.mubr.f32.mxu0 0.0
        %1095 = vmatmul.mubr.f32.gmra.mrb[0].mxu0 %v343
        %v1096 = vpop.f32.mrb[0].mxu0
        %v1097 = vadd.f32 0.0, %v1096
        %v1098 = vpop.f32.mrb[0].mxu0
        %1099 = vmatprep.mubr.f32.mxu0 0.0
        %1100 = vmatmul.mubr.f32.gmra.mrb[0].mxu0 %v344
        %v1101 = vpop.f32.mrb[0].mxu0
        %v1102 = vadd.f32 0.0, %v1101
        %v1103 = vpop.f32.mrb[0].mxu0
        %1104 = vmatprep.mubr.f32.mxu0 0.0
        %1105 = vmatmul.mubr.f32.gmra.mrb[0].mxu0 %v346
        %v1106 = vpop.f32.mrb[0].mxu0
        %v1107 = vadd.f32 0.0, %v1106
        %v1108 = vpop.f32.mrb[0].mxu0
        %1109 = vmatprep.mubr.f32.mxu0 0.0
        %1110 = vmatmul.mubr.f32.gmra.mrb[0].mxu0 %v347
        %v1111 = vpop.f32.mrb[0].mxu0
        %v1112 = vadd.f32 0.0, %v1111
        %v1113 = vpop.f32.mrb[0].mxu0
        %1114 = vmatprep.mubr.f32.mxu0 0.0
        %1115 = vmatmul.mubr.f32.gmra.mrb[0].mxu0 %v348
        %v1116 = vpop.f32.mrb[0].mxu0
        %v1117 = vadd.f32 0.0, %v1116
        %v1118 = vpop.f32.mrb[0].mxu0
        %1119 = vmatprep.mubr.f32.mxu0 0.0
        %1120 = vmatmul.mubr.f32.gmra.mrb[0].mxu0 %v350
        %v1121 = vpop.f32.mrb[0].mxu0
        %v1122 = vadd.f32 0.0, %v1121
        %v1123 = vpop.f32.mrb[0].mxu0
        %1124 = vmatprep.mubr.f32.mxu0 0.0
        %1125 = vmatmul.mubr.f32.gmra.mrb[0].mxu0 %v351
        %v1126 = vpop.f32.mrb[0].mxu0
        %v1127 = vadd.f32 0.0, %v1126
        %v1128 = vpop.f32.mrb[0].mxu0
        %1129 = vmatprep.mubr.f32.mxu0 0.0
        %1130 = vmatmul.mubr.f32.gmra.mrb[0].mxu0 %v352
        %v1131 = vpop.f32.mrb[0].mxu0
        %v1132 = vadd.f32 0.0, %v1131
        %v1133 = vpop.f32.mrb[0].mxu0
        %1134 = vmatprep.mubr.f32.mxu0 0.0
        %1135 = vmatmul.mubr.f32.gmra.mrb[0].mxu0 %v354
        %v1136 = vpop.f32.mrb[0].mxu0
        %v1137 = vadd.f32 0.0, %v1136
        %v1138 = vpop.f32.mrb[0].mxu0
        %1139 = vmatprep.mubr.f32.mxu0 0.0
        %1140 = vmatmul.mubr.f32.gmra.mrb[0].mxu0 %v355
        %v1141 = vpop.f32.mrb[0].mxu0
        %v1142 = vadd.f32 0.0, %v1141
        %v1143 = vpop.f32.mrb[0].mxu0
        %1144 = vmatprep.mubr.f32.mxu0 0.0
        %1145 = vmatmul.mubr.f32.gmra.mrb[0].mxu0 %v356
        %v1146 = vpop.f32.mrb[0].mxu0
        %v1147 = vadd.f32 0.0, %v1146
        %v1148 = vpop.f32.mrb[0].mxu0
        %1149 = vmatprep.mubr.f32.mxu0 0.0
        %1150 = vmatmul.mubr.f32.gmra.mrb[0].mxu0 %v358
        %v1151 = vpop.f32.mrb[0].mxu0
        %v1152 = vadd.f32 0.0, %v1151
        %v1153 = vpop.f32.mrb[0].mxu0
        %1154 = vmatprep.mubr.f32.mxu0 0.0
        %1155 = vmatmul.mubr.f32.gmra.mrb[0].mxu0 %v359
        %v1156 = vpop.f32.mrb[0].mxu0
        %v1157 = vadd.f32 0.0, %v1156
        %v1158 = vpop.f32.mrb[0].mxu0
        %1159 = vmatprep.mubr.f32.mxu0 0.0
        %1160 = vmatmul.mubr.f32.gmra.mrb[0].mxu0 %v360
        %v1161 = vpop.f32.mrb[0].mxu0
        %v1162 = vadd.f32 0.0, %v1161
        %v1163 = vpop.f32.mrb[0].mxu0
        %1164 = vmatprep.mubr.f32.mxu0 0.0
        %1165 = vmatmul.mubr.f32.gmra.mrb[0].mxu0 %v362
        %v1166 = vpop.f32.mrb[0].mxu0
        %v1167 = vadd.f32 0.0, %v1166
        %v1168 = vpop.f32.mrb[0].mxu0
        %1169 = vmatprep.mubr.f32.mxu0 0.0
        %1170 = vmatmul.mubr.f32.gmra.mrb[0].mxu0 %v363
        %v1171 = vpop.f32.mrb[0].mxu0
        %v1172 = vadd.f32 0.0, %v1171
        %v1173 = vpop.f32.mrb[0].mxu0
        %1174 = vmatprep.mubr.f32.mxu0 0.0
        %1175 = vmatmul.mubr.f32.gmra.mrb[0].mxu0 %v364
        %v1176 = vpop.f32.mrb[0].mxu0
        %v1177 = vadd.f32 0.0, %v1176
        %v1178 = vpop.f32.mrb[0].mxu0
        %1179 = vmatprep.mubr.f32.mxu0 0.0
        %1180 = vmatmul.mubr.f32.gmra.mrb[0].mxu0 %v366
        %v1181 = vpop.f32.mrb[0].mxu0
        %v1182 = vadd.f32 0.0, %v1181
        %v1183 = vpop.f32.mrb[0].mxu0
        %1184 = vmatprep.mubr.f32.mxu0 0.0
        %1185 = vmatmul.mubr.f32.gmra.mrb[0].mxu0 %v367
        %v1186 = vpop.f32.mrb[0].mxu0
        %v1187 = vadd.f32 0.0, %v1186
        %v1188 = vpop.f32.mrb[0].mxu0
        %1189 = vmatprep.mubr.f32.mxu0 0.0
        %1190 = vmatmul.mubr.f32.gmra.mrb[0].mxu0 %v368
        %v1191 = vpop.f32.mrb[0].mxu0
        %v1192 = vadd.f32 0.0, %v1191
        %v1193 = vpop.f32.mrb[0].mxu0
        %1194 = vmatprep.mubr.f32.mxu0 0.0
        %1195 = vmatmul.mubr.f32.gmra.mrb[0].mxu0 %v370
        %v1196 = vpop.f32.mrb[0].mxu0
        %v1197 = vadd.f32 0.0, %v1196
        %v1198 = vpop.f32.mrb[0].mxu0
        %1199 = vmatprep.mubr.f32.mxu0 0.0
        %1200 = vmatmul.mubr.f32.gmra.mrb[0].mxu0 %v371
        %v1201 = vpop.f32.mrb[0].mxu0
        %v1202 = vadd.f32 0.0, %v1201
        %v1203 = vpop.f32.mrb[0].mxu0
        %1204 = vmatprep.mubr.f32.mxu0 0.0
        %1205 = vmatmul.mubr.f32.gmra.mrb[0].mxu0 %v372
        %v1206 = vpop.f32.mrb[0].mxu0
        %v1207 = vadd.f32 0.0, %v1206
        %v1208 = vpop.f32.mrb[0].mxu0
        %1209 = vdwg.mxu0
        %v1210 = vadd.f32 %v830, %v1062
        %v1211 = vadd.f32 %v835, %v1067
        %v1212 = vadd.f32 %v840, %v1072
        %v1213 = vadd.f32 %v845, %v1077
        %v1214 = vadd.f32 %v850, %v1082
        %v1215 = vadd.f32 %v855, %v1087
        %v1216 = vadd.f32 %v860, %v1092
        %v1217 = vadd.f32 %v865, %v1097
        %v1218 = vadd.f32 %v870, %v1102
        %v1219 = vadd.f32 %v875, %v1107
        %v1220 = vadd.f32 %v880, %v1112
        %v1221 = vadd.f32 %v885, %v1117
        %v1222 = vadd.f32 %v890, %v1122
        %v1223 = vadd.f32 %v895, %v1127
        %v1224 = vadd.f32 %v900, %v1132
        %v1225 = vadd.f32 %v905, %v1137
        %v1226 = vadd.f32 %v910, %v1142
        %v1227 = vadd.f32 %v915, %v1147
        %v1228 = vadd.f32 %v920, %v1152
        %v1229 = vadd.f32 %v925, %v1157
        %v1230 = vadd.f32 %v930, %v1162
        %v1231 = vadd.f32 %v935, %v1167
        %v1232 = vadd.f32 %v940, %v1172
        %v1233 = vadd.f32 %v945, %v1177
        %v1234 = vadd.f32 %v950, %v1182
        %v1235 = vadd.f32 %v955, %v1187
        %v1236 = vadd.f32 %v960, %v1192
        %v1237 = vadd.f32 %v965, %v1197
        %v1238 = vadd.f32 %v970, %v1202
        %v1239 = vadd.f32 %v975, %v1207
        %v1244 = vrot.slane %v370, 1
        %v1245 = vrot.slane %v371, 1
        %v1246 = vsel %vm430, %v1244, %v1245
        %v1247 = vrot.slane %v372, 1
        %v1248 = vsel %vm430, %v1245, %v1247
        %v1249 = vrot.slane %v373, 1
        %v1250 = vsel %vm430, %v1247, %v1249
        %s1254 = scalar_lea.vmem %s1, 384
        %v1255 = vld [vmem:[%s1254] sm:$0xff]
        %v1256 = vld [vmem:[%s1254 + $0x8] sm:$0xff]
        %v1257 = vld [vmem:[%s1254 + $0x10] sm:$0xff]
        %v1258 = vld [vmem:[%s1254 + $0x18] sm:$0xff]
        %v1259 = vld [vmem:[%s1254 + $0x20] sm:$0xff]
        %v1260 = vld [vmem:[%s1254 + $0x28] sm:$0xff]
        %v1261 = vld [vmem:[%s1254 + $0x30] sm:$0xff]
        %v1262 = vld [vmem:[%s1254 + $0x38] sm:$0xff]
        %v1263 = vld [vmem:[%s1254 + $0x40] sm:$0xff]
        %v1264 = vld [vmem:[%s1254 + $0x48] sm:$0xff]
        %v1265 = vld [vmem:[%s1254 + $0x50] sm:$0xff]
        %v1266 = vld [vmem:[%s1254 + $0x58] sm:$0xff]
        %v1267 = vld [vmem:[%s1254 + $0x60] sm:$0xff]
        %v1268 = vld [vmem:[%s1254 + $0x68] sm:$0xff]
        %v1269 = vld [vmem:[%s1254 + $0x70] sm:$0xff]
        %v1270 = vld [vmem:[%s1254 + $0x78] sm:$0xff]
        %1271 = vmatprep.subr.mxu0 0.0
        %1272 = vmatpush1.msra.mxu0 %v1255
        %1273 = vmatprep.subr.mxu0 0.0
        %1274 = vmatpush1.msra.mxu0 %v1256
        %1275 = vmatprep.subr.mxu0 0.0
        %1276 = vmatpush1.msra.mxu0 %v1257
        %1277 = vmatprep.subr.mxu0 0.0
        %1278 = vmatpush1.msra.mxu0 %v1258
        %1279 = vmatprep.subr.mxu0 0.0
        %1280 = vmatpush1.msra.mxu0 %v1259
        %1281 = vmatprep.subr.mxu0 0.0
        %1282 = vmatpush1.msra.mxu0 %v1260
        %1283 = vmatprep.subr.mxu0 0.0
        %1284 = vmatpush1.msra.mxu0 %v1261
        %1285 = vmatprep.subr.mxu0 0.0
        %1286 = vmatpush1.msra.mxu0 %v1262
        %1287 = vmatprep.subr.mxu0 0.0
        %1288 = vmatpush1.msra.mxu0 %v1263
        %1289 = vmatprep.subr.mxu0 0.0
        %1290 = vmatpush1.msra.mxu0 %v1264
        %1291 = vmatprep.subr.mxu0 0.0
        %1292 = vmatpush1.msra.mxu0 %v1265
        %1293 = vmatprep.subr.mxu0 0.0
        %1294 = vmatpush1.msra.mxu0 %v1266
        %1295 = vmatprep.subr.mxu0 0.0
        %1296 = vmatpush1.msra.mxu0 %v1267
        %1297 = vmatprep.subr.mxu0 0.0
        %1298 = vmatpush1.msra.mxu0 %v1268
        %1299 = vmatprep.subr.mxu0 0.0
        %1300 = vmatpush1.msra.mxu0 %v1269
        %1301 = vmatprep.subr.mxu0 0.0
        %1302 = vmatpush1.msra.mxu0 %v1270
        %1303 = vmatprep.subr.mxu0 0.0
        %1304 = vmatpush1.msra.mxu0 0.0
        %1305 = vmatprep.subr.mxu0 0.0
        %1306 = vmatpush1.msra.mxu0 0.0
        %1307 = vmatprep.subr.mxu0 0.0
        %1308 = vmatpush1.msra.mxu0 0.0
        %1309 = vmatprep.subr.mxu0 0.0
        %1310 = vmatpush1.msra.mxu0 0.0
        %1311 = vmatprep.subr.mxu0 0.0
        %1312 = vmatpush1.msra.mxu0 0.0
        %1313 = vmatprep.subr.mxu0 0.0
        %1314 = vmatpush1.msra.mxu0 0.0
        %1315 = vmatprep.subr.mxu0 0.0
        %1316 = vmatpush1.msra.mxu0 0.0
        %1317 = vmatprep.subr.mxu0 0.0
        %1318 = vmatpush1.msra.mxu0 0.0
        %1319 = vmatprep.subr.mxu0 0.0
        %1320 = vmatpush1.msra.mxu0 0.0
        %1321 = vmatprep.subr.mxu0 0.0
        %1322 = vmatpush1.msra.mxu0 0.0
        %1323 = vmatprep.subr.mxu0 0.0
        %1324 = vmatpush1.msra.mxu0 0.0
        %1325 = vmatprep.subr.mxu0 0.0
        %1326 = vmatpush1.msra.mxu0 0.0
        %1327 = vmatprep.subr.mxu0 0.0
        %1328 = vmatpush1.msra.mxu0 0.0
        %1329 = vmatprep.subr.mxu0 0.0
        %1330 = vmatpush1.msra.mxu0 0.0
        %1331 = vmatprep.subr.mxu0 0.0
        %1332 = vmatpush1.msra.mxu0 0.0
        %1333 = vmatprep.subr.mxu0 0.0
        %1334 = vmatpush1.msra.mxu0 0.0
        %1335 = vmatprep.mubr.f32.mxu0 0.0
        %1336 = vmatmul.mubr.f32.gmra.mrb[0].mxu0 %v440
        %v1337 = vpop.f32.mrb[0].mxu0
        %v1338 = vadd.f32 0.0, %v1337
        %v1339 = vpop.f32.mrb[0].mxu0
        %1340 = vmatprep.mubr.f32.mxu0 0.0
        %1341 = vmatmul.mubr.f32.gmra.mrb[0].mxu0 %v442
        %v1342 = vpop.f32.mrb[0].mxu0
        %v1343 = vadd.f32 0.0, %v1342
        %v1344 = vpop.f32.mrb[0].mxu0
        %1345 = vmatprep.mubr.f32.mxu0 0.0
        %1346 = vmatmul.mubr.f32.gmra.mrb[0].mxu0 %v444
        %v1347 = vpop.f32.mrb[0].mxu0
        %v1348 = vadd.f32 0.0, %v1347
        %v1349 = vpop.f32.mrb[0].mxu0
        %1350 = vmatprep.mubr.f32.mxu0 0.0
        %1351 = vmatmul.mubr.f32.gmra.mrb[0].mxu0 %v447
        %v1352 = vpop.f32.mrb[0].mxu0
        %v1353 = vadd.f32 0.0, %v1352
        %v1354 = vpop.f32.mrb[0].mxu0
        %1355 = vmatprep.mubr.f32.mxu0 0.0
        %1356 = vmatmul.mubr.f32.gmra.mrb[0].mxu0 %v449
        %v1357 = vpop.f32.mrb[0].mxu0
        %v1358 = vadd.f32 0.0, %v1357
        %v1359 = vpop.f32.mrb[0].mxu0
        %1360 = vmatprep.mubr.f32.mxu0 0.0
        %1361 = vmatmul.mubr.f32.gmra.mrb[0].mxu0 %v451
        %v1362 = vpop.f32.mrb[0].mxu0
        %v1363 = vadd.f32 0.0, %v1362
        %v1364 = vpop.f32.mrb[0].mxu0
        %1365 = vmatprep.mubr.f32.mxu0 0.0
        %1366 = vmatmul.mubr.f32.gmra.mrb[0].mxu0 %v454
        %v1367 = vpop.f32.mrb[0].mxu0
        %v1368 = vadd.f32 0.0, %v1367
        %v1369 = vpop.f32.mrb[0].mxu0
        %1370 = vmatprep.mubr.f32.mxu0 0.0
        %1371 = vmatmul.mubr.f32.gmra.mrb[0].mxu0 %v456
        %v1372 = vpop.f32.mrb[0].mxu0
        %v1373 = vadd.f32 0.0, %v1372
        %v1374 = vpop.f32.mrb[0].mxu0
        %1375 = vmatprep.mubr.f32.mxu0 0.0
        %1376 = vmatmul.mubr.f32.gmra.mrb[0].mxu0 %v458
        %v1377 = vpop.f32.mrb[0].mxu0
        %v1378 = vadd.f32 0.0, %v1377
        %v1379 = vpop.f32.mrb[0].mxu0
        %1380 = vmatprep.mubr.f32.mxu0 0.0
        %1381 = vmatmul.mubr.f32.gmra.mrb[0].mxu0 %v461
        %v1382 = vpop.f32.mrb[0].mxu0
        %v1383 = vadd.f32 0.0, %v1382
        %v1384 = vpop.f32.mrb[0].mxu0
        %1385 = vmatprep.mubr.f32.mxu0 0.0
        %1386 = vmatmul.mubr.f32.gmra.mrb[0].mxu0 %v463
        %v1387 = vpop.f32.mrb[0].mxu0
        %v1388 = vadd.f32 0.0, %v1387
        %v1389 = vpop.f32.mrb[0].mxu0
        %1390 = vmatprep.mubr.f32.mxu0 0.0
        %1391 = vmatmul.mubr.f32.gmra.mrb[0].mxu0 %v465
        %v1392 = vpop.f32.mrb[0].mxu0
        %v1393 = vadd.f32 0.0, %v1392
        %v1394 = vpop.f32.mrb[0].mxu0
        %1395 = vmatprep.mubr.f32.mxu0 0.0
        %1396 = vmatmul.mubr.f32.gmra.mrb[0].mxu0 %v468
        %v1397 = vpop.f32.mrb[0].mxu0
        %v1398 = vadd.f32 0.0, %v1397
        %v1399 = vpop.f32.mrb[0].mxu0
        %1400 = vmatprep.mubr.f32.mxu0 0.0
        %1401 = vmatmul.mubr.f32.gmra.mrb[0].mxu0 %v470
        %v1402 = vpop.f32.mrb[0].mxu0
        %v1403 = vadd.f32 0.0, %v1402
        %v1404 = vpop.f32.mrb[0].mxu0
        %1405 = vmatprep.mubr.f32.mxu0 0.0
        %1406 = vmatmul.mubr.f32.gmra.mrb[0].mxu0 %v472
        %v1407 = vpop.f32.mrb[0].mxu0
        %v1408 = vadd.f32 0.0, %v1407
        %v1409 = vpop.f32.mrb[0].mxu0
        %1410 = vmatprep.mubr.f32.mxu0 0.0
        %1411 = vmatmul.mubr.f32.gmra.mrb[0].mxu0 %v475
        %v1412 = vpop.f32.mrb[0].mxu0
        %v1413 = vadd.f32 0.0, %v1412
        %v1414 = vpop.f32.mrb[0].mxu0
        %1415 = vmatprep.mubr.f32.mxu0 0.0
        %1416 = vmatmul.mubr.f32.gmra.mrb[0].mxu0 %v477
        %v1417 = vpop.f32.mrb[0].mxu0
        %v1418 = vadd.f32 0.0, %v1417
        %v1419 = vpop.f32.mrb[0].mxu0
        %1420 = vmatprep.mubr.f32.mxu0 0.0
        %1421 = vmatmul.mubr.f32.gmra.mrb[0].mxu0 %v479
        %v1422 = vpop.f32.mrb[0].mxu0
        %v1423 = vadd.f32 0.0, %v1422
        %v1424 = vpop.f32.mrb[0].mxu0
        %1425 = vmatprep.mubr.f32.mxu0 0.0
        %1426 = vmatmul.mubr.f32.gmra.mrb[0].mxu0 %v482
        %v1427 = vpop.f32.mrb[0].mxu0
        %v1428 = vadd.f32 0.0, %v1427
        %v1429 = vpop.f32.mrb[0].mxu0
        %1430 = vmatprep.mubr.f32.mxu0 0.0
        %1431 = vmatmul.mubr.f32.gmra.mrb[0].mxu0 %v484
        %v1432 = vpop.f32.mrb[0].mxu0
        %v1433 = vadd.f32 0.0, %v1432
        %v1434 = vpop.f32.mrb[0].mxu0
        %1435 = vmatprep.mubr.f32.mxu0 0.0
        %1436 = vmatmul.mubr.f32.gmra.mrb[0].mxu0 %v486
        %v1437 = vpop.f32.mrb[0].mxu0
        %v1438 = vadd.f32 0.0, %v1437
        %v1439 = vpop.f32.mrb[0].mxu0
        %1440 = vmatprep.mubr.f32.mxu0 0.0
        %1441 = vmatmul.mubr.f32.gmra.mrb[0].mxu0 %v489
        %v1442 = vpop.f32.mrb[0].mxu0
        %v1443 = vadd.f32 0.0, %v1442
        %v1444 = vpop.f32.mrb[0].mxu0
        %1445 = vmatprep.mubr.f32.mxu0 0.0
        %1446 = vmatmul.mubr.f32.gmra.mrb[0].mxu0 %v491
        %v1447 = vpop.f32.mrb[0].mxu0
        %v1448 = vadd.f32 0.0, %v1447
        %v1449 = vpop.f32.mrb[0].mxu0
        %1450 = vmatprep.mubr.f32.mxu0 0.0
        %1451 = vmatmul.mubr.f32.gmra.mrb[0].mxu0 %v493
        %v1452 = vpop.f32.mrb[0].mxu0
        %v1453 = vadd.f32 0.0, %v1452
        %v1454 = vpop.f32.mrb[0].mxu0
        %1455 = vmatprep.mubr.f32.mxu0 0.0
        %1456 = vmatmul.mubr.f32.gmra.mrb[0].mxu0 %v496
        %v1457 = vpop.f32.mrb[0].mxu0
        %v1458 = vadd.f32 0.0, %v1457
        %v1459 = vpop.f32.mrb[0].mxu0
        %1460 = vmatprep.mubr.f32.mxu0 0.0
        %1461 = vmatmul.mubr.f32.gmra.mrb[0].mxu0 %v498
        %v1462 = vpop.f32.mrb[0].mxu0
        %v1463 = vadd.f32 0.0, %v1462
        %v1464 = vpop.f32.mrb[0].mxu0
        %1465 = vmatprep.mubr.f32.mxu0 0.0
        %1466 = vmatmul.mubr.f32.gmra.mrb[0].mxu0 %v500
        %v1467 = vpop.f32.mrb[0].mxu0
        %v1468 = vadd.f32 0.0, %v1467
        %v1469 = vpop.f32.mrb[0].mxu0
        %1470 = vmatprep.mubr.f32.mxu0 0.0
        %1471 = vmatmul.mubr.f32.gmra.mrb[0].mxu0 %v1246
        %v1472 = vpop.f32.mrb[0].mxu0
        %v1473 = vadd.f32 0.0, %v1472
        %v1474 = vpop.f32.mrb[0].mxu0
        %1475 = vmatprep.mubr.f32.mxu0 0.0
        %1476 = vmatmul.mubr.f32.gmra.mrb[0].mxu0 %v1248
        %v1477 = vpop.f32.mrb[0].mxu0
        %v1478 = vadd.f32 0.0, %v1477
        %v1479 = vpop.f32.mrb[0].mxu0
        %1480 = vmatprep.mubr.f32.mxu0 0.0
        %1481 = vmatmul.mubr.f32.gmra.mrb[0].mxu0 %v1250
        %v1482 = vpop.f32.mrb[0].mxu0
        %v1483 = vadd.f32 0.0, %v1482
        %v1484 = vpop.f32.mrb[0].mxu0
        %1485 = vdwg.mxu0
        %v1486 = vadd.f32 %v1210, %v1338
        %v1487 = vadd.f32 %v1211, %v1343
        %v1488 = vadd.f32 %v1212, %v1348
        %v1489 = vadd.f32 %v1213, %v1353
        %v1490 = vadd.f32 %v1214, %v1358
        %v1491 = vadd.f32 %v1215, %v1363
        %v1492 = vadd.f32 %v1216, %v1368
        %v1493 = vadd.f32 %v1217, %v1373
        %v1494 = vadd.f32 %v1218, %v1378
        %v1495 = vadd.f32 %v1219, %v1383
        %v1496 = vadd.f32 %v1220, %v1388
        %v1497 = vadd.f32 %v1221, %v1393
        %v1498 = vadd.f32 %v1222, %v1398
        %v1499 = vadd.f32 %v1223, %v1403
        %v1500 = vadd.f32 %v1224, %v1408
        %v1501 = vadd.f32 %v1225, %v1413
        %v1502 = vadd.f32 %v1226, %v1418
        %v1503 = vadd.f32 %v1227, %v1423
        %v1504 = vadd.f32 %v1228, %v1428
        %v1505 = vadd.f32 %v1229, %v1433
        %v1506 = vadd.f32 %v1230, %v1438
        %v1507 = vadd.f32 %v1231, %v1443
        %v1508 = vadd.f32 %v1232, %v1448
        %v1509 = vadd.f32 %v1233, %v1453
        %v1510 = vadd.f32 %v1234, %v1458
        %v1511 = vadd.f32 %v1235, %v1463
        %v1512 = vadd.f32 %v1236, %v1468
        %v1513 = vadd.f32 %v1237, %v1473
        %v1514 = vadd.f32 %v1238, %v1478
        %v1515 = vadd.f32 %v1239, %v1483
        %v1516 = vld [vmem:[%s2] sm:$0x1]
        %v1518 = vlaneseq
        %v1519 = vshrl.u32 %v1518, 7
        %v1520 = vsub.s32 0, %v1519
        %v1521 = vrot.slane %v1516, %v1520
        %v1523 = vadd.f32 %v1486, %v1521
        %v1524 = vadd.f32 %v1487, %v1521
        %v1525 = vadd.f32 %v1488, %v1521
        %v1526 = vadd.f32 %v1489, %v1521
        %v1527 = vadd.f32 %v1490, %v1521
        %v1528 = vadd.f32 %v1491, %v1521
        %v1529 = vadd.f32 %v1492, %v1521
        %v1530 = vadd.f32 %v1493, %v1521
        %v1531 = vadd.f32 %v1494, %v1521
        %v1532 = vadd.f32 %v1495, %v1521
        %v1533 = vadd.f32 %v1496, %v1521
        %v1534 = vadd.f32 %v1497, %v1521
        %v1535 = vadd.f32 %v1498, %v1521
        %v1536 = vadd.f32 %v1499, %v1521
        %v1537 = vadd.f32 %v1500, %v1521
        %v1538 = vadd.f32 %v1501, %v1521
        %v1539 = vadd.f32 %v1502, %v1521
        %v1540 = vadd.f32 %v1503, %v1521
        %v1541 = vadd.f32 %v1504, %v1521
        %v1542 = vadd.f32 %v1505, %v1521
        %v1543 = vadd.f32 %v1506, %v1521
        %v1544 = vadd.f32 %v1507, %v1521
        %v1545 = vadd.f32 %v1508, %v1521
        %v1546 = vadd.f32 %v1509, %v1521
        %v1547 = vadd.f32 %v1510, %v1521
        %v1548 = vadd.f32 %v1511, %v1521
        %v1549 = vadd.f32 %v1512, %v1521
        %v1550 = vadd.f32 %v1513, %v1521
        %v1551 = vadd.f32 %v1514, %v1521
        %v1552 = vadd.f32 %v1515, %v1521
        %v1553 = vmax.f32 %v1523, 0.0
        %v1554 = vmax.f32 %v1524, 0.0
        %v1555 = vmax.f32 %v1525, 0.0
        %v1556 = vmax.f32 %v1526, 0.0
        %v1557 = vmax.f32 %v1527, 0.0
        %v1558 = vmax.f32 %v1528, 0.0
        %v1559 = vmax.f32 %v1529, 0.0
        %v1560 = vmax.f32 %v1530, 0.0
        %v1561 = vmax.f32 %v1531, 0.0
        %v1562 = vmax.f32 %v1532, 0.0
        %v1563 = vmax.f32 %v1533, 0.0
        %v1564 = vmax.f32 %v1534, 0.0
        %v1565 = vmax.f32 %v1535, 0.0
        %v1566 = vmax.f32 %v1536, 0.0
        %v1567 = vmax.f32 %v1537, 0.0
        %v1568 = vmax.f32 %v1538, 0.0
        %v1569 = vmax.f32 %v1539, 0.0
        %v1570 = vmax.f32 %v1540, 0.0
        %v1571 = vmax.f32 %v1541, 0.0
        %v1572 = vmax.f32 %v1542, 0.0
        %v1573 = vmax.f32 %v1543, 0.0
        %v1574 = vmax.f32 %v1544, 0.0
        %v1575 = vmax.f32 %v1545, 0.0
        %v1576 = vmax.f32 %v1546, 0.0
        %v1577 = vmax.f32 %v1547, 0.0
        %v1578 = vmax.f32 %v1548, 0.0
        %v1579 = vmax.f32 %v1549, 0.0
        %v1580 = vmax.f32 %v1550, 0.0
        %v1581 = vmax.f32 %v1551, 0.0
        %v1582 = vmax.f32 %v1552, 0.0
        %v1583 = vld [vmem:[%s3] sm:$0xff]
        %v1584 = vld [vmem:[%s3 + $0x8] sm:$0xff]
        %v1585 = vld [vmem:[%s3 + $0x10] sm:$0xff]
        %v1586 = vld [vmem:[%s3 + $0x18] sm:$0xff]
        %v1587 = vld [vmem:[%s3 + $0x20] sm:$0xff]
        %v1588 = vld [vmem:[%s3 + $0x28] sm:$0xff]
        %v1589 = vld [vmem:[%s3 + $0x30] sm:$0xff]
        %v1590 = vld [vmem:[%s3 + $0x38] sm:$0xff]
        %v1591 = vld [vmem:[%s3 + $0x40] sm:$0xff]
        %v1592 = vld [vmem:[%s3 + $0x48] sm:$0xff]
        %v1593 = vld [vmem:[%s3 + $0x50] sm:$0xff]
        %v1594 = vld [vmem:[%s3 + $0x58] sm:$0xff]
        %v1595 = vld [vmem:[%s3 + $0x60] sm:$0xff]
        %v1596 = vld [vmem:[%s3 + $0x68] sm:$0xff]
        %v1597 = vld [vmem:[%s3 + $0x70] sm:$0xff]
        %v1598 = vld [vmem:[%s3 + $0x78] sm:$0xff]
        %v1626 = vrot.slane %v1553, 1
        %v1627 = vrot.slane %v1554, 1
        %v1628 = vsel %vm430, %v1626, %v1627
        %v1629 = vrot.slane %v1555, 1
        %v1630 = vsel %vm430, %v1627, %v1629
        %v1631 = vrot.slane %v1556, 1
        %v1632 = vrot.slane %v1557, 1
        %v1633 = vsel %vm430, %v1631, %v1632
        %v1634 = vrot.slane %v1558, 1
        %v1635 = vsel %vm430, %v1632, %v1634
        %v1636 = vrot.slane %v1559, 1
        %v1637 = vrot.slane %v1560, 1
        %v1638 = vsel %vm430, %v1636, %v1637
        %v1639 = vrot.slane %v1561, 1
        %v1640 = vsel %vm430, %v1637, %v1639
        %v1641 = vrot.slane %v1562, 1
        %v1642 = vrot.slane %v1563, 1
        %v1643 = vsel %vm430, %v1641, %v1642
        %v1644 = vrot.slane %v1564, 1
        %v1645 = vsel %vm430, %v1642, %v1644
        %v1646 = vrot.slane %v1565, 1
        %v1647 = vrot.slane %v1566, 1
        %v1648 = vsel %vm430, %v1646, %v1647
        %v1649 = vrot.slane %v1567, 1
        %v1650 = vsel %vm430, %v1647, %v1649
        %v1651 = vrot.slane %v1568, 1
        %v1652 = vrot.slane %v1569, 1
        %v1653 = vsel %vm430, %v1651, %v1652
        %v1654 = vrot.slane %v1570, 1
        %v1655 = vsel %vm430, %v1652, %v1654
        %v1656 = vrot.slane %v1571, 1
        %v1657 = vrot.slane %v1572, 1
        %v1658 = vsel %vm430, %v1656, %v1657
        %v1659 = vrot.slane %v1573, 1
        %v1660 = vsel %vm430, %v1657, %v1659
        %v1661 = vrot.slane %v1574, 1
        %v1662 = vrot.slane %v1575, 1
        %v1663 = vsel %vm430, %v1661, %v1662
        %v1664 = vrot.slane %v1576, 1
        %v1665 = vsel %vm430, %v1662, %v1664
        %v1666 = vrot.slane %v1577, 1
        %v1667 = vrot.slane %v1578, 1
        %v1668 = vsel %vm430, %v1666, %v1667
        %v1669 = vrot.slane %v1579, 1
        %v1670 = vsel %vm430, %v1667, %v1669
        %s1689 = scalar_lea.vmem %s3, 128
        %v1690 = vld [vmem:[%s1689] sm:$0xff]
        %v1691 = vld [vmem:[%s1689 + $0x8] sm:$0xff]
        %v1692 = vld [vmem:[%s1689 + $0x10] sm:$0xff]
        %v1693 = vld [vmem:[%s1689 + $0x18] sm:$0xff]
        %v1694 = vld [vmem:[%s1689 + $0x20] sm:$0xff]
        %v1695 = vld [vmem:[%s1689 + $0x28] sm:$0xff]
        %v1696 = vld [vmem:[%s1689 + $0x30] sm:$0xff]
        %v1697 = vld [vmem:[%s1689 + $0x38] sm:$0xff]
        %v1698 = vld [vmem:[%s1689 + $0x40] sm:$0xff]
        %v1699 = vld [vmem:[%s1689 + $0x48] sm:$0xff]
        %v1700 = vld [vmem:[%s1689 + $0x50] sm:$0xff]
        %v1701 = vld [vmem:[%s1689 + $0x58] sm:$0xff]
        %v1702 = vld [vmem:[%s1689 + $0x60] sm:$0xff]
        %v1703 = vld [vmem:[%s1689 + $0x68] sm:$0xff]
        %v1704 = vld [vmem:[%s1689 + $0x70] sm:$0xff]
        %v1705 = vld [vmem:[%s1689 + $0x78] sm:$0xff]
        %1706 = vmatprep.subr.mxu0 0.0
        %1707 = vmatpush1.msra.mxu0 %v1690
        %1708 = vmatprep.subr.mxu0 0.0
        %1709 = vmatpush1.msra.mxu0 %v1691
        %1710 = vmatprep.subr.mxu0 0.0
        %1711 = vmatpush1.msra.mxu0 %v1692
        %1712 = vmatprep.subr.mxu0 0.0
        %1713 = vmatpush1.msra.mxu0 %v1693
        %1714 = vmatprep.subr.mxu0 0.0
        %1715 = vmatpush1.msra.mxu0 %v1694
        %1716 = vmatprep.subr.mxu0 0.0
        %1717 = vmatpush1.msra.mxu0 %v1695
        %1718 = vmatprep.subr.mxu0 0.0
        %1719 = vmatpush1.msra.mxu0 %v1696
        %1720 = vmatprep.subr.mxu0 0.0
        %1721 = vmatpush1.msra.mxu0 %v1697
        %1722 = vmatprep.subr.mxu0 0.0
        %1723 = vmatpush1.msra.mxu0 %v1698
        %1724 = vmatprep.subr.mxu0 0.0
        %1725 = vmatpush1.msra.mxu0 %v1699
        %1726 = vmatprep.subr.mxu0 0.0
        %1727 = vmatpush1.msra.mxu0 %v1700
        %1728 = vmatprep.subr.mxu0 0.0
        %1729 = vmatpush1.msra.mxu0 %v1701
        %1730 = vmatprep.subr.mxu0 0.0
        %1731 = vmatpush1.msra.mxu0 %v1702
        %1732 = vmatprep.subr.mxu0 0.0
        %1733 = vmatpush1.msra.mxu0 %v1703
        %1734 = vmatprep.subr.mxu0 0.0
        %1735 = vmatpush1.msra.mxu0 %v1704
        %1736 = vmatprep.subr.mxu0 0.0
        %1737 = vmatpush1.msra.mxu0 %v1705
        %1738 = vmatprep.subr.mxu0 0.0
        %1739 = vmatpush1.msra.mxu0 0.0
        %1740 = vmatprep.subr.mxu0 0.0
        %1741 = vmatpush1.msra.mxu0 0.0
        %1742 = vmatprep.subr.mxu0 0.0
        %1743 = vmatpush1.msra.mxu0 0.0
        %1744 = vmatprep.subr.mxu0 0.0
        %1745 = vmatpush1.msra.mxu0 0.0
        %1746 = vmatprep.subr.mxu0 0.0
        %1747 = vmatpush1.msra.mxu0 0.0
        %1748 = vmatprep.subr.mxu0 0.0
        %1749 = vmatpush1.msra.mxu0 0.0
        %1750 = vmatprep.subr.mxu0 0.0
        %1751 = vmatpush1.msra.mxu0 0.0
        %1752 = vmatprep.subr.mxu0 0.0
        %1753 = vmatpush1.msra.mxu0 0.0
        %1754 = vmatprep.subr.mxu0 0.0
        %1755 = vmatpush1.msra.mxu0 0.0
        %1756 = vmatprep.subr.mxu0 0.0
        %1757 = vmatpush1.msra.mxu0 0.0
        %1758 = vmatprep.subr.mxu0 0.0
        %1759 = vmatpush1.msra.mxu0 0.0
        %1760 = vmatprep.subr.mxu0 0.0
        %1761 = vmatpush1.msra.mxu0 0.0
        %1762 = vmatprep.subr.mxu0 0.0
        %1763 = vmatpush1.msra.mxu0 0.0
        %1764 = vmatprep.subr.mxu0 0.0
        %1765 = vmatpush1.msra.mxu0 0.0
        %1766 = vmatprep.subr.mxu0 0.0
        %1767 = vmatpush1.msra.mxu0 0.0
        %1768 = vmatprep.subr.mxu0 0.0
        %1769 = vmatpush1.msra.mxu0 0.0
        %1770 = vmatprep.mubr.f32.mxu0 0.0
        %1771 = vmatmul.mubr.f32.gmra.mrb[0].mxu0 %v1628
        %v1772 = vpop.f32.mrb[0].mxu0
        %v1773 = vadd.f32 0.0, %v1772
        %v1774 = vpop.f32.mrb[0].mxu0
        %1775 = vmatprep.mubr.f32.mxu0 0.0
        %1776 = vmatmul.mubr.f32.gmra.mrb[0].mxu0 %v1630
        %v1777 = vpop.f32.mrb[0].mxu0
        %v1778 = vadd.f32 0.0, %v1777
        %v1779 = vpop.f32.mrb[0].mxu0
        %1780 = vmatprep.mubr.f32.mxu0 0.0
        %1781 = vmatmul.mubr.f32.gmra.mrb[0].mxu0 %v1633
        %v1782 = vpop.f32.mrb[0].mxu0
        %v1783 = vadd.f32 0.0, %v1782
        %v1784 = vpop.f32.mrb[0].mxu0
        %1785 = vmatprep.mubr.f32.mxu0 0.0
        %1786 = vmatmul.mubr.f32.gmra.mrb[0].mxu0 %v1635
        %v1787 = vpop.f32.mrb[0].mxu0
        %v1788 = vadd.f32 0.0, %v1787
        %v1789 = vpop.f32.mrb[0].mxu0
        %1790 = vmatprep.mubr.f32.mxu0 0.0
        %1791 = vmatmul.mubr.f32.gmra.mrb[0].mxu0 %v1638
        %v1792 = vpop.f32.mrb[0].mxu0
        %v1793 = vadd.f32 0.0, %v1792
        %v1794 = vpop.f32.mrb[0].mxu0
        %1795 = vmatprep.mubr.f32.mxu0 0.0
        %1796 = vmatmul.mubr.f32.gmra.mrb[0].mxu0 %v1640
        %v1797 = vpop.f32.mrb[0].mxu0
        %v1798 = vadd.f32 0.0, %v1797
        %v1799 = vpop.f32.mrb[0].mxu0
        %1800 = vmatprep.mubr.f32.mxu0 0.0
        %1801 = vmatmul.mubr.f32.gmra.mrb[0].mxu0 %v1643
        %v1802 = vpop.f32.mrb[0].mxu0
        %v1803 = vadd.f32 0.0, %v1802
        %v1804 = vpop.f32.mrb[0].mxu0
        %1805 = vmatprep.mubr.f32.mxu0 0.0
        %1806 = vmatmul.mubr.f32.gmra.mrb[0].mxu0 %v1645
        %v1807 = vpop.f32.mrb[0].mxu0
        %v1808 = vadd.f32 0.0, %v1807
        %v1809 = vpop.f32.mrb[0].mxu0
        %1810 = vmatprep.mubr.f32.mxu0 0.0
        %1811 = vmatmul.mubr.f32.gmra.mrb[0].mxu0 %v1648
        %v1812 = vpop.f32.mrb[0].mxu0
        %v1813 = vadd.f32 0.0, %v1812
        %v1814 = vpop.f32.mrb[0].mxu0
        %1815 = vmatprep.mubr.f32.mxu0 0.0
        %1816 = vmatmul.mubr.f32.gmra.mrb[0].mxu0 %v1650
        %v1817 = vpop.f32.mrb[0].mxu0
        %v1818 = vadd.f32 0.0, %v1817
        %v1819 = vpop.f32.mrb[0].mxu0
        %1820 = vmatprep.mubr.f32.mxu0 0.0
        %1821 = vmatmul.mubr.f32.gmra.mrb[0].mxu0 %v1653
        %v1822 = vpop.f32.mrb[0].mxu0
        %v1823 = vadd.f32 0.0, %v1822
        %v1824 = vpop.f32.mrb[0].mxu0
        %1825 = vmatprep.mubr.f32.mxu0 0.0
        %1826 = vmatmul.mubr.f32.gmra.mrb[0].mxu0 %v1655
        %v1827 = vpop.f32.mrb[0].mxu0
        %v1828 = vadd.f32 0.0, %v1827
        %v1829 = vpop.f32.mrb[0].mxu0
        %1830 = vmatprep.mubr.f32.mxu0 0.0
        %1831 = vmatmul.mubr.f32.gmra.mrb[0].mxu0 %v1658
        %v1832 = vpop.f32.mrb[0].mxu0
        %v1833 = vadd.f32 0.0, %v1832
        %v1834 = vpop.f32.mrb[0].mxu0
        %1835 = vmatprep.mubr.f32.mxu0 0.0
        %1836 = vmatmul.mubr.f32.gmra.mrb[0].mxu0 %v1660
        %v1837 = vpop.f32.mrb[0].mxu0
        %v1838 = vadd.f32 0.0, %v1837
        %v1839 = vpop.f32.mrb[0].mxu0
        %1840 = vmatprep.mubr.f32.mxu0 0.0
        %1841 = vmatmul.mubr.f32.gmra.mrb[0].mxu0 %v1663
        %v1842 = vpop.f32.mrb[0].mxu0
        %v1843 = vadd.f32 0.0, %v1842
        %v1844 = vpop.f32.mrb[0].mxu0
        %1845 = vmatprep.mubr.f32.mxu0 0.0
        %1846 = vmatmul.mubr.f32.gmra.mrb[0].mxu0 %v1665
        %v1847 = vpop.f32.mrb[0].mxu0
        %v1848 = vadd.f32 0.0, %v1847
        %v1849 = vpop.f32.mrb[0].mxu0
        %1850 = vmatprep.mubr.f32.mxu0 0.0
        %1851 = vmatmul.mubr.f32.gmra.mrb[0].mxu0 %v1668
        %v1852 = vpop.f32.mrb[0].mxu0
        %v1853 = vadd.f32 0.0, %v1852
        %v1854 = vpop.f32.mrb[0].mxu0
        %1855 = vmatprep.mubr.f32.mxu0 0.0
        %1856 = vmatmul.mubr.f32.gmra.mrb[0].mxu0 %v1670
        %v1857 = vpop.f32.mrb[0].mxu0
        %v1858 = vadd.f32 0.0, %v1857
        %v1859 = vpop.f32.mrb[0].mxu0
        %1860 = vdwg.mxu0
        %1861 = vmatprep.subr.mxu0 0.0
        %1862 = vmatpush1.msra.mxu0 %v1583
        %1863 = vmatprep.subr.mxu0 0.0
        %1864 = vmatpush1.msra.mxu0 %v1584
        %1865 = vmatprep.subr.mxu0 0.0
        %1866 = vmatpush1.msra.mxu0 %v1585
        %1867 = vmatprep.subr.mxu0 0.0
        %1868 = vmatpush1.msra.mxu0 %v1586
        %1869 = vmatprep.subr.mxu0 0.0
        %1870 = vmatpush1.msra.mxu0 %v1587
        %1871 = vmatprep.subr.mxu0 0.0
        %1872 = vmatpush1.msra.mxu0 %v1588
        %1873 = vmatprep.subr.mxu0 0.0
        %1874 = vmatpush1.msra.mxu0 %v1589
        %1875 = vmatprep.subr.mxu0 0.0
        %1876 = vmatpush1.msra.mxu0 %v1590
        %1877 = vmatprep.subr.mxu0 0.0
        %1878 = vmatpush1.msra.mxu0 %v1591
        %1879 = vmatprep.subr.mxu0 0.0
        %1880 = vmatpush1.msra.mxu0 %v1592
        %1881 = vmatprep.subr.mxu0 0.0
        %1882 = vmatpush1.msra.mxu0 %v1593
        %1883 = vmatprep.subr.mxu0 0.0
        %1884 = vmatpush1.msra.mxu0 %v1594
        %1885 = vmatprep.subr.mxu0 0.0
        %1886 = vmatpush1.msra.mxu0 %v1595
        %1887 = vmatprep.subr.mxu0 0.0
        %1888 = vmatpush1.msra.mxu0 %v1596
        %1889 = vmatprep.subr.mxu0 0.0
        %1890 = vmatpush1.msra.mxu0 %v1597
        %1891 = vmatprep.subr.mxu0 0.0
        %1892 = vmatpush1.msra.mxu0 %v1598
        %1893 = vmatprep.subr.mxu0 0.0
        %1894 = vmatpush1.msra.mxu0 0.0
        %1895 = vmatprep.subr.mxu0 0.0
        %1896 = vmatpush1.msra.mxu0 0.0
        %1897 = vmatprep.subr.mxu0 0.0
        %1898 = vmatpush1.msra.mxu0 0.0
        %1899 = vmatprep.subr.mxu0 0.0
        %1900 = vmatpush1.msra.mxu0 0.0
        %1901 = vmatprep.subr.mxu0 0.0
        %1902 = vmatpush1.msra.mxu0 0.0
        %1903 = vmatprep.subr.mxu0 0.0
        %1904 = vmatpush1.msra.mxu0 0.0
        %1905 = vmatprep.subr.mxu0 0.0
        %1906 = vmatpush1.msra.mxu0 0.0
        %1907 = vmatprep.subr.mxu0 0.0
        %1908 = vmatpush1.msra.mxu0 0.0
        %1909 = vmatprep.subr.mxu0 0.0
        %1910 = vmatpush1.msra.mxu0 0.0
        %1911 = vmatprep.subr.mxu0 0.0
        %1912 = vmatpush1.msra.mxu0 0.0
        %1913 = vmatprep.subr.mxu0 0.0
        %1914 = vmatpush1.msra.mxu0 0.0
        %1915 = vmatprep.subr.mxu0 0.0
        %1916 = vmatpush1.msra.mxu0 0.0
        %1917 = vmatprep.subr.mxu0 0.0
        %1918 = vmatpush1.msra.mxu0 0.0
        %1919 = vmatprep.subr.mxu0 0.0
        %1920 = vmatpush1.msra.mxu0 0.0
        %1921 = vmatprep.subr.mxu0 0.0
        %1922 = vmatpush1.msra.mxu0 0.0
        %1923 = vmatprep.subr.mxu0 0.0
        %1924 = vmatpush1.msra.mxu0 0.0
        %1925 = vmatprep.mubr.f32.mxu0 0.0
        %1926 = vmatmul.mubr.f32.gmra.mrb[0].mxu0 %v1553
        %v1927 = vpop.f32.mrb[0].mxu0
        %v1928 = vadd.f32 %v1773, %v1927
        %v1929 = vpop.f32.mrb[0].mxu0
        %1930 = vmatprep.mubr.f32.mxu0 0.0
        %1931 = vmatmul.mubr.f32.gmra.mrb[0].mxu0 %v1554
        %v1932 = vpop.f32.mrb[0].mxu0
        %v1933 = vadd.f32 %v1778, %v1932
        %v1934 = vpop.f32.mrb[0].mxu0
        %1935 = vmatprep.mubr.f32.mxu0 0.0
        %1936 = vmatmul.mubr.f32.gmra.mrb[0].mxu0 %v1556
        %v1937 = vpop.f32.mrb[0].mxu0
        %v1938 = vadd.f32 %v1783, %v1937
        %v1939 = vpop.f32.mrb[0].mxu0
        %1940 = vmatprep.mubr.f32.mxu0 0.0
        %1941 = vmatmul.mubr.f32.gmra.mrb[0].mxu0 %v1557
        %v1942 = vpop.f32.mrb[0].mxu0
        %v1943 = vadd.f32 %v1788, %v1942
        %v1944 = vpop.f32.mrb[0].mxu0
        %1945 = vmatprep.mubr.f32.mxu0 0.0
        %1946 = vmatmul.mubr.f32.gmra.mrb[0].mxu0 %v1559
        %v1947 = vpop.f32.mrb[0].mxu0
        %v1948 = vadd.f32 %v1793, %v1947
        %v1949 = vpop.f32.mrb[0].mxu0
        %1950 = vmatprep.mubr.f32.mxu0 0.0
        %1951 = vmatmul.mubr.f32.gmra.mrb[0].mxu0 %v1560
        %v1952 = vpop.f32.mrb[0].mxu0
        %v1953 = vadd.f32 %v1798, %v1952
        %v1954 = vpop.f32.mrb[0].mxu0
        %1955 = vmatprep.mubr.f32.mxu0 0.0
        %1956 = vmatmul.mubr.f32.gmra.mrb[0].mxu0 %v1562
        %v1957 = vpop.f32.mrb[0].mxu0
        %v1958 = vadd.f32 %v1803, %v1957
        %v1959 = vpop.f32.mrb[0].mxu0
        %1960 = vmatprep.mubr.f32.mxu0 0.0
        %1961 = vmatmul.mubr.f32.gmra.mrb[0].mxu0 %v1563
        %v1962 = vpop.f32.mrb[0].mxu0
        %v1963 = vadd.f32 %v1808, %v1962
        %v1964 = vpop.f32.mrb[0].mxu0
        %1965 = vmatprep.mubr.f32.mxu0 0.0
        %1966 = vmatmul.mubr.f32.gmra.mrb[0].mxu0 %v1565
        %v1967 = vpop.f32.mrb[0].mxu0
        %v1968 = vadd.f32 %v1813, %v1967
        %v1969 = vpop.f32.mrb[0].mxu0
        %1970 = vmatprep.mubr.f32.mxu0 0.0
        %1971 = vmatmul.mubr.f32.gmra.mrb[0].mxu0 %v1566
        %v1972 = vpop.f32.mrb[0].mxu0
        %v1973 = vadd.f32 %v1818, %v1972
        %v1974 = vpop.f32.mrb[0].mxu0
        %1975 = vmatprep.mubr.f32.mxu0 0.0
        %1976 = vmatmul.mubr.f32.gmra.mrb[0].mxu0 %v1568
        %v1977 = vpop.f32.mrb[0].mxu0
        %v1978 = vadd.f32 %v1823, %v1977
        %v1979 = vpop.f32.mrb[0].mxu0
        %1980 = vmatprep.mubr.f32.mxu0 0.0
        %1981 = vmatmul.mubr.f32.gmra.mrb[0].mxu0 %v1569
        %v1982 = vpop.f32.mrb[0].mxu0
        %v1983 = vadd.f32 %v1828, %v1982
        %v1984 = vpop.f32.mrb[0].mxu0
        %1985 = vmatprep.mubr.f32.mxu0 0.0
        %1986 = vmatmul.mubr.f32.gmra.mrb[0].mxu0 %v1571
        %v1987 = vpop.f32.mrb[0].mxu0
        %v1988 = vadd.f32 %v1833, %v1987
        %v1989 = vpop.f32.mrb[0].mxu0
        %1990 = vmatprep.mubr.f32.mxu0 0.0
        %1991 = vmatmul.mubr.f32.gmra.mrb[0].mxu0 %v1572
        %v1992 = vpop.f32.mrb[0].mxu0
        %v1993 = vadd.f32 %v1838, %v1992
        %v1994 = vpop.f32.mrb[0].mxu0
        %1995 = vmatprep.mubr.f32.mxu0 0.0
        %1996 = vmatmul.mubr.f32.gmra.mrb[0].mxu0 %v1574
        %v1997 = vpop.f32.mrb[0].mxu0
        %v1998 = vadd.f32 %v1843, %v1997
        %v1999 = vpop.f32.mrb[0].mxu0
        %2000 = vmatprep.mubr.f32.mxu0 0.0
        %2001 = vmatmul.mubr.f32.gmra.mrb[0].mxu0 %v1575
        %v2002 = vpop.f32.mrb[0].mxu0
        %v2003 = vadd.f32 %v1848, %v2002
        %v2004 = vpop.f32.mrb[0].mxu0
        %2005 = vmatprep.mubr.f32.mxu0 0.0
        %2006 = vmatmul.mubr.f32.gmra.mrb[0].mxu0 %v1577
        %v2007 = vpop.f32.mrb[0].mxu0
        %v2008 = vadd.f32 %v1853, %v2007
        %v2009 = vpop.f32.mrb[0].mxu0
        %2010 = vmatprep.mubr.f32.mxu0 0.0
        %2011 = vmatmul.mubr.f32.gmra.mrb[0].mxu0 %v1578
        %v2012 = vpop.f32.mrb[0].mxu0
        %v2013 = vadd.f32 %v1858, %v2012
        %v2014 = vpop.f32.mrb[0].mxu0
        %2015 = vdwg.mxu0
        %s2016 = scalar_lea.vmem %s3, 256
        %v2017 = vld [vmem:[%s2016] sm:$0xff]
        %v2018 = vld [vmem:[%s2016 + $0x8] sm:$0xff]
        %v2019 = vld [vmem:[%s2016 + $0x10] sm:$0xff]
        %v2020 = vld [vmem:[%s2016 + $0x18] sm:$0xff]
        %v2021 = vld [vmem:[%s2016 + $0x20] sm:$0xff]
        %v2022 = vld [vmem:[%s2016 + $0x28] sm:$0xff]
        %v2023 = vld [vmem:[%s2016 + $0x30] sm:$0xff]
        %v2024 = vld [vmem:[%s2016 + $0x38] sm:$0xff]
        %v2025 = vld [vmem:[%s2016 + $0x40] sm:$0xff]
        %v2026 = vld [vmem:[%s2016 + $0x48] sm:$0xff]
        %v2027 = vld [vmem:[%s2016 + $0x50] sm:$0xff]
        %v2028 = vld [vmem:[%s2016 + $0x58] sm:$0xff]
        %v2029 = vld [vmem:[%s2016 + $0x60] sm:$0xff]
        %v2030 = vld [vmem:[%s2016 + $0x68] sm:$0xff]
        %v2031 = vld [vmem:[%s2016 + $0x70] sm:$0xff]
        %v2032 = vld [vmem:[%s2016 + $0x78] sm:$0xff]
        %2033 = vmatprep.subr.mxu0 0.0
        %2034 = vmatpush1.msra.mxu0 %v2017
        %2035 = vmatprep.subr.mxu0 0.0
        %2036 = vmatpush1.msra.mxu0 %v2018
        %2037 = vmatprep.subr.mxu0 0.0
        %2038 = vmatpush1.msra.mxu0 %v2019
        %2039 = vmatprep.subr.mxu0 0.0
        %2040 = vmatpush1.msra.mxu0 %v2020
        %2041 = vmatprep.subr.mxu0 0.0
        %2042 = vmatpush1.msra.mxu0 %v2021
        %2043 = vmatprep.subr.mxu0 0.0
        %2044 = vmatpush1.msra.mxu0 %v2022
        %2045 = vmatprep.subr.mxu0 0.0
        %2046 = vmatpush1.msra.mxu0 %v2023
        %2047 = vmatprep.subr.mxu0 0.0
        %2048 = vmatpush1.msra.mxu0 %v2024
        %2049 = vmatprep.subr.mxu0 0.0
        %2050 = vmatpush1.msra.mxu0 %v2025
        %2051 = vmatprep.subr.mxu0 0.0
        %2052 = vmatpush1.msra.mxu0 %v2026
        %2053 = vmatprep.subr.mxu0 0.0
        %2054 = vmatpush1.msra.mxu0 %v2027
        %2055 = vmatprep.subr.mxu0 0.0
        %2056 = vmatpush1.msra.mxu0 %v2028
        %2057 = vmatprep.subr.mxu0 0.0
        %2058 = vmatpush1.msra.mxu0 %v2029
        %2059 = vmatprep.subr.mxu0 0.0
        %2060 = vmatpush1.msra.mxu0 %v2030
        %2061 = vmatprep.subr.mxu0 0.0
        %2062 = vmatpush1.msra.mxu0 %v2031
        %2063 = vmatprep.subr.mxu0 0.0
        %2064 = vmatpush1.msra.mxu0 %v2032
        %2065 = vmatprep.subr.mxu0 0.0
        %2066 = vmatpush1.msra.mxu0 0.0
        %2067 = vmatprep.subr.mxu0 0.0
        %2068 = vmatpush1.msra.mxu0 0.0
        %2069 = vmatprep.subr.mxu0 0.0
        %2070 = vmatpush1.msra.mxu0 0.0
        %2071 = vmatprep.subr.mxu0 0.0
        %2072 = vmatpush1.msra.mxu0 0.0
        %2073 = vmatprep.subr.mxu0 0.0
        %2074 = vmatpush1.msra.mxu0 0.0
        %2075 = vmatprep.subr.mxu0 0.0
        %2076 = vmatpush1.msra.mxu0 0.0
        %2077 = vmatprep.subr.mxu0 0.0
        %2078 = vmatpush1.msra.mxu0 0.0
        %2079 = vmatprep.subr.mxu0 0.0
        %2080 = vmatpush1.msra.mxu0 0.0
        %2081 = vmatprep.subr.mxu0 0.0
        %2082 = vmatpush1.msra.mxu0 0.0
        %2083 = vmatprep.subr.mxu0 0.0
        %2084 = vmatpush1.msra.mxu0 0.0
        %2085 = vmatprep.subr.mxu0 0.0
        %2086 = vmatpush1.msra.mxu0 0.0
        %2087 = vmatprep.subr.mxu0 0.0
        %2088 = vmatpush1.msra.mxu0 0.0
        %2089 = vmatprep.subr.mxu0 0.0
        %2090 = vmatpush1.msra.mxu0 0.0
        %2091 = vmatprep.subr.mxu0 0.0
        %2092 = vmatpush1.msra.mxu0 0.0
        %2093 = vmatprep.subr.mxu0 0.0
        %2094 = vmatpush1.msra.mxu0 0.0
        %2095 = vmatprep.subr.mxu0 0.0
        %2096 = vmatpush1.msra.mxu0 0.0
        %2097 = vmatprep.mubr.f32.mxu0 0.0
        %2098 = vmatmul.mubr.f32.gmra.mrb[0].mxu0 %v1556
        %v2099 = vpop.f32.mrb[0].mxu0
        %v2100 = vadd.f32 0.0, %v2099
        %v2101 = vpop.f32.mrb[0].mxu0
        %2102 = vmatprep.mubr.f32.mxu0 0.0
        %2103 = vmatmul.mubr.f32.gmra.mrb[0].mxu0 %v1557
        %v2104 = vpop.f32.mrb[0].mxu0
        %v2105 = vadd.f32 0.0, %v2104
        %v2106 = vpop.f32.mrb[0].mxu0
        %2107 = vmatprep.mubr.f32.mxu0 0.0
        %2108 = vmatmul.mubr.f32.gmra.mrb[0].mxu0 %v1559
        %v2109 = vpop.f32.mrb[0].mxu0
        %v2110 = vadd.f32 0.0, %v2109
        %v2111 = vpop.f32.mrb[0].mxu0
        %2112 = vmatprep.mubr.f32.mxu0 0.0
        %2113 = vmatmul.mubr.f32.gmra.mrb[0].mxu0 %v1560
        %v2114 = vpop.f32.mrb[0].mxu0
        %v2115 = vadd.f32 0.0, %v2114
        %v2116 = vpop.f32.mrb[0].mxu0
        %2117 = vmatprep.mubr.f32.mxu0 0.0
        %2118 = vmatmul.mubr.f32.gmra.mrb[0].mxu0 %v1562
        %v2119 = vpop.f32.mrb[0].mxu0
        %v2120 = vadd.f32 0.0, %v2119
        %v2121 = vpop.f32.mrb[0].mxu0
        %2122 = vmatprep.mubr.f32.mxu0 0.0
        %2123 = vmatmul.mubr.f32.gmra.mrb[0].mxu0 %v1563
        %v2124 = vpop.f32.mrb[0].mxu0
        %v2125 = vadd.f32 0.0, %v2124
        %v2126 = vpop.f32.mrb[0].mxu0
        %2127 = vmatprep.mubr.f32.mxu0 0.0
        %2128 = vmatmul.mubr.f32.gmra.mrb[0].mxu0 %v1565
        %v2129 = vpop.f32.mrb[0].mxu0
        %v2130 = vadd.f32 0.0, %v2129
        %v2131 = vpop.f32.mrb[0].mxu0
        %2132 = vmatprep.mubr.f32.mxu0 0.0
        %2133 = vmatmul.mubr.f32.gmra.mrb[0].mxu0 %v1566
        %v2134 = vpop.f32.mrb[0].mxu0
        %v2135 = vadd.f32 0.0, %v2134
        %v2136 = vpop.f32.mrb[0].mxu0
        %2137 = vmatprep.mubr.f32.mxu0 0.0
        %2138 = vmatmul.mubr.f32.gmra.mrb[0].mxu0 %v1568
        %v2139 = vpop.f32.mrb[0].mxu0
        %v2140 = vadd.f32 0.0, %v2139
        %v2141 = vpop.f32.mrb[0].mxu0
        %2142 = vmatprep.mubr.f32.mxu0 0.0
        %2143 = vmatmul.mubr.f32.gmra.mrb[0].mxu0 %v1569
        %v2144 = vpop.f32.mrb[0].mxu0
        %v2145 = vadd.f32 0.0, %v2144
        %v2146 = vpop.f32.mrb[0].mxu0
        %2147 = vmatprep.mubr.f32.mxu0 0.0
        %2148 = vmatmul.mubr.f32.gmra.mrb[0].mxu0 %v1571
        %v2149 = vpop.f32.mrb[0].mxu0
        %v2150 = vadd.f32 0.0, %v2149
        %v2151 = vpop.f32.mrb[0].mxu0
        %2152 = vmatprep.mubr.f32.mxu0 0.0
        %2153 = vmatmul.mubr.f32.gmra.mrb[0].mxu0 %v1572
        %v2154 = vpop.f32.mrb[0].mxu0
        %v2155 = vadd.f32 0.0, %v2154
        %v2156 = vpop.f32.mrb[0].mxu0
        %2157 = vmatprep.mubr.f32.mxu0 0.0
        %2158 = vmatmul.mubr.f32.gmra.mrb[0].mxu0 %v1574
        %v2159 = vpop.f32.mrb[0].mxu0
        %v2160 = vadd.f32 0.0, %v2159
        %v2161 = vpop.f32.mrb[0].mxu0
        %2162 = vmatprep.mubr.f32.mxu0 0.0
        %2163 = vmatmul.mubr.f32.gmra.mrb[0].mxu0 %v1575
        %v2164 = vpop.f32.mrb[0].mxu0
        %v2165 = vadd.f32 0.0, %v2164
        %v2166 = vpop.f32.mrb[0].mxu0
        %2167 = vmatprep.mubr.f32.mxu0 0.0
        %2168 = vmatmul.mubr.f32.gmra.mrb[0].mxu0 %v1577
        %v2169 = vpop.f32.mrb[0].mxu0
        %v2170 = vadd.f32 0.0, %v2169
        %v2171 = vpop.f32.mrb[0].mxu0
        %2172 = vmatprep.mubr.f32.mxu0 0.0
        %2173 = vmatmul.mubr.f32.gmra.mrb[0].mxu0 %v1578
        %v2174 = vpop.f32.mrb[0].mxu0
        %v2175 = vadd.f32 0.0, %v2174
        %v2176 = vpop.f32.mrb[0].mxu0
        %2177 = vmatprep.mubr.f32.mxu0 0.0
        %2178 = vmatmul.mubr.f32.gmra.mrb[0].mxu0 %v1580
        %v2179 = vpop.f32.mrb[0].mxu0
        %v2180 = vadd.f32 0.0, %v2179
        %v2181 = vpop.f32.mrb[0].mxu0
        %2182 = vmatprep.mubr.f32.mxu0 0.0
        %2183 = vmatmul.mubr.f32.gmra.mrb[0].mxu0 %v1581
        %v2184 = vpop.f32.mrb[0].mxu0
        %v2185 = vadd.f32 0.0, %v2184
        %v2186 = vpop.f32.mrb[0].mxu0
        %2187 = vdwg.mxu0
        %v2188 = vadd.f32 %v1928, %v2100
        %v2189 = vadd.f32 %v1933, %v2105
        %v2190 = vadd.f32 %v1938, %v2110
        %v2191 = vadd.f32 %v1943, %v2115
        %v2192 = vadd.f32 %v1948, %v2120
        %v2193 = vadd.f32 %v1953, %v2125
        %v2194 = vadd.f32 %v1958, %v2130
        %v2195 = vadd.f32 %v1963, %v2135
        %v2196 = vadd.f32 %v1968, %v2140
        %v2197 = vadd.f32 %v1973, %v2145
        %v2198 = vadd.f32 %v1978, %v2150
        %v2199 = vadd.f32 %v1983, %v2155
        %v2200 = vadd.f32 %v1988, %v2160
        %v2201 = vadd.f32 %v1993, %v2165
        %v2202 = vadd.f32 %v1998, %v2170
        %v2203 = vadd.f32 %v2003, %v2175
        %v2204 = vadd.f32 %v2008, %v2180
        %v2205 = vadd.f32 %v2013, %v2185
        %v2209 = vrot.slane %v1580, 1
        %v2210 = vrot.slane %v1581, 1
        %v2211 = vsel %vm430, %v2209, %v2210
        %v2212 = vrot.slane %v1582, 1
        %v2213 = vsel %vm430, %v2210, %v2212
        %s2216 = scalar_lea.vmem %s3, 384
        %v2217 = vld [vmem:[%s2216] sm:$0xff]
        %v2218 = vld [vmem:[%s2216 + $0x8] sm:$0xff]
        %v2219 = vld [vmem:[%s2216 + $0x10] sm:$0xff]
        %v2220 = vld [vmem:[%s2216 + $0x18] sm:$0xff]
        %v2221 = vld [vmem:[%s2216 + $0x20] sm:$0xff]
        %v2222 = vld [vmem:[%s2216 + $0x28] sm:$0xff]
        %v2223 = vld [vmem:[%s2216 + $0x30] sm:$0xff]
        %v2224 = vld [vmem:[%s2216 + $0x38] sm:$0xff]
        %v2225 = vld [vmem:[%s2216 + $0x40] sm:$0xff]
        %v2226 = vld [vmem:[%s2216 + $0x48] sm:$0xff]
        %v2227 = vld [vmem:[%s2216 + $0x50] sm:$0xff]
        %v2228 = vld [vmem:[%s2216 + $0x58] sm:$0xff]
        %v2229 = vld [vmem:[%s2216 + $0x60] sm:$0xff]
        %v2230 = vld [vmem:[%s2216 + $0x68] sm:$0xff]
        %v2231 = vld [vmem:[%s2216 + $0x70] sm:$0xff]
        %v2232 = vld [vmem:[%s2216 + $0x78] sm:$0xff]
        %2233 = vmatprep.subr.mxu0 0.0
        %2234 = vmatpush1.msra.mxu0 %v2217
        %2235 = vmatprep.subr.mxu0 0.0
        %2236 = vmatpush1.msra.mxu0 %v2218
        %2237 = vmatprep.subr.mxu0 0.0
        %2238 = vmatpush1.msra.mxu0 %v2219
        %2239 = vmatprep.subr.mxu0 0.0
        %2240 = vmatpush1.msra.mxu0 %v2220
        %2241 = vmatprep.subr.mxu0 0.0
        %2242 = vmatpush1.msra.mxu0 %v2221
        %2243 = vmatprep.subr.mxu0 0.0
        %2244 = vmatpush1.msra.mxu0 %v2222
        %2245 = vmatprep.subr.mxu0 0.0
        %2246 = vmatpush1.msra.mxu0 %v2223
        %2247 = vmatprep.subr.mxu0 0.0
        %2248 = vmatpush1.msra.mxu0 %v2224
        %2249 = vmatprep.subr.mxu0 0.0
        %2250 = vmatpush1.msra.mxu0 %v2225
        %2251 = vmatprep.subr.mxu0 0.0
        %2252 = vmatpush1.msra.mxu0 %v2226
        %2253 = vmatprep.subr.mxu0 0.0
        %2254 = vmatpush1.msra.mxu0 %v2227
        %2255 = vmatprep.subr.mxu0 0.0
        %2256 = vmatpush1.msra.mxu0 %v2228
        %2257 = vmatprep.subr.mxu0 0.0
        %2258 = vmatpush1.msra.mxu0 %v2229
        %2259 = vmatprep.subr.mxu0 0.0
        %2260 = vmatpush1.msra.mxu0 %v2230
        %2261 = vmatprep.subr.mxu0 0.0
        %2262 = vmatpush1.msra.mxu0 %v2231
        %2263 = vmatprep.subr.mxu0 0.0
        %2264 = vmatpush1.msra.mxu0 %v2232
        %2265 = vmatprep.subr.mxu0 0.0
        %2266 = vmatpush1.msra.mxu0 0.0
        %2267 = vmatprep.subr.mxu0 0.0
        %2268 = vmatpush1.msra.mxu0 0.0
        %2269 = vmatprep.subr.mxu0 0.0
        %2270 = vmatpush1.msra.mxu0 0.0
        %2271 = vmatprep.subr.mxu0 0.0
        %2272 = vmatpush1.msra.mxu0 0.0
        %2273 = vmatprep.subr.mxu0 0.0
        %2274 = vmatpush1.msra.mxu0 0.0
        %2275 = vmatprep.subr.mxu0 0.0
        %2276 = vmatpush1.msra.mxu0 0.0
        %2277 = vmatprep.subr.mxu0 0.0
        %2278 = vmatpush1.msra.mxu0 0.0
        %2279 = vmatprep.subr.mxu0 0.0
        %2280 = vmatpush1.msra.mxu0 0.0
        %2281 = vmatprep.subr.mxu0 0.0
        %2282 = vmatpush1.msra.mxu0 0.0
        %2283 = vmatprep.subr.mxu0 0.0
        %2284 = vmatpush1.msra.mxu0 0.0
        %2285 = vmatprep.subr.mxu0 0.0
        %2286 = vmatpush1.msra.mxu0 0.0
        %2287 = vmatprep.subr.mxu0 0.0
        %2288 = vmatpush1.msra.mxu0 0.0
        %2289 = vmatprep.subr.mxu0 0.0
        %2290 = vmatpush1.msra.mxu0 0.0
        %2291 = vmatprep.subr.mxu0 0.0
        %2292 = vmatpush1.msra.mxu0 0.0
        %2293 = vmatprep.subr.mxu0 0.0
        %2294 = vmatpush1.msra.mxu0 0.0
        %2295 = vmatprep.subr.mxu0 0.0
        %2296 = vmatpush1.msra.mxu0 0.0
        %2297 = vmatprep.mubr.f32.mxu0 0.0
        %2298 = vmatmul.mubr.f32.gmra.mrb[0].mxu0 %v1633
        %v2299 = vpop.f32.mrb[0].mxu0
        %v2300 = vadd.f32 0.0, %v2299
        %v2301 = vpop.f32.mrb[0].mxu0
        %2302 = vmatprep.mubr.f32.mxu0 0.0
        %2303 = vmatmul.mubr.f32.gmra.mrb[0].mxu0 %v1635
        %v2304 = vpop.f32.mrb[0].mxu0
        %v2305 = vadd.f32 0.0, %v2304
        %v2306 = vpop.f32.mrb[0].mxu0
        %2307 = vmatprep.mubr.f32.mxu0 0.0
        %2308 = vmatmul.mubr.f32.gmra.mrb[0].mxu0 %v1638
        %v2309 = vpop.f32.mrb[0].mxu0
        %v2310 = vadd.f32 0.0, %v2309
        %v2311 = vpop.f32.mrb[0].mxu0
        %2312 = vmatprep.mubr.f32.mxu0 0.0
        %2313 = vmatmul.mubr.f32.gmra.mrb[0].mxu0 %v1640
        %v2314 = vpop.f32.mrb[0].mxu0
        %v2315 = vadd.f32 0.0, %v2314
        %v2316 = vpop.f32.mrb[0].mxu0
        %2317 = vmatprep.mubr.f32.mxu0 0.0
        %2318 = vmatmul.mubr.f32.gmra.mrb[0].mxu0 %v1643
        %v2319 = vpop.f32.mrb[0].mxu0
        %v2320 = vadd.f32 0.0, %v2319
        %v2321 = vpop.f32.mrb[0].mxu0
        %2322 = vmatprep.mubr.f32.mxu0 0.0
        %2323 = vmatmul.mubr.f32.gmra.mrb[0].mxu0 %v1645
        %v2324 = vpop.f32.mrb[0].mxu0
        %v2325 = vadd.f32 0.0, %v2324
        %v2326 = vpop.f32.mrb[0].mxu0
        %2327 = vmatprep.mubr.f32.mxu0 0.0
        %2328 = vmatmul.mubr.f32.gmra.mrb[0].mxu0 %v1648
        %v2329 = vpop.f32.mrb[0].mxu0
        %v2330 = vadd.f32 0.0, %v2329
        %v2331 = vpop.f32.mrb[0].mxu0
        %2332 = vmatprep.mubr.f32.mxu0 0.0
        %2333 = vmatmul.mubr.f32.gmra.mrb[0].mxu0 %v1650
        %v2334 = vpop.f32.mrb[0].mxu0
        %v2335 = vadd.f32 0.0, %v2334
        %v2336 = vpop.f32.mrb[0].mxu0
        %2337 = vmatprep.mubr.f32.mxu0 0.0
        %2338 = vmatmul.mubr.f32.gmra.mrb[0].mxu0 %v1653
        %v2339 = vpop.f32.mrb[0].mxu0
        %v2340 = vadd.f32 0.0, %v2339
        %v2341 = vpop.f32.mrb[0].mxu0
        %2342 = vmatprep.mubr.f32.mxu0 0.0
        %2343 = vmatmul.mubr.f32.gmra.mrb[0].mxu0 %v1655
        %v2344 = vpop.f32.mrb[0].mxu0
        %v2345 = vadd.f32 0.0, %v2344
        %v2346 = vpop.f32.mrb[0].mxu0
        %2347 = vmatprep.mubr.f32.mxu0 0.0
        %2348 = vmatmul.mubr.f32.gmra.mrb[0].mxu0 %v1658
        %v2349 = vpop.f32.mrb[0].mxu0
        %v2350 = vadd.f32 0.0, %v2349
        %v2351 = vpop.f32.mrb[0].mxu0
        %2352 = vmatprep.mubr.f32.mxu0 0.0
        %2353 = vmatmul.mubr.f32.gmra.mrb[0].mxu0 %v1660
        %v2354 = vpop.f32.mrb[0].mxu0
        %v2355 = vadd.f32 0.0, %v2354
        %v2356 = vpop.f32.mrb[0].mxu0
        %2357 = vmatprep.mubr.f32.mxu0 0.0
        %2358 = vmatmul.mubr.f32.gmra.mrb[0].mxu0 %v1663
        %v2359 = vpop.f32.mrb[0].mxu0
        %v2360 = vadd.f32 0.0, %v2359
        %v2361 = vpop.f32.mrb[0].mxu0
        %2362 = vmatprep.mubr.f32.mxu0 0.0
        %2363 = vmatmul.mubr.f32.gmra.mrb[0].mxu0 %v1665
        %v2364 = vpop.f32.mrb[0].mxu0
        %v2365 = vadd.f32 0.0, %v2364
        %v2366 = vpop.f32.mrb[0].mxu0
        %2367 = vmatprep.mubr.f32.mxu0 0.0
        %2368 = vmatmul.mubr.f32.gmra.mrb[0].mxu0 %v1668
        %v2369 = vpop.f32.mrb[0].mxu0
        %v2370 = vadd.f32 0.0, %v2369
        %v2371 = vpop.f32.mrb[0].mxu0
        %2372 = vmatprep.mubr.f32.mxu0 0.0
        %2373 = vmatmul.mubr.f32.gmra.mrb[0].mxu0 %v1670
        %v2374 = vpop.f32.mrb[0].mxu0
        %v2375 = vadd.f32 0.0, %v2374
        %v2376 = vpop.f32.mrb[0].mxu0
        %2377 = vmatprep.mubr.f32.mxu0 0.0
        %2378 = vmatmul.mubr.f32.gmra.mrb[0].mxu0 %v2211
        %v2379 = vpop.f32.mrb[0].mxu0
        %v2380 = vadd.f32 0.0, %v2379
        %v2381 = vpop.f32.mrb[0].mxu0
        %2382 = vmatprep.mubr.f32.mxu0 0.0
        %2383 = vmatmul.mubr.f32.gmra.mrb[0].mxu0 %v2213
        %v2384 = vpop.f32.mrb[0].mxu0
        %v2385 = vadd.f32 0.0, %v2384
        %v2386 = vpop.f32.mrb[0].mxu0
        %2387 = vdwg.mxu0
        %v2388 = vadd.f32 %v2188, %v2300
        %v2389 = vadd.f32 %v2189, %v2305
        %v2390 = vadd.f32 %v2190, %v2310
        %v2391 = vadd.f32 %v2191, %v2315
        %v2392 = vadd.f32 %v2192, %v2320
        %v2393 = vadd.f32 %v2193, %v2325
        %v2394 = vadd.f32 %v2194, %v2330
        %v2395 = vadd.f32 %v2195, %v2335
        %v2396 = vadd.f32 %v2196, %v2340
        %v2397 = vadd.f32 %v2197, %v2345
        %v2398 = vadd.f32 %v2198, %v2350
        %v2399 = vadd.f32 %v2199, %v2355
        %v2400 = vadd.f32 %v2200, %v2360
        %v2401 = vadd.f32 %v2201, %v2365
        %v2402 = vadd.f32 %v2202, %v2370
        %v2403 = vadd.f32 %v2203, %v2375
        %v2404 = vadd.f32 %v2204, %v2380
        %v2405 = vadd.f32 %v2205, %v2385
        %v2406 = vld [vmem:[%s4] sm:$0x1]
        %v2408 = vlaneseq
        %v2409 = vshrl.u32 %v2408, 7
        %v2410 = vsub.s32 0, %v2409
        %v2411 = vrot.slane %v2406, %v2410
        %v2413 = vadd.f32 %v2388, %v2411
        %v2414 = vadd.f32 %v2389, %v2411
        %v2415 = vadd.f32 %v2390, %v2411
        %v2416 = vadd.f32 %v2391, %v2411
        %v2417 = vadd.f32 %v2392, %v2411
        %v2418 = vadd.f32 %v2393, %v2411
        %v2419 = vadd.f32 %v2394, %v2411
        %v2420 = vadd.f32 %v2395, %v2411
        %v2421 = vadd.f32 %v2396, %v2411
        %v2422 = vadd.f32 %v2397, %v2411
        %v2423 = vadd.f32 %v2398, %v2411
        %v2424 = vadd.f32 %v2399, %v2411
        %v2425 = vadd.f32 %v2400, %v2411
        %v2426 = vadd.f32 %v2401, %v2411
        %v2427 = vadd.f32 %v2402, %v2411
        %v2428 = vadd.f32 %v2403, %v2411
        %v2429 = vadd.f32 %v2404, %v2411
        %v2430 = vadd.f32 %v2405, %v2411
        %v2431 = vmax.f32 %v2413, 0.0
        %v2432 = vmax.f32 %v2414, 0.0
        %v2433 = vmax.f32 %v2415, 0.0
        %v2434 = vmax.f32 %v2416, 0.0
        %v2435 = vmax.f32 %v2417, 0.0
        %v2436 = vmax.f32 %v2418, 0.0
        %v2437 = vmax.f32 %v2419, 0.0
        %v2438 = vmax.f32 %v2420, 0.0
        %v2439 = vmax.f32 %v2421, 0.0
        %v2440 = vmax.f32 %v2422, 0.0
        %v2441 = vmax.f32 %v2423, 0.0
        %v2442 = vmax.f32 %v2424, 0.0
        %v2443 = vmax.f32 %v2425, 0.0
        %v2444 = vmax.f32 %v2426, 0.0
        %v2445 = vmax.f32 %v2427, 0.0
        %v2446 = vmax.f32 %v2428, 0.0
        %v2447 = vmax.f32 %v2429, 0.0
        %v2448 = vmax.f32 %v2430, 0.0
        %2449 = vxpose.xlu0.b32.start [1/16] %v2431, 128
        %2450 = vxpose.xlu0.b32.cont [2/16] %v2432, 128
        %2451 = vxpose.xlu0.b32.cont [3/16] %v2433, 128
        %2452 = vxpose.xlu0.b32.cont [4/16] %v2434, 128
        %2453 = vxpose.xlu0.b32.cont [5/16] %v2435, 128
        %2454 = vxpose.xlu0.b32.cont [6/16] %v2436, 128
        %2455 = vxpose.xlu0.b32.cont [7/16] %v2437, 128
        %2456 = vxpose.xlu0.b32.cont [8/16] %v2438, 128
        %2457 = vxpose.xlu0.b32.cont [9/16] %v2439, 128
        %2458 = vxpose.xlu0.b32.cont [10/16] %v2440, 128
        %2459 = vxpose.xlu0.b32.cont [11/16] %v2441, 128
        %2460 = vxpose.xlu0.b32.cont [12/16] %v2442, 128
        %2461 = vxpose.xlu0.b32.cont [13/16] %v2443, 128
        %2462 = vxpose.xlu0.b32.cont [14/16] %v2444, 128
        %2463 = vxpose.xlu0.b32.cont [15/16] %v2445, 128
        %2464 = vxpose.xlu0.b32.end [16/16] %v2446, 128
        %v2465 = vpop.trf.xlu0
        %v2466 = vpop.trf.xlu0
        %v2467 = vpop.trf.xlu0
        %v2468 = vpop.trf.xlu0
        %v2469 = vpop.trf.xlu0
        %v2470 = vpop.trf.xlu0
        %v2471 = vpop.trf.xlu0
        %v2472 = vpop.trf.xlu0
        %v2473 = vpop.trf.xlu0
        %v2474 = vpop.trf.xlu0
        %v2475 = vpop.trf.xlu0
        %v2476 = vpop.trf.xlu0
        %v2477 = vpop.trf.xlu0
        %v2478 = vpop.trf.xlu0
        %v2479 = vpop.trf.xlu0
        %v2480 = vpop.trf.xlu0
        %2481 = vxpose.xlu0.b32.start [1/16] %v2447, 128
        %2482 = vxpose.xlu0.b32.cont [2/16] %v2448, 128
        %2483 = vxpose.xlu0.b32.cont [3/16] 0.0, 128
        %2484 = vxpose.xlu0.b32.cont [4/16] 0.0, 128
        %2485 = vxpose.xlu0.b32.cont [5/16] 0.0, 128
        %2486 = vxpose.xlu0.b32.cont [6/16] 0.0, 128
        %2487 = vxpose.xlu0.b32.cont [7/16] 0.0, 128
        %2488 = vxpose.xlu0.b32.cont [8/16] 0.0, 128
        %2489 = vxpose.xlu0.b32.cont [9/16] 0.0, 128
        %2490 = vxpose.xlu0.b32.cont [10/16] 0.0, 128
        %2491 = vxpose.xlu0.b32.cont [11/16] 0.0, 128
        %2492 = vxpose.xlu0.b32.cont [12/16] 0.0, 128
        %2493 = vxpose.xlu0.b32.cont [13/16] 0.0, 128
        %2494 = vxpose.xlu0.b32.cont [14/16] 0.0, 128
        %2495 = vxpose.xlu0.b32.cont [15/16] 0.0, 128
        %2496 = vxpose.xlu0.b32.end [16/16] 0.0, 128
        %v2497 = vpop.trf.xlu0
        %v2498 = vpop.trf.xlu0
        %v2499 = vpop.trf.xlu0
        %v2500 = vpop.trf.xlu0
        %v2501 = vpop.trf.xlu0
        %v2502 = vpop.trf.xlu0
        %v2503 = vpop.trf.xlu0
        %v2504 = vpop.trf.xlu0
        %v2505 = vpop.trf.xlu0
        %v2506 = vpop.trf.xlu0
        %v2507 = vpop.trf.xlu0
        %v2508 = vpop.trf.xlu0
        %v2509 = vpop.trf.xlu0
        %v2510 = vpop.trf.xlu0
        %v2511 = vpop.trf.xlu0
        %v2512 = vpop.trf.xlu0
        %v2515 = vrot.slane %v2465, 1
        %v2516 = vrot.slane %v2497, 1
        %v2519 = vrot.slane %v2465, 2
        %v2520 = vrot.slane %v2497, 2
        %v2523 = vrot.slane %v2465, 3
        %v2524 = vrot.slane %v2497, 3
        %v2527 = vrot.slane %v2465, 4
        %v2528 = vrot.slane %v2497, 4
        %v2531 = vrot.slane %v2465, 5
        %v2532 = vrot.slane %v2497, 5
        %v2535 = vrot.slane %v2465, 6
        %v2536 = vrot.slane %v2497, 6
        %v2539 = vrot.slane %v2465, 7
        %v2540 = vrot.slane %v2497, 7
        %v2545 = vrot.slane %v2466, 1
        %v2546 = vrot.slane %v2498, 1
        %v2549 = vrot.slane %v2466, 2
        %v2550 = vrot.slane %v2498, 2
        %v2553 = vrot.slane %v2466, 3
        %v2554 = vrot.slane %v2498, 3
        %v2557 = vrot.slane %v2466, 4
        %v2558 = vrot.slane %v2498, 4
        %v2561 = vrot.slane %v2466, 5
        %v2562 = vrot.slane %v2498, 5
        %v2565 = vrot.slane %v2466, 6
        %v2566 = vrot.slane %v2498, 6
        %v2569 = vrot.slane %v2466, 7
        %v2570 = vrot.slane %v2498, 7
        %v2573 = vld [vmem:[%s5] sm:$0xff]
        %v2574 = vld [vmem:[%s5 + $0x8] sm:$0xff]
        %v2575 = vld [vmem:[%s5 + $0x10] sm:$0xff]
        %v2576 = vld [vmem:[%s5 + $0x18] sm:$0xff]
        %v2577 = vld [vmem:[%s5 + $0x20] sm:$0xff]
        %v2578 = vld [vmem:[%s5 + $0x28] sm:$0xff]
        %v2579 = vld [vmem:[%s5 + $0x30] sm:$0xff]
        %v2580 = vld [vmem:[%s5 + $0x38] sm:$0xff]
        %v2581 = vld [vmem:[%s5 + $0x40] sm:$0xff]
        %v2582 = vld [vmem:[%s5 + $0x48] sm:$0xff]
        %v2583 = vld [vmem:[%s5 + $0x50] sm:$0xff]
        %v2584 = vld [vmem:[%s5 + $0x58] sm:$0xff]
        %v2585 = vld [vmem:[%s5 + $0x60] sm:$0xff]
        %v2586 = vld [vmem:[%s5 + $0x68] sm:$0xff]
        %v2587 = vld [vmem:[%s5 + $0x70] sm:$0xff]
        %v2588 = vld [vmem:[%s5 + $0x78] sm:$0xff]
        %v2589 = vld [vmem:[%s5 + $0x80] sm:$0xff]
        %v2590 = vld [vmem:[%s5 + $0x88] sm:$0xff]
        %v2591 = vld [vmem:[%s5 + $0x90] sm:$0xff]
        %v2592 = vld [vmem:[%s5 + $0x98] sm:$0xff]
        %v2593 = vld [vmem:[%s5 + $0xa0] sm:$0xff]
        %v2594 = vld [vmem:[%s5 + $0xa8] sm:$0xff]
        %v2595 = vld [vmem:[%s5 + $0xb0] sm:$0xff]
        %v2596 = vld [vmem:[%s5 + $0xb8] sm:$0xff]
        %v2597 = vld [vmem:[%s5 + $0xc0] sm:$0xff]
        %v2598 = vld [vmem:[%s5 + $0xc8] sm:$0xff]
        %v2599 = vld [vmem:[%s5 + $0xd0] sm:$0xff]
        %v2600 = vld [vmem:[%s5 + $0xd8] sm:$0xff]
        %v2601 = vld [vmem:[%s5 + $0xe0] sm:$0xff]
        %v2602 = vld [vmem:[%s5 + $0xe8] sm:$0xff]
        %v2603 = vld [vmem:[%s5 + $0xf0] sm:$0xff]
        %v2604 = vld [vmem:[%s5 + $0xf8] sm:$0xff]
        %v2605 = vld [vmem:[%s5 + $0x100] sm:$0xff]
        %v2606 = vld [vmem:[%s5 + $0x108] sm:$0xff]
        %v2607 = vld [vmem:[%s5 + $0x110] sm:$0xff]
        %v2608 = vld [vmem:[%s5 + $0x118] sm:$0xff]
        %v2609 = vld [vmem:[%s5 + $0x120] sm:$0xff]
        %v2610 = vld [vmem:[%s5 + $0x128] sm:$0xff]
        %v2611 = vld [vmem:[%s5 + $0x130] sm:$0xff]
        %v2612 = vld [vmem:[%s5 + $0x138] sm:$0xff]
        %v2613 = vld [vmem:[%s5 + $0x140] sm:$0xff]
        %v2614 = vld [vmem:[%s5 + $0x148] sm:$0xff]
        %v2615 = vld [vmem:[%s5 + $0x150] sm:$0xff]
        %v2616 = vld [vmem:[%s5 + $0x158] sm:$0xff]
        %v2617 = vld [vmem:[%s5 + $0x160] sm:$0xff]
        %v2618 = vld [vmem:[%s5 + $0x168] sm:$0xff]
        %v2619 = vld [vmem:[%s5 + $0x170] sm:$0xff]
        %v2620 = vld [vmem:[%s5 + $0x178] sm:$0xff]
        %v2621 = vld [vmem:[%s5 + $0x180] sm:$0xff]
        %v2622 = vld [vmem:[%s5 + $0x188] sm:$0xff]
        %v2623 = vld [vmem:[%s5 + $0x190] sm:$0xff]
        %v2624 = vld [vmem:[%s5 + $0x198] sm:$0xff]
        %v2625 = vld [vmem:[%s5 + $0x1a0] sm:$0xff]
        %v2626 = vld [vmem:[%s5 + $0x1a8] sm:$0xff]
        %v2627 = vld [vmem:[%s5 + $0x1b0] sm:$0xff]
        %v2628 = vld [vmem:[%s5 + $0x1b8] sm:$0xff]
        %v2629 = vld [vmem:[%s5 + $0x1c0] sm:$0xff]
        %v2630 = vld [vmem:[%s5 + $0x1c8] sm:$0xff]
        %v2631 = vld [vmem:[%s5 + $0x1d0] sm:$0xff]
        %v2632 = vld [vmem:[%s5 + $0x1d8] sm:$0xff]
        %v2633 = vld [vmem:[%s5 + $0x1e0] sm:$0xff]
        %v2634 = vld [vmem:[%s5 + $0x1e8] sm:$0xff]
        %v2635 = vld [vmem:[%s5 + $0x1f0] sm:$0xff]
        %v2636 = vld [vmem:[%s5 + $0x1f8] sm:$0xff]
        %v2637 = vld [vmem:[%s5 + $0x200] sm:$0xff]
        %v2638 = vld [vmem:[%s5 + $0x208] sm:$0xff]
        %v2639 = vld [vmem:[%s5 + $0x210] sm:$0xff]
        %v2640 = vld [vmem:[%s5 + $0x218] sm:$0xff]
        %v2641 = vld [vmem:[%s5 + $0x220] sm:$0xff]
        %v2642 = vld [vmem:[%s5 + $0x228] sm:$0xff]
        %v2643 = vld [vmem:[%s5 + $0x230] sm:$0xff]
        %v2644 = vld [vmem:[%s5 + $0x238] sm:$0xff]
        %v2645 = vld [vmem:[%s5 + $0x240] sm:$0xff]
        %v2646 = vld [vmem:[%s5 + $0x248] sm:$0xff]
        %v2647 = vld [vmem:[%s5 + $0x250] sm:$0xff]
        %v2648 = vld [vmem:[%s5 + $0x258] sm:$0xff]
        %v2649 = vld [vmem:[%s5 + $0x260] sm:$0xff]
        %v2650 = vld [vmem:[%s5 + $0x268] sm:$0xff]
        %v2651 = vld [vmem:[%s5 + $0x270] sm:$0xff]
        %v2652 = vld [vmem:[%s5 + $0x278] sm:$0xff]
        %v2653 = vld [vmem:[%s5 + $0x280] sm:$0xff]
        %v2654 = vld [vmem:[%s5 + $0x288] sm:$0xff]
        %v2655 = vld [vmem:[%s5 + $0x290] sm:$0xff]
        %v2656 = vld [vmem:[%s5 + $0x298] sm:$0xff]
        %v2657 = vld [vmem:[%s5 + $0x2a0] sm:$0xff]
        %v2658 = vld [vmem:[%s5 + $0x2a8] sm:$0xff]
        %v2659 = vld [vmem:[%s5 + $0x2b0] sm:$0xff]
        %v2660 = vld [vmem:[%s5 + $0x2b8] sm:$0xff]
        %v2661 = vld [vmem:[%s5 + $0x2c0] sm:$0xff]
        %v2662 = vld [vmem:[%s5 + $0x2c8] sm:$0xff]
        %v2663 = vld [vmem:[%s5 + $0x2d0] sm:$0xff]
        %v2664 = vld [vmem:[%s5 + $0x2d8] sm:$0xff]
        %v2665 = vld [vmem:[%s5 + $0x2e0] sm:$0xff]
        %v2666 = vld [vmem:[%s5 + $0x2e8] sm:$0xff]
        %v2667 = vld [vmem:[%s5 + $0x2f0] sm:$0xff]
        %v2668 = vld [vmem:[%s5 + $0x2f8] sm:$0xff]
        %v2669 = vld [vmem:[%s5 + $0x300] sm:$0xff]
        %v2670 = vld [vmem:[%s5 + $0x308] sm:$0xff]
        %v2671 = vld [vmem:[%s5 + $0x310] sm:$0xff]
        %v2672 = vld [vmem:[%s5 + $0x318] sm:$0xff]
        %v2673 = vld [vmem:[%s5 + $0x320] sm:$0xff]
        %v2674 = vld [vmem:[%s5 + $0x328] sm:$0xff]
        %v2675 = vld [vmem:[%s5 + $0x330] sm:$0xff]
        %v2676 = vld [vmem:[%s5 + $0x338] sm:$0xff]
        %v2677 = vld [vmem:[%s5 + $0x340] sm:$0xff]
        %v2678 = vld [vmem:[%s5 + $0x348] sm:$0xff]
        %v2679 = vld [vmem:[%s5 + $0x350] sm:$0xff]
        %v2680 = vld [vmem:[%s5 + $0x358] sm:$0xff]
        %v2681 = vld [vmem:[%s5 + $0x360] sm:$0xff]
        %v2682 = vld [vmem:[%s5 + $0x368] sm:$0xff]
        %v2683 = vld [vmem:[%s5 + $0x370] sm:$0xff]
        %v2684 = vld [vmem:[%s5 + $0x378] sm:$0xff]
        %v2685 = vld [vmem:[%s5 + $0x380] sm:$0xff]
        %v2686 = vld [vmem:[%s5 + $0x388] sm:$0xff]
        %v2687 = vld [vmem:[%s5 + $0x390] sm:$0xff]
        %v2688 = vld [vmem:[%s5 + $0x398] sm:$0xff]
        %v2689 = vld [vmem:[%s5 + $0x3a0] sm:$0xff]
        %v2690 = vld [vmem:[%s5 + $0x3a8] sm:$0xff]
        %v2691 = vld [vmem:[%s5 + $0x3b0] sm:$0xff]
        %v2692 = vld [vmem:[%s5 + $0x3b8] sm:$0xff]
        %v2693 = vld [vmem:[%s5 + $0x3c0] sm:$0xff]
        %v2694 = vld [vmem:[%s5 + $0x3c8] sm:$0xff]
        %v2695 = vld [vmem:[%s5 + $0x3d0] sm:$0xff]
        %v2696 = vld [vmem:[%s5 + $0x3d8] sm:$0xff]
        %v2697 = vld [vmem:[%s5 + $0x3e0] sm:$0xff]
        %v2698 = vld [vmem:[%s5 + $0x3e8] sm:$0xff]
        %v2699 = vld [vmem:[%s5 + $0x3f0] sm:$0xff]
        %v2700 = vld [vmem:[%s5 + $0x3f8] sm:$0xff]
        %v2701 = vld [vmem:[%s5 + $0x400] sm:$0xff]
        %v2702 = vld [vmem:[%s5 + $0x408] sm:$0xff]
        %v2703 = vld [vmem:[%s5 + $0x410] sm:$0xff]
        %v2704 = vld [vmem:[%s5 + $0x418] sm:$0xff]
        %v2705 = vld [vmem:[%s5 + $0x420] sm:$0xff]
        %v2706 = vld [vmem:[%s5 + $0x428] sm:$0xff]
        %v2707 = vld [vmem:[%s5 + $0x430] sm:$0xff]
        %v2708 = vld [vmem:[%s5 + $0x438] sm:$0xff]
        %v2709 = vld [vmem:[%s5 + $0x440] sm:$0xff]
        %v2710 = vld [vmem:[%s5 + $0x448] sm:$0xff]
        %v2711 = vld [vmem:[%s5 + $0x450] sm:$0xff]
        %v2712 = vld [vmem:[%s5 + $0x458] sm:$0xff]
        %v2713 = vld [vmem:[%s5 + $0x460] sm:$0xff]
        %v2714 = vld [vmem:[%s5 + $0x468] sm:$0xff]
        %v2715 = vld [vmem:[%s5 + $0x470] sm:$0xff]
        %v2716 = vld [vmem:[%s5 + $0x478] sm:$0xff]
        %v2717 = vld [vmem:[%s5 + $0x480] sm:$0xff]
        %v2718 = vld [vmem:[%s5 + $0x488] sm:$0xff]
        %v2719 = vld [vmem:[%s5 + $0x490] sm:$0xff]
        %v2720 = vld [vmem:[%s5 + $0x498] sm:$0xff]
        %v2721 = vld [vmem:[%s5 + $0x4a0] sm:$0xff]
        %v2722 = vld [vmem:[%s5 + $0x4a8] sm:$0xff]
        %v2723 = vld [vmem:[%s5 + $0x4b0] sm:$0xff]
        %v2724 = vld [vmem:[%s5 + $0x4b8] sm:$0xff]
        %v2725 = vld [vmem:[%s5 + $0x4c0] sm:$0xff]
        %v2726 = vld [vmem:[%s5 + $0x4c8] sm:$0xff]
        %v2727 = vld [vmem:[%s5 + $0x4d0] sm:$0xff]
        %v2728 = vld [vmem:[%s5 + $0x4d8] sm:$0xff]
        %v2729 = vld [vmem:[%s5 + $0x4e0] sm:$0xff]
        %v2730 = vld [vmem:[%s5 + $0x4e8] sm:$0xff]
        %v2731 = vld [vmem:[%s5 + $0x4f0] sm:$0xff]
        %v2732 = vld [vmem:[%s5 + $0x4f8] sm:$0xff]
        %v2733 = vld [vmem:[%s5 + $0x500] sm:$0xff]
        %v2734 = vld [vmem:[%s5 + $0x508] sm:$0xff]
        %v2735 = vld [vmem:[%s5 + $0x510] sm:$0xff]
        %v2736 = vld [vmem:[%s5 + $0x518] sm:$0xff]
        %v2737 = vld [vmem:[%s5 + $0x520] sm:$0xff]
        %v2738 = vld [vmem:[%s5 + $0x528] sm:$0xff]
        %v2739 = vld [vmem:[%s5 + $0x530] sm:$0xff]
        %v2740 = vld [vmem:[%s5 + $0x538] sm:$0xff]
        %v2741 = vld [vmem:[%s5 + $0x540] sm:$0xff]
        %v2742 = vld [vmem:[%s5 + $0x548] sm:$0xff]
        %v2743 = vld [vmem:[%s5 + $0x550] sm:$0xff]
        %v2744 = vld [vmem:[%s5 + $0x558] sm:$0xff]
        %v2745 = vld [vmem:[%s5 + $0x560] sm:$0xff]
        %v2746 = vld [vmem:[%s5 + $0x568] sm:$0xff]
        %v2747 = vld [vmem:[%s5 + $0x570] sm:$0xff]
        %v2748 = vld [vmem:[%s5 + $0x578] sm:$0xff]
        %v2749 = vld [vmem:[%s5 + $0x580] sm:$0xff]
        %v2750 = vld [vmem:[%s5 + $0x588] sm:$0xff]
        %v2751 = vld [vmem:[%s5 + $0x590] sm:$0xff]
        %v2752 = vld [vmem:[%s5 + $0x598] sm:$0xff]
        %v2753 = vld [vmem:[%s5 + $0x5a0] sm:$0xff]
        %v2754 = vld [vmem:[%s5 + $0x5a8] sm:$0xff]
        %v2755 = vld [vmem:[%s5 + $0x5b0] sm:$0xff]
        %v2756 = vld [vmem:[%s5 + $0x5b8] sm:$0xff]
        %v2757 = vld [vmem:[%s5 + $0x5c0] sm:$0xff]
        %v2758 = vld [vmem:[%s5 + $0x5c8] sm:$0xff]
        %v2759 = vld [vmem:[%s5 + $0x5d0] sm:$0xff]
        %v2760 = vld [vmem:[%s5 + $0x5d8] sm:$0xff]
        %v2761 = vld [vmem:[%s5 + $0x5e0] sm:$0xff]
        %v2762 = vld [vmem:[%s5 + $0x5e8] sm:$0xff]
        %v2763 = vld [vmem:[%s5 + $0x5f0] sm:$0xff]
        %v2764 = vld [vmem:[%s5 + $0x5f8] sm:$0xff]
        %v2765 = vld [vmem:[%s5 + $0x600] sm:$0xff]
        %v2766 = vld [vmem:[%s5 + $0x608] sm:$0xff]
        %v2767 = vld [vmem:[%s5 + $0x610] sm:$0xff]
        %v2768 = vld [vmem:[%s5 + $0x618] sm:$0xff]
        %v2769 = vld [vmem:[%s5 + $0x620] sm:$0xff]
        %v2770 = vld [vmem:[%s5 + $0x628] sm:$0xff]
        %v2771 = vld [vmem:[%s5 + $0x630] sm:$0xff]
        %v2772 = vld [vmem:[%s5 + $0x638] sm:$0xff]
        %v2773 = vld [vmem:[%s5 + $0x640] sm:$0xff]
        %v2774 = vld [vmem:[%s5 + $0x648] sm:$0xff]
        %v2775 = vld [vmem:[%s5 + $0x650] sm:$0xff]
        %v2776 = vld [vmem:[%s5 + $0x658] sm:$0xff]
        %v2777 = vld [vmem:[%s5 + $0x660] sm:$0xff]
        %v2778 = vld [vmem:[%s5 + $0x668] sm:$0xff]
        %v2779 = vld [vmem:[%s5 + $0x670] sm:$0xff]
        %v2780 = vld [vmem:[%s5 + $0x678] sm:$0xff]
        %v2781 = vld [vmem:[%s5 + $0x680] sm:$0xff]
        %v2782 = vld [vmem:[%s5 + $0x688] sm:$0xff]
        %v2783 = vld [vmem:[%s5 + $0x690] sm:$0xff]
        %v2784 = vld [vmem:[%s5 + $0x698] sm:$0xff]
        %v2785 = vld [vmem:[%s5 + $0x6a0] sm:$0xff]
        %v2786 = vld [vmem:[%s5 + $0x6a8] sm:$0xff]
        %v2787 = vld [vmem:[%s5 + $0x6b0] sm:$0xff]
        %v2788 = vld [vmem:[%s5 + $0x6b8] sm:$0xff]
        %v2789 = vld [vmem:[%s5 + $0x6c0] sm:$0xff]
        %v2790 = vld [vmem:[%s5 + $0x6c8] sm:$0xff]
        %v2791 = vld [vmem:[%s5 + $0x6d0] sm:$0xff]
        %v2792 = vld [vmem:[%s5 + $0x6d8] sm:$0xff]
        %v2793 = vld [vmem:[%s5 + $0x6e0] sm:$0xff]
        %v2794 = vld [vmem:[%s5 + $0x6e8] sm:$0xff]
        %v2795 = vld [vmem:[%s5 + $0x6f0] sm:$0xff]
        %v2796 = vld [vmem:[%s5 + $0x6f8] sm:$0xff]
        %v2797 = vld [vmem:[%s5 + $0x700] sm:$0xff]
        %v2798 = vld [vmem:[%s5 + $0x708] sm:$0xff]
        %v2799 = vld [vmem:[%s5 + $0x710] sm:$0xff]
        %v2800 = vld [vmem:[%s5 + $0x718] sm:$0xff]
        %v2801 = vld [vmem:[%s5 + $0x720] sm:$0xff]
        %v2802 = vld [vmem:[%s5 + $0x728] sm:$0xff]
        %v2803 = vld [vmem:[%s5 + $0x730] sm:$0xff]
        %v2804 = vld [vmem:[%s5 + $0x738] sm:$0xff]
        %v2805 = vld [vmem:[%s5 + $0x740] sm:$0xff]
        %v2806 = vld [vmem:[%s5 + $0x748] sm:$0xff]
        %v2807 = vld [vmem:[%s5 + $0x750] sm:$0xff]
        %v2808 = vld [vmem:[%s5 + $0x758] sm:$0xff]
        %v2809 = vld [vmem:[%s5 + $0x760] sm:$0xff]
        %v2810 = vld [vmem:[%s5 + $0x768] sm:$0xff]
        %v2811 = vld [vmem:[%s5 + $0x770] sm:$0xff]
        %v2812 = vld [vmem:[%s5 + $0x778] sm:$0xff]
        %v2813 = vld [vmem:[%s5 + $0x780] sm:$0xff]
        %v2814 = vld [vmem:[%s5 + $0x788] sm:$0xff]
        %v2815 = vld [vmem:[%s5 + $0x790] sm:$0xff]
        %v2816 = vld [vmem:[%s5 + $0x798] sm:$0xff]
        %v2817 = vld [vmem:[%s5 + $0x7a0] sm:$0xff]
        %v2818 = vld [vmem:[%s5 + $0x7a8] sm:$0xff]
        %v2819 = vld [vmem:[%s5 + $0x7b0] sm:$0xff]
        %v2820 = vld [vmem:[%s5 + $0x7b8] sm:$0xff]
        %v2821 = vld [vmem:[%s5 + $0x7c0] sm:$0xff]
        %v2822 = vld [vmem:[%s5 + $0x7c8] sm:$0xff]
        %v2823 = vld [vmem:[%s5 + $0x7d0] sm:$0xff]
        %v2824 = vld [vmem:[%s5 + $0x7d8] sm:$0xff]
        %v2825 = vld [vmem:[%s5 + $0x7e0] sm:$0xff]
        %v2826 = vld [vmem:[%s5 + $0x7e8] sm:$0xff]
        %v2827 = vld [vmem:[%s5 + $0x7f0] sm:$0xff]
        %v2828 = vld [vmem:[%s5 + $0x7f8] sm:$0xff]
        %v2829 = vld [vmem:[%s5 + $0x800] sm:$0xff]
        %v2830 = vld [vmem:[%s5 + $0x808] sm:$0xff]
        %v2831 = vld [vmem:[%s5 + $0x810] sm:$0xff]
        %v2832 = vld [vmem:[%s5 + $0x818] sm:$0xff]
        %v2833 = vld [vmem:[%s5 + $0x820] sm:$0xff]
        %v2834 = vld [vmem:[%s5 + $0x828] sm:$0xff]
        %v2835 = vld [vmem:[%s5 + $0x830] sm:$0xff]
        %v2836 = vld [vmem:[%s5 + $0x838] sm:$0xff]
        %v2837 = vld [vmem:[%s5 + $0x840] sm:$0xff]
        %v2838 = vld [vmem:[%s5 + $0x848] sm:$0xff]
        %v2839 = vld [vmem:[%s5 + $0x850] sm:$0xff]
        %v2840 = vld [vmem:[%s5 + $0x858] sm:$0xff]
        %v2841 = vld [vmem:[%s5 + $0x860] sm:$0xff]
        %v2842 = vld [vmem:[%s5 + $0x868] sm:$0xff]
        %v2843 = vld [vmem:[%s5 + $0x870] sm:$0xff]
        %v2844 = vld [vmem:[%s5 + $0x878] sm:$0xff]
        %v2845 = vld [vmem:[%s5 + $0x880] sm:$0xff]
        %v2846 = vld [vmem:[%s5 + $0x888] sm:$0xff]
        %v2847 = vld [vmem:[%s5 + $0x890] sm:$0xff]
        %v2848 = vld [vmem:[%s5 + $0x898] sm:$0xff]
        %v2849 = vld [vmem:[%s5 + $0x8a0] sm:$0xff]
        %v2850 = vld [vmem:[%s5 + $0x8a8] sm:$0xff]
        %v2851 = vld [vmem:[%s5 + $0x8b0] sm:$0xff]
        %v2852 = vld [vmem:[%s5 + $0x8b8] sm:$0xff]
        %v2853 = vld [vmem:[%s5 + $0x8c0] sm:$0xff]
        %v2854 = vld [vmem:[%s5 + $0x8c8] sm:$0xff]
        %v2855 = vld [vmem:[%s5 + $0x8d0] sm:$0xff]
        %v2856 = vld [vmem:[%s5 + $0x8d8] sm:$0xff]
        %v2857 = vld [vmem:[%s5 + $0x8e0] sm:$0xff]
        %v2858 = vld [vmem:[%s5 + $0x8e8] sm:$0xff]
        %v2859 = vld [vmem:[%s5 + $0x8f0] sm:$0xff]
        %v2860 = vld [vmem:[%s5 + $0x8f8] sm:$0xff]
        %v2861 = vld [vmem:[%s5 + $0x900] sm:$0xff]
        %v2862 = vld [vmem:[%s5 + $0x908] sm:$0xff]
        %v2863 = vld [vmem:[%s5 + $0x910] sm:$0xff]
        %v2864 = vld [vmem:[%s5 + $0x918] sm:$0xff]
        %v2865 = vld [vmem:[%s5 + $0x920] sm:$0xff]
        %v2866 = vld [vmem:[%s5 + $0x928] sm:$0xff]
        %v2867 = vld [vmem:[%s5 + $0x930] sm:$0xff]
        %v2868 = vld [vmem:[%s5 + $0x938] sm:$0xff]
        %v2869 = vld [vmem:[%s5 + $0x940] sm:$0xff]
        %v2870 = vld [vmem:[%s5 + $0x948] sm:$0xff]
        %v2871 = vld [vmem:[%s5 + $0x950] sm:$0xff]
        %v2872 = vld [vmem:[%s5 + $0x958] sm:$0xff]
        %v2873 = vld [vmem:[%s5 + $0x960] sm:$0xff]
        %v2874 = vld [vmem:[%s5 + $0x968] sm:$0xff]
        %v2875 = vld [vmem:[%s5 + $0x970] sm:$0xff]
        %v2876 = vld [vmem:[%s5 + $0x978] sm:$0xff]
        %v2877 = vld [vmem:[%s5 + $0x980] sm:$0xff]
        %v2878 = vld [vmem:[%s5 + $0x988] sm:$0xff]
        %v2879 = vld [vmem:[%s5 + $0x990] sm:$0xff]
        %v2880 = vld [vmem:[%s5 + $0x998] sm:$0xff]
        %v2881 = vld [vmem:[%s5 + $0x9a0] sm:$0xff]
        %v2882 = vld [vmem:[%s5 + $0x9a8] sm:$0xff]
        %v2883 = vld [vmem:[%s5 + $0x9b0] sm:$0xff]
        %v2884 = vld [vmem:[%s5 + $0x9b8] sm:$0xff]
        %v2885 = vld [vmem:[%s5 + $0x9c0] sm:$0xff]
        %v2886 = vld [vmem:[%s5 + $0x9c8] sm:$0xff]
        %v2887 = vld [vmem:[%s5 + $0x9d0] sm:$0xff]
        %v2888 = vld [vmem:[%s5 + $0x9d8] sm:$0xff]
        %v2889 = vld [vmem:[%s5 + $0x9e0] sm:$0xff]
        %v2890 = vld [vmem:[%s5 + $0x9e8] sm:$0xff]
        %v2891 = vld [vmem:[%s5 + $0x9f0] sm:$0xff]
        %v2892 = vld [vmem:[%s5 + $0x9f8] sm:$0xff]
        %v2893 = vld [vmem:[%s5 + $0xa00] sm:$0xff]
        %v2894 = vld [vmem:[%s5 + $0xa08] sm:$0xff]
        %v2895 = vld [vmem:[%s5 + $0xa10] sm:$0xff]
        %v2896 = vld [vmem:[%s5 + $0xa18] sm:$0xff]
        %v2897 = vld [vmem:[%s5 + $0xa20] sm:$0xff]
        %v2898 = vld [vmem:[%s5 + $0xa28] sm:$0xff]
        %v2899 = vld [vmem:[%s5 + $0xa30] sm:$0xff]
        %v2900 = vld [vmem:[%s5 + $0xa38] sm:$0xff]
        %v2901 = vld [vmem:[%s5 + $0xa40] sm:$0xff]
        %v2902 = vld [vmem:[%s5 + $0xa48] sm:$0xff]
        %v2903 = vld [vmem:[%s5 + $0xa50] sm:$0xff]
        %v2904 = vld [vmem:[%s5 + $0xa58] sm:$0xff]
        %v2905 = vld [vmem:[%s5 + $0xa60] sm:$0xff]
        %v2906 = vld [vmem:[%s5 + $0xa68] sm:$0xff]
        %v2907 = vld [vmem:[%s5 + $0xa70] sm:$0xff]
        %v2908 = vld [vmem:[%s5 + $0xa78] sm:$0xff]
        %v2909 = vld [vmem:[%s5 + $0xa80] sm:$0xff]
        %v2910 = vld [vmem:[%s5 + $0xa88] sm:$0xff]
        %v2911 = vld [vmem:[%s5 + $0xa90] sm:$0xff]
        %v2912 = vld [vmem:[%s5 + $0xa98] sm:$0xff]
        %v2913 = vld [vmem:[%s5 + $0xaa0] sm:$0xff]
        %v2914 = vld [vmem:[%s5 + $0xaa8] sm:$0xff]
        %v2915 = vld [vmem:[%s5 + $0xab0] sm:$0xff]
        %v2916 = vld [vmem:[%s5 + $0xab8] sm:$0xff]
        %v2917 = vld [vmem:[%s5 + $0xac0] sm:$0xff]
        %v2918 = vld [vmem:[%s5 + $0xac8] sm:$0xff]
        %v2919 = vld [vmem:[%s5 + $0xad0] sm:$0xff]
        %v2920 = vld [vmem:[%s5 + $0xad8] sm:$0xff]
        %v2921 = vld [vmem:[%s5 + $0xae0] sm:$0xff]
        %v2922 = vld [vmem:[%s5 + $0xae8] sm:$0xff]
        %v2923 = vld [vmem:[%s5 + $0xaf0] sm:$0xff]
        %v2924 = vld [vmem:[%s5 + $0xaf8] sm:$0xff]
        %v2925 = vld [vmem:[%s5 + $0xb00] sm:$0xff]
        %v2926 = vld [vmem:[%s5 + $0xb08] sm:$0xff]
        %v2927 = vld [vmem:[%s5 + $0xb10] sm:$0xff]
        %v2928 = vld [vmem:[%s5 + $0xb18] sm:$0xff]
        %v2929 = vld [vmem:[%s5 + $0xb20] sm:$0xff]
        %v2930 = vld [vmem:[%s5 + $0xb28] sm:$0xff]
        %v2931 = vld [vmem:[%s5 + $0xb30] sm:$0xff]
        %v2932 = vld [vmem:[%s5 + $0xb38] sm:$0xff]
        %v2933 = vld [vmem:[%s5 + $0xb40] sm:$0xff]
        %v2934 = vld [vmem:[%s5 + $0xb48] sm:$0xff]
        %v2935 = vld [vmem:[%s5 + $0xb50] sm:$0xff]
        %v2936 = vld [vmem:[%s5 + $0xb58] sm:$0xff]
        %v2937 = vld [vmem:[%s5 + $0xb60] sm:$0xff]
        %v2938 = vld [vmem:[%s5 + $0xb68] sm:$0xff]
        %v2939 = vld [vmem:[%s5 + $0xb70] sm:$0xff]
        %v2940 = vld [vmem:[%s5 + $0xb78] sm:$0xff]
        %v2941 = vld [vmem:[%s5 + $0xb80] sm:$0xff]
        %v2942 = vld [vmem:[%s5 + $0xb88] sm:$0xff]
        %v2943 = vld [vmem:[%s5 + $0xb90] sm:$0xff]
        %v2944 = vld [vmem:[%s5 + $0xb98] sm:$0xff]
        %v2945 = vld [vmem:[%s5 + $0xba0] sm:$0xff]
        %v2946 = vld [vmem:[%s5 + $0xba8] sm:$0xff]
        %v2947 = vld [vmem:[%s5 + $0xbb0] sm:$0xff]
        %v2948 = vld [vmem:[%s5 + $0xbb8] sm:$0xff]
        %v2949 = vld [vmem:[%s5 + $0xbc0] sm:$0xff]
        %v2950 = vld [vmem:[%s5 + $0xbc8] sm:$0xff]
        %v2951 = vld [vmem:[%s5 + $0xbd0] sm:$0xff]
        %v2952 = vld [vmem:[%s5 + $0xbd8] sm:$0xff]
        %v2953 = vld [vmem:[%s5 + $0xbe0] sm:$0xff]
        %v2954 = vld [vmem:[%s5 + $0xbe8] sm:$0xff]
        %v2955 = vld [vmem:[%s5 + $0xbf0] sm:$0xff]
        %v2956 = vld [vmem:[%s5 + $0xbf8] sm:$0xff]
        %v2957 = vld [vmem:[%s5 + $0xc00] sm:$0xff]
        %v2958 = vld [vmem:[%s5 + $0xc08] sm:$0xff]
        %v2959 = vld [vmem:[%s5 + $0xc10] sm:$0xff]
        %v2960 = vld [vmem:[%s5 + $0xc18] sm:$0xff]
        %v2961 = vld [vmem:[%s5 + $0xc20] sm:$0xff]
        %v2962 = vld [vmem:[%s5 + $0xc28] sm:$0xff]
        %v2963 = vld [vmem:[%s5 + $0xc30] sm:$0xff]
        %v2964 = vld [vmem:[%s5 + $0xc38] sm:$0xff]
        %v2965 = vld [vmem:[%s5 + $0xc40] sm:$0xff]
        %v2966 = vld [vmem:[%s5 + $0xc48] sm:$0xff]
        %v2967 = vld [vmem:[%s5 + $0xc50] sm:$0xff]
        %v2968 = vld [vmem:[%s5 + $0xc58] sm:$0xff]
        %v2969 = vld [vmem:[%s5 + $0xc60] sm:$0xff]
        %v2970 = vld [vmem:[%s5 + $0xc68] sm:$0xff]
        %v2971 = vld [vmem:[%s5 + $0xc70] sm:$0xff]
        %v2972 = vld [vmem:[%s5 + $0xc78] sm:$0xff]
        %v2973 = vld [vmem:[%s5 + $0xc80] sm:$0xff]
        %v2974 = vld [vmem:[%s5 + $0xc88] sm:$0xff]
        %v2975 = vld [vmem:[%s5 + $0xc90] sm:$0xff]
        %v2976 = vld [vmem:[%s5 + $0xc98] sm:$0xff]
        %v2977 = vld [vmem:[%s5 + $0xca0] sm:$0xff]
        %v2978 = vld [vmem:[%s5 + $0xca8] sm:$0xff]
        %v2979 = vld [vmem:[%s5 + $0xcb0] sm:$0xff]
        %v2980 = vld [vmem:[%s5 + $0xcb8] sm:$0xff]
        %v2981 = vld [vmem:[%s5 + $0xcc0] sm:$0xff]
        %v2982 = vld [vmem:[%s5 + $0xcc8] sm:$0xff]
        %v2983 = vld [vmem:[%s5 + $0xcd0] sm:$0xff]
        %v2984 = vld [vmem:[%s5 + $0xcd8] sm:$0xff]
        %v2985 = vld [vmem:[%s5 + $0xce0] sm:$0xff]
        %v2986 = vld [vmem:[%s5 + $0xce8] sm:$0xff]
        %v2987 = vld [vmem:[%s5 + $0xcf0] sm:$0xff]
        %v2988 = vld [vmem:[%s5 + $0xcf8] sm:$0xff]
        %v2989 = vld [vmem:[%s5 + $0xd00] sm:$0xff]
        %v2990 = vld [vmem:[%s5 + $0xd08] sm:$0xff]
        %v2991 = vld [vmem:[%s5 + $0xd10] sm:$0xff]
        %v2992 = vld [vmem:[%s5 + $0xd18] sm:$0xff]
        %v2993 = vld [vmem:[%s5 + $0xd20] sm:$0xff]
        %v2994 = vld [vmem:[%s5 + $0xd28] sm:$0xff]
        %v2995 = vld [vmem:[%s5 + $0xd30] sm:$0xff]
        %v2996 = vld [vmem:[%s5 + $0xd38] sm:$0xff]
        %v2997 = vld [vmem:[%s5 + $0xd40] sm:$0xff]
        %v2998 = vld [vmem:[%s5 + $0xd48] sm:$0xff]
        %v2999 = vld [vmem:[%s5 + $0xd50] sm:$0xff]
        %v3000 = vld [vmem:[%s5 + $0xd58] sm:$0xff]
        %v3001 = vld [vmem:[%s5 + $0xd60] sm:$0xff]
        %v3002 = vld [vmem:[%s5 + $0xd68] sm:$0xff]
        %v3003 = vld [vmem:[%s5 + $0xd70] sm:$0xff]
        %v3004 = vld [vmem:[%s5 + $0xd78] sm:$0xff]
        %v3005 = vld [vmem:[%s5 + $0xd80] sm:$0xff]
        %v3006 = vld [vmem:[%s5 + $0xd88] sm:$0xff]
        %v3007 = vld [vmem:[%s5 + $0xd90] sm:$0xff]
        %v3008 = vld [vmem:[%s5 + $0xd98] sm:$0xff]
        %v3009 = vld [vmem:[%s5 + $0xda0] sm:$0xff]
        %v3010 = vld [vmem:[%s5 + $0xda8] sm:$0xff]
        %v3011 = vld [vmem:[%s5 + $0xdb0] sm:$0xff]
        %v3012 = vld [vmem:[%s5 + $0xdb8] sm:$0xff]
        %v3013 = vld [vmem:[%s5 + $0xdc0] sm:$0xff]
        %v3014 = vld [vmem:[%s5 + $0xdc8] sm:$0xff]
        %v3015 = vld [vmem:[%s5 + $0xdd0] sm:$0xff]
        %v3016 = vld [vmem:[%s5 + $0xdd8] sm:$0xff]
        %v3017 = vld [vmem:[%s5 + $0xde0] sm:$0xff]
        %v3018 = vld [vmem:[%s5 + $0xde8] sm:$0xff]
        %v3019 = vld [vmem:[%s5 + $0xdf0] sm:$0xff]
        %v3020 = vld [vmem:[%s5 + $0xdf8] sm:$0xff]
        %v3021 = vld [vmem:[%s5 + $0xe00] sm:$0xff]
        %v3022 = vld [vmem:[%s5 + $0xe08] sm:$0xff]
        %v3023 = vld [vmem:[%s5 + $0xe10] sm:$0xff]
        %v3024 = vld [vmem:[%s5 + $0xe18] sm:$0xff]
        %v3025 = vld [vmem:[%s5 + $0xe20] sm:$0xff]
        %v3026 = vld [vmem:[%s5 + $0xe28] sm:$0xff]
        %v3027 = vld [vmem:[%s5 + $0xe30] sm:$0xff]
        %v3028 = vld [vmem:[%s5 + $0xe38] sm:$0xff]
        %v3029 = vld [vmem:[%s5 + $0xe40] sm:$0xff]
        %v3030 = vld [vmem:[%s5 + $0xe48] sm:$0xff]
        %v3031 = vld [vmem:[%s5 + $0xe50] sm:$0xff]
        %v3032 = vld [vmem:[%s5 + $0xe58] sm:$0xff]
        %v3033 = vld [vmem:[%s5 + $0xe60] sm:$0xff]
        %v3034 = vld [vmem:[%s5 + $0xe68] sm:$0xff]
        %v3035 = vld [vmem:[%s5 + $0xe70] sm:$0xff]
        %v3036 = vld [vmem:[%s5 + $0xe78] sm:$0xff]
        %v3037 = vld [vmem:[%s5 + $0xe80] sm:$0xff]
        %v3038 = vld [vmem:[%s5 + $0xe88] sm:$0xff]
        %v3039 = vld [vmem:[%s5 + $0xe90] sm:$0xff]
        %v3040 = vld [vmem:[%s5 + $0xe98] sm:$0xff]
        %v3041 = vld [vmem:[%s5 + $0xea0] sm:$0xff]
        %v3042 = vld [vmem:[%s5 + $0xea8] sm:$0xff]
        %v3043 = vld [vmem:[%s5 + $0xeb0] sm:$0xff]
        %v3044 = vld [vmem:[%s5 + $0xeb8] sm:$0xff]
        %v3045 = vld [vmem:[%s5 + $0xec0] sm:$0xff]
        %v3046 = vld [vmem:[%s5 + $0xec8] sm:$0xff]
        %v3047 = vld [vmem:[%s5 + $0xed0] sm:$0xff]
        %v3048 = vld [vmem:[%s5 + $0xed8] sm:$0xff]
        %v3049 = vld [vmem:[%s5 + $0xee0] sm:$0xff]
        %v3050 = vld [vmem:[%s5 + $0xee8] sm:$0xff]
        %v3051 = vld [vmem:[%s5 + $0xef0] sm:$0xff]
        %v3052 = vld [vmem:[%s5 + $0xef8] sm:$0xff]
        %v3053 = vld [vmem:[%s5 + $0xf00] sm:$0xff]
        %v3054 = vld [vmem:[%s5 + $0xf08] sm:$0xff]
        %v3055 = vld [vmem:[%s5 + $0xf10] sm:$0xff]
        %v3056 = vld [vmem:[%s5 + $0xf18] sm:$0xff]
        %v3057 = vld [vmem:[%s5 + $0xf20] sm:$0xff]
        %v3058 = vld [vmem:[%s5 + $0xf28] sm:$0xff]
        %v3059 = vld [vmem:[%s5 + $0xf30] sm:$0xff]
        %v3060 = vld [vmem:[%s5 + $0xf38] sm:$0xff]
        %v3061 = vld [vmem:[%s5 + $0xf40] sm:$0xff]
        %v3062 = vld [vmem:[%s5 + $0xf48] sm:$0xff]
        %v3063 = vld [vmem:[%s5 + $0xf50] sm:$0xff]
        %v3064 = vld [vmem:[%s5 + $0xf58] sm:$0xff]
        %v3065 = vld [vmem:[%s5 + $0xf60] sm:$0xff]
        %v3066 = vld [vmem:[%s5 + $0xf68] sm:$0xff]
        %v3067 = vld [vmem:[%s5 + $0xf70] sm:$0xff]
        %v3068 = vld [vmem:[%s5 + $0xf78] sm:$0xff]
        %v3069 = vld [vmem:[%s5 + $0xf80] sm:$0xff]
        %v3070 = vld [vmem:[%s5 + $0xf88] sm:$0xff]
        %v3071 = vld [vmem:[%s5 + $0xf90] sm:$0xff]
        %v3072 = vld [vmem:[%s5 + $0xf98] sm:$0xff]
        %v3073 = vld [vmem:[%s5 + $0xfa0] sm:$0xff]
        %v3074 = vld [vmem:[%s5 + $0xfa8] sm:$0xff]
        %v3075 = vld [vmem:[%s5 + $0xfb0] sm:$0xff]
        %v3076 = vld [vmem:[%s5 + $0xfb8] sm:$0xff]
        %v3077 = vld [vmem:[%s5 + $0xfc0] sm:$0xff]
        %v3078 = vld [vmem:[%s5 + $0xfc8] sm:$0xff]
        %v3079 = vld [vmem:[%s5 + $0xfd0] sm:$0xff]
        %v3080 = vld [vmem:[%s5 + $0xfd8] sm:$0xff]
        %v3081 = vld [vmem:[%s5 + $0xfe0] sm:$0xff]
        %v3082 = vld [vmem:[%s5 + $0xfe8] sm:$0xff]
        %v3083 = vld [vmem:[%s5 + $0xff0] sm:$0xff]
        %v3084 = vld [vmem:[%s5 + $0xff8] sm:$0xff]
        %v3085 = vld [vmem:[%s5 + $0x1000] sm:$0xff]
        %v3086 = vld [vmem:[%s5 + $0x1008] sm:$0xff]
        %v3087 = vld [vmem:[%s5 + $0x1010] sm:$0xff]
        %v3088 = vld [vmem:[%s5 + $0x1018] sm:$0xff]
        %v3089 = vld [vmem:[%s5 + $0x1020] sm:$0xff]
        %v3090 = vld [vmem:[%s5 + $0x1028] sm:$0xff]
        %v3091 = vld [vmem:[%s5 + $0x1030] sm:$0xff]
        %v3092 = vld [vmem:[%s5 + $0x1038] sm:$0xff]
        %v3093 = vld [vmem:[%s5 + $0x1040] sm:$0xff]
        %v3094 = vld [vmem:[%s5 + $0x1048] sm:$0xff]
        %v3095 = vld [vmem:[%s5 + $0x1050] sm:$0xff]
        %v3096 = vld [vmem:[%s5 + $0x1058] sm:$0xff]
        %v3097 = vld [vmem:[%s5 + $0x1060] sm:$0xff]
        %v3098 = vld [vmem:[%s5 + $0x1068] sm:$0xff]
        %v3099 = vld [vmem:[%s5 + $0x1070] sm:$0xff]
        %v3100 = vld [vmem:[%s5 + $0x1078] sm:$0xff]
        %v3101 = vld [vmem:[%s5 + $0x1080] sm:$0xff]
        %v3102 = vld [vmem:[%s5 + $0x1088] sm:$0xff]
        %v3103 = vld [vmem:[%s5 + $0x1090] sm:$0xff]
        %v3104 = vld [vmem:[%s5 + $0x1098] sm:$0xff]
        %v3105 = vld [vmem:[%s5 + $0x10a0] sm:$0xff]
        %v3106 = vld [vmem:[%s5 + $0x10a8] sm:$0xff]
        %v3107 = vld [vmem:[%s5 + $0x10b0] sm:$0xff]
        %v3108 = vld [vmem:[%s5 + $0x10b8] sm:$0xff]
        %v3109 = vld [vmem:[%s5 + $0x10c0] sm:$0xff]
        %v3110 = vld [vmem:[%s5 + $0x10c8] sm:$0xff]
        %v3111 = vld [vmem:[%s5 + $0x10d0] sm:$0xff]
        %v3112 = vld [vmem:[%s5 + $0x10d8] sm:$0xff]
        %v3113 = vld [vmem:[%s5 + $0x10e0] sm:$0xff]
        %v3114 = vld [vmem:[%s5 + $0x10e8] sm:$0xff]
        %v3115 = vld [vmem:[%s5 + $0x10f0] sm:$0xff]
        %v3116 = vld [vmem:[%s5 + $0x10f8] sm:$0xff]
        %v3117 = vld [vmem:[%s5 + $0x1100] sm:$0xff]
        %v3118 = vld [vmem:[%s5 + $0x1108] sm:$0xff]
        %v3119 = vld [vmem:[%s5 + $0x1110] sm:$0xff]
        %v3120 = vld [vmem:[%s5 + $0x1118] sm:$0xff]
        %v3121 = vld [vmem:[%s5 + $0x1120] sm:$0xff]
        %v3122 = vld [vmem:[%s5 + $0x1128] sm:$0xff]
        %v3123 = vld [vmem:[%s5 + $0x1130] sm:$0xff]
        %v3124 = vld [vmem:[%s5 + $0x1138] sm:$0xff]
        %v3125 = vld [vmem:[%s5 + $0x1140] sm:$0xff]
        %v3126 = vld [vmem:[%s5 + $0x1148] sm:$0xff]
        %v3127 = vld [vmem:[%s5 + $0x1150] sm:$0xff]
        %v3128 = vld [vmem:[%s5 + $0x1158] sm:$0xff]
        %v3129 = vld [vmem:[%s5 + $0x1160] sm:$0xff]
        %v3130 = vld [vmem:[%s5 + $0x1168] sm:$0xff]
        %v3131 = vld [vmem:[%s5 + $0x1170] sm:$0xff]
        %v3132 = vld [vmem:[%s5 + $0x1178] sm:$0xff]
        %v3133 = vld [vmem:[%s5 + $0x1180] sm:$0xff]
        %v3134 = vld [vmem:[%s5 + $0x1188] sm:$0xff]
        %v3135 = vld [vmem:[%s5 + $0x1190] sm:$0xff]
        %v3136 = vld [vmem:[%s5 + $0x1198] sm:$0xff]
        %v3137 = vld [vmem:[%s5 + $0x11a0] sm:$0xff]
        %v3138 = vld [vmem:[%s5 + $0x11a8] sm:$0xff]
        %v3139 = vld [vmem:[%s5 + $0x11b0] sm:$0xff]
        %v3140 = vld [vmem:[%s5 + $0x11b8] sm:$0xff]
        %v3141 = vld [vmem:[%s5 + $0x11c0] sm:$0xff]
        %v3142 = vld [vmem:[%s5 + $0x11c8] sm:$0xff]
        %v3143 = vld [vmem:[%s5 + $0x11d0] sm:$0xff]
        %v3144 = vld [vmem:[%s5 + $0x11d8] sm:$0xff]
        %v3145 = vld [vmem:[%s5 + $0x11e0] sm:$0xff]
        %v3146 = vld [vmem:[%s5 + $0x11e8] sm:$0xff]
        %v3147 = vld [vmem:[%s5 + $0x11f0] sm:$0xff]
        %v3148 = vld [vmem:[%s5 + $0x11f8] sm:$0xff]
        %v3149 = vld [vmem:[%s5 + $0x1200] sm:$0xff]
        %v3150 = vld [vmem:[%s5 + $0x1208] sm:$0xff]
        %v3151 = vld [vmem:[%s5 + $0x1210] sm:$0xff]
        %v3152 = vld [vmem:[%s5 + $0x1218] sm:$0xff]
        %v3153 = vld [vmem:[%s5 + $0x1220] sm:$0xff]
        %v3154 = vld [vmem:[%s5 + $0x1228] sm:$0xff]
        %v3155 = vld [vmem:[%s5 + $0x1230] sm:$0xff]
        %v3156 = vld [vmem:[%s5 + $0x1238] sm:$0xff]
        %v3157 = vld [vmem:[%s5 + $0x1240] sm:$0xff]
        %v3158 = vld [vmem:[%s5 + $0x1248] sm:$0xff]
        %v3159 = vld [vmem:[%s5 + $0x1250] sm:$0xff]
        %v3160 = vld [vmem:[%s5 + $0x1258] sm:$0xff]
        %v3161 = vld [vmem:[%s5 + $0x1260] sm:$0xff]
        %v3162 = vld [vmem:[%s5 + $0x1268] sm:$0xff]
        %v3163 = vld [vmem:[%s5 + $0x1270] sm:$0xff]
        %v3164 = vld [vmem:[%s5 + $0x1278] sm:$0xff]
        %v3165 = vld [vmem:[%s5 + $0x1280] sm:$0xff]
        %v3166 = vld [vmem:[%s5 + $0x1288] sm:$0xff]
        %v3167 = vld [vmem:[%s5 + $0x1290] sm:$0xff]
        %v3168 = vld [vmem:[%s5 + $0x1298] sm:$0xff]
        %v3169 = vld [vmem:[%s5 + $0x12a0] sm:$0xff]
        %v3170 = vld [vmem:[%s5 + $0x12a8] sm:$0xff]
        %v3171 = vld [vmem:[%s5 + $0x12b0] sm:$0xff]
        %v3172 = vld [vmem:[%s5 + $0x12b8] sm:$0xff]
        %v3173 = vld [vmem:[%s5 + $0x12c0] sm:$0xff]
        %v3174 = vld [vmem:[%s5 + $0x12c8] sm:$0xff]
        %v3175 = vld [vmem:[%s5 + $0x12d0] sm:$0xff]
        %v3176 = vld [vmem:[%s5 + $0x12d8] sm:$0xff]
        %v3177 = vld [vmem:[%s5 + $0x12e0] sm:$0xff]
        %v3178 = vld [vmem:[%s5 + $0x12e8] sm:$0xff]
        %v3179 = vld [vmem:[%s5 + $0x12f0] sm:$0xff]
        %v3180 = vld [vmem:[%s5 + $0x12f8] sm:$0xff]
        %v3181 = vld [vmem:[%s5 + $0x1300] sm:$0xff]
        %v3182 = vld [vmem:[%s5 + $0x1308] sm:$0xff]
        %v3183 = vld [vmem:[%s5 + $0x1310] sm:$0xff]
        %v3184 = vld [vmem:[%s5 + $0x1318] sm:$0xff]
        %v3185 = vld [vmem:[%s5 + $0x1320] sm:$0xff]
        %v3186 = vld [vmem:[%s5 + $0x1328] sm:$0xff]
        %v3187 = vld [vmem:[%s5 + $0x1330] sm:$0xff]
        %v3188 = vld [vmem:[%s5 + $0x1338] sm:$0xff]
        %v3189 = vld [vmem:[%s5 + $0x1340] sm:$0xff]
        %v3190 = vld [vmem:[%s5 + $0x1348] sm:$0xff]
        %v3191 = vld [vmem:[%s5 + $0x1350] sm:$0xff]
        %v3192 = vld [vmem:[%s5 + $0x1358] sm:$0xff]
        %v3193 = vld [vmem:[%s5 + $0x1360] sm:$0xff]
        %v3194 = vld [vmem:[%s5 + $0x1368] sm:$0xff]
        %v3195 = vld [vmem:[%s5 + $0x1370] sm:$0xff]
        %v3196 = vld [vmem:[%s5 + $0x1378] sm:$0xff]
        %v3197 = vld [vmem:[%s5 + $0x1380] sm:$0xff]
        %v3198 = vld [vmem:[%s5 + $0x1388] sm:$0xff]
        %v3199 = vld [vmem:[%s5 + $0x1390] sm:$0xff]
        %v3200 = vld [vmem:[%s5 + $0x1398] sm:$0xff]
        %v3201 = vld [vmem:[%s5 + $0x13a0] sm:$0xff]
        %v3202 = vld [vmem:[%s5 + $0x13a8] sm:$0xff]
        %v3203 = vld [vmem:[%s5 + $0x13b0] sm:$0xff]
        %v3204 = vld [vmem:[%s5 + $0x13b8] sm:$0xff]
        %v3205 = vld [vmem:[%s5 + $0x13c0] sm:$0xff]
        %v3206 = vld [vmem:[%s5 + $0x13c8] sm:$0xff]
        %v3207 = vld [vmem:[%s5 + $0x13d0] sm:$0xff]
        %v3208 = vld [vmem:[%s5 + $0x13d8] sm:$0xff]
        %v3209 = vld [vmem:[%s5 + $0x13e0] sm:$0xff]
        %v3210 = vld [vmem:[%s5 + $0x13e8] sm:$0xff]
        %v3211 = vld [vmem:[%s5 + $0x13f0] sm:$0xff]
        %v3212 = vld [vmem:[%s5 + $0x13f8] sm:$0xff]
        %v3213 = vld [vmem:[%s5 + $0x1400] sm:$0xff]
        %v3214 = vld [vmem:[%s5 + $0x1408] sm:$0xff]
        %v3215 = vld [vmem:[%s5 + $0x1410] sm:$0xff]
        %v3216 = vld [vmem:[%s5 + $0x1418] sm:$0xff]
        %v3217 = vld [vmem:[%s5 + $0x1420] sm:$0xff]
        %v3218 = vld [vmem:[%s5 + $0x1428] sm:$0xff]
        %v3219 = vld [vmem:[%s5 + $0x1430] sm:$0xff]
        %v3220 = vld [vmem:[%s5 + $0x1438] sm:$0xff]
        %v3221 = vld [vmem:[%s5 + $0x1440] sm:$0xff]
        %v3222 = vld [vmem:[%s5 + $0x1448] sm:$0xff]
        %v3223 = vld [vmem:[%s5 + $0x1450] sm:$0xff]
        %v3224 = vld [vmem:[%s5 + $0x1458] sm:$0xff]
        %v3225 = vld [vmem:[%s5 + $0x1460] sm:$0xff]
        %v3226 = vld [vmem:[%s5 + $0x1468] sm:$0xff]
        %v3227 = vld [vmem:[%s5 + $0x1470] sm:$0xff]
        %v3228 = vld [vmem:[%s5 + $0x1478] sm:$0xff]
        %v3229 = vld [vmem:[%s5 + $0x1480] sm:$0xff]
        %v3230 = vld [vmem:[%s5 + $0x1488] sm:$0xff]
        %v3231 = vld [vmem:[%s5 + $0x1490] sm:$0xff]
        %v3232 = vld [vmem:[%s5 + $0x1498] sm:$0xff]
        %v3233 = vld [vmem:[%s5 + $0x14a0] sm:$0xff]
        %v3234 = vld [vmem:[%s5 + $0x14a8] sm:$0xff]
        %v3235 = vld [vmem:[%s5 + $0x14b0] sm:$0xff]
        %v3236 = vld [vmem:[%s5 + $0x14b8] sm:$0xff]
        %v3237 = vld [vmem:[%s5 + $0x14c0] sm:$0xff]
        %v3238 = vld [vmem:[%s5 + $0x14c8] sm:$0xff]
        %v3239 = vld [vmem:[%s5 + $0x14d0] sm:$0xff]
        %v3240 = vld [vmem:[%s5 + $0x14d8] sm:$0xff]
        %v3241 = vld [vmem:[%s5 + $0x14e0] sm:$0xff]
        %v3242 = vld [vmem:[%s5 + $0x14e8] sm:$0xff]
        %v3243 = vld [vmem:[%s5 + $0x14f0] sm:$0xff]
        %v3244 = vld [vmem:[%s5 + $0x14f8] sm:$0xff]
        %v3245 = vld [vmem:[%s5 + $0x1500] sm:$0xff]
        %v3246 = vld [vmem:[%s5 + $0x1508] sm:$0xff]
        %v3247 = vld [vmem:[%s5 + $0x1510] sm:$0xff]
        %v3248 = vld [vmem:[%s5 + $0x1518] sm:$0xff]
        %v3249 = vld [vmem:[%s5 + $0x1520] sm:$0xff]
        %v3250 = vld [vmem:[%s5 + $0x1528] sm:$0xff]
        %v3251 = vld [vmem:[%s5 + $0x1530] sm:$0xff]
        %v3252 = vld [vmem:[%s5 + $0x1538] sm:$0xff]
        %v3253 = vld [vmem:[%s5 + $0x1540] sm:$0xff]
        %v3254 = vld [vmem:[%s5 + $0x1548] sm:$0xff]
        %v3255 = vld [vmem:[%s5 + $0x1550] sm:$0xff]
        %v3256 = vld [vmem:[%s5 + $0x1558] sm:$0xff]
        %v3257 = vld [vmem:[%s5 + $0x1560] sm:$0xff]
        %v3258 = vld [vmem:[%s5 + $0x1568] sm:$0xff]
        %v3259 = vld [vmem:[%s5 + $0x1570] sm:$0xff]
        %v3260 = vld [vmem:[%s5 + $0x1578] sm:$0xff]
        %v3261 = vld [vmem:[%s5 + $0x1580] sm:$0xff]
        %v3262 = vld [vmem:[%s5 + $0x1588] sm:$0xff]
        %v3263 = vld [vmem:[%s5 + $0x1590] sm:$0xff]
        %v3264 = vld [vmem:[%s5 + $0x1598] sm:$0xff]
        %v3265 = vld [vmem:[%s5 + $0x15a0] sm:$0xff]
        %v3266 = vld [vmem:[%s5 + $0x15a8] sm:$0xff]
        %v3267 = vld [vmem:[%s5 + $0x15b0] sm:$0xff]
        %v3268 = vld [vmem:[%s5 + $0x15b8] sm:$0xff]
        %v3269 = vld [vmem:[%s5 + $0x15c0] sm:$0xff]
        %v3270 = vld [vmem:[%s5 + $0x15c8] sm:$0xff]
        %v3271 = vld [vmem:[%s5 + $0x15d0] sm:$0xff]
        %v3272 = vld [vmem:[%s5 + $0x15d8] sm:$0xff]
        %v3273 = vld [vmem:[%s5 + $0x15e0] sm:$0xff]
        %v3274 = vld [vmem:[%s5 + $0x15e8] sm:$0xff]
        %v3275 = vld [vmem:[%s5 + $0x15f0] sm:$0xff]
        %v3276 = vld [vmem:[%s5 + $0x15f8] sm:$0xff]
        %v3277 = vld [vmem:[%s5 + $0x1600] sm:$0xff]
        %v3278 = vld [vmem:[%s5 + $0x1608] sm:$0xff]
        %v3279 = vld [vmem:[%s5 + $0x1610] sm:$0xff]
        %v3280 = vld [vmem:[%s5 + $0x1618] sm:$0xff]
        %v3281 = vld [vmem:[%s5 + $0x1620] sm:$0xff]
        %v3282 = vld [vmem:[%s5 + $0x1628] sm:$0xff]
        %v3283 = vld [vmem:[%s5 + $0x1630] sm:$0xff]
        %v3284 = vld [vmem:[%s5 + $0x1638] sm:$0xff]
        %v3285 = vld [vmem:[%s5 + $0x1640] sm:$0xff]
        %v3286 = vld [vmem:[%s5 + $0x1648] sm:$0xff]
        %v3287 = vld [vmem:[%s5 + $0x1650] sm:$0xff]
        %v3288 = vld [vmem:[%s5 + $0x1658] sm:$0xff]
        %v3289 = vld [vmem:[%s5 + $0x1660] sm:$0xff]
        %v3290 = vld [vmem:[%s5 + $0x1668] sm:$0xff]
        %v3291 = vld [vmem:[%s5 + $0x1670] sm:$0xff]
        %v3292 = vld [vmem:[%s5 + $0x1678] sm:$0xff]
        %v3293 = vld [vmem:[%s5 + $0x1680] sm:$0xff]
        %v3294 = vld [vmem:[%s5 + $0x1688] sm:$0xff]
        %v3295 = vld [vmem:[%s5 + $0x1690] sm:$0xff]
        %v3296 = vld [vmem:[%s5 + $0x1698] sm:$0xff]
        %v3297 = vld [vmem:[%s5 + $0x16a0] sm:$0xff]
        %v3298 = vld [vmem:[%s5 + $0x16a8] sm:$0xff]
        %v3299 = vld [vmem:[%s5 + $0x16b0] sm:$0xff]
        %v3300 = vld [vmem:[%s5 + $0x16b8] sm:$0xff]
        %v3301 = vld [vmem:[%s5 + $0x16c0] sm:$0xff]
        %v3302 = vld [vmem:[%s5 + $0x16c8] sm:$0xff]
        %v3303 = vld [vmem:[%s5 + $0x16d0] sm:$0xff]
        %v3304 = vld [vmem:[%s5 + $0x16d8] sm:$0xff]
        %v3305 = vld [vmem:[%s5 + $0x16e0] sm:$0xff]
        %v3306 = vld [vmem:[%s5 + $0x16e8] sm:$0xff]
        %v3307 = vld [vmem:[%s5 + $0x16f0] sm:$0xff]
        %v3308 = vld [vmem:[%s5 + $0x16f8] sm:$0xff]
        %v3309 = vld [vmem:[%s5 + $0x1700] sm:$0xff]
        %v3310 = vld [vmem:[%s5 + $0x1708] sm:$0xff]
        %v3311 = vld [vmem:[%s5 + $0x1710] sm:$0xff]
        %v3312 = vld [vmem:[%s5 + $0x1718] sm:$0xff]
        %v3313 = vld [vmem:[%s5 + $0x1720] sm:$0xff]
        %v3314 = vld [vmem:[%s5 + $0x1728] sm:$0xff]
        %v3315 = vld [vmem:[%s5 + $0x1730] sm:$0xff]
        %v3316 = vld [vmem:[%s5 + $0x1738] sm:$0xff]
        %v3317 = vld [vmem:[%s5 + $0x1740] sm:$0xff]
        %v3318 = vld [vmem:[%s5 + $0x1748] sm:$0xff]
        %v3319 = vld [vmem:[%s5 + $0x1750] sm:$0xff]
        %v3320 = vld [vmem:[%s5 + $0x1758] sm:$0xff]
        %v3321 = vld [vmem:[%s5 + $0x1760] sm:$0xff]
        %v3322 = vld [vmem:[%s5 + $0x1768] sm:$0xff]
        %v3323 = vld [vmem:[%s5 + $0x1770] sm:$0xff]
        %v3324 = vld [vmem:[%s5 + $0x1778] sm:$0xff]
        %v3325 = vld [vmem:[%s5 + $0x1780] sm:$0xff]
        %v3326 = vld [vmem:[%s5 + $0x1788] sm:$0xff]
        %v3327 = vld [vmem:[%s5 + $0x1790] sm:$0xff]
        %v3328 = vld [vmem:[%s5 + $0x1798] sm:$0xff]
        %v3329 = vld [vmem:[%s5 + $0x17a0] sm:$0xff]
        %v3330 = vld [vmem:[%s5 + $0x17a8] sm:$0xff]
        %v3331 = vld [vmem:[%s5 + $0x17b0] sm:$0xff]
        %v3332 = vld [vmem:[%s5 + $0x17b8] sm:$0xff]
        %v3333 = vld [vmem:[%s5 + $0x17c0] sm:$0xff]
        %v3334 = vld [vmem:[%s5 + $0x17c8] sm:$0xff]
        %v3335 = vld [vmem:[%s5 + $0x17d0] sm:$0xff]
        %v3336 = vld [vmem:[%s5 + $0x17d8] sm:$0xff]
        %v3337 = vld [vmem:[%s5 + $0x17e0] sm:$0xff]
        %v3338 = vld [vmem:[%s5 + $0x17e8] sm:$0xff]
        %v3339 = vld [vmem:[%s5 + $0x17f0] sm:$0xff]
        %v3340 = vld [vmem:[%s5 + $0x17f8] sm:$0xff]
        %v3341 = vld [vmem:[%s5 + $0x1800] sm:$0xff]
        %v3342 = vld [vmem:[%s5 + $0x1808] sm:$0xff]
        %v3343 = vld [vmem:[%s5 + $0x1810] sm:$0xff]
        %v3344 = vld [vmem:[%s5 + $0x1818] sm:$0xff]
        %v3345 = vld [vmem:[%s5 + $0x1820] sm:$0xff]
        %v3346 = vld [vmem:[%s5 + $0x1828] sm:$0xff]
        %v3347 = vld [vmem:[%s5 + $0x1830] sm:$0xff]
        %v3348 = vld [vmem:[%s5 + $0x1838] sm:$0xff]
        %v3349 = vld [vmem:[%s5 + $0x1840] sm:$0xff]
        %v3350 = vld [vmem:[%s5 + $0x1848] sm:$0xff]
        %v3351 = vld [vmem:[%s5 + $0x1850] sm:$0xff]
        %v3352 = vld [vmem:[%s5 + $0x1858] sm:$0xff]
        %v3353 = vld [vmem:[%s5 + $0x1860] sm:$0xff]
        %v3354 = vld [vmem:[%s5 + $0x1868] sm:$0xff]
        %v3355 = vld [vmem:[%s5 + $0x1870] sm:$0xff]
        %v3356 = vld [vmem:[%s5 + $0x1878] sm:$0xff]
        %v3357 = vld [vmem:[%s5 + $0x1880] sm:$0xff]
        %v3358 = vld [vmem:[%s5 + $0x1888] sm:$0xff]
        %v3359 = vld [vmem:[%s5 + $0x1890] sm:$0xff]
        %v3360 = vld [vmem:[%s5 + $0x1898] sm:$0xff]
        %v3361 = vld [vmem:[%s5 + $0x18a0] sm:$0xff]
        %v3362 = vld [vmem:[%s5 + $0x18a8] sm:$0xff]
        %v3363 = vld [vmem:[%s5 + $0x18b0] sm:$0xff]
        %v3364 = vld [vmem:[%s5 + $0x18b8] sm:$0xff]
        %v3365 = vld [vmem:[%s5 + $0x18c0] sm:$0xff]
        %v3366 = vld [vmem:[%s5 + $0x18c8] sm:$0xff]
        %v3367 = vld [vmem:[%s5 + $0x18d0] sm:$0xff]
        %v3368 = vld [vmem:[%s5 + $0x18d8] sm:$0xff]
        %v3369 = vld [vmem:[%s5 + $0x18e0] sm:$0xff]
        %v3370 = vld [vmem:[%s5 + $0x18e8] sm:$0xff]
        %v3371 = vld [vmem:[%s5 + $0x18f0] sm:$0xff]
        %v3372 = vld [vmem:[%s5 + $0x18f8] sm:$0xff]
        %v3373 = vld [vmem:[%s5 + $0x1900] sm:$0xff]
        %v3374 = vld [vmem:[%s5 + $0x1908] sm:$0xff]
        %v3375 = vld [vmem:[%s5 + $0x1910] sm:$0xff]
        %v3376 = vld [vmem:[%s5 + $0x1918] sm:$0xff]
        %v3377 = vld [vmem:[%s5 + $0x1920] sm:$0xff]
        %v3378 = vld [vmem:[%s5 + $0x1928] sm:$0xff]
        %v3379 = vld [vmem:[%s5 + $0x1930] sm:$0xff]
        %v3380 = vld [vmem:[%s5 + $0x1938] sm:$0xff]
        %v3381 = vld [vmem:[%s5 + $0x1940] sm:$0xff]
        %v3382 = vld [vmem:[%s5 + $0x1948] sm:$0xff]
        %v3383 = vld [vmem:[%s5 + $0x1950] sm:$0xff]
        %v3384 = vld [vmem:[%s5 + $0x1958] sm:$0xff]
        %v3385 = vld [vmem:[%s5 + $0x1960] sm:$0xff]
        %v3386 = vld [vmem:[%s5 + $0x1968] sm:$0xff]
        %v3387 = vld [vmem:[%s5 + $0x1970] sm:$0xff]
        %v3388 = vld [vmem:[%s5 + $0x1978] sm:$0xff]
        %v3389 = vld [vmem:[%s5 + $0x1980] sm:$0xff]
        %v3390 = vld [vmem:[%s5 + $0x1988] sm:$0xff]
        %v3391 = vld [vmem:[%s5 + $0x1990] sm:$0xff]
        %v3392 = vld [vmem:[%s5 + $0x1998] sm:$0xff]
        %v3393 = vld [vmem:[%s5 + $0x19a0] sm:$0xff]
        %v3394 = vld [vmem:[%s5 + $0x19a8] sm:$0xff]
        %v3395 = vld [vmem:[%s5 + $0x19b0] sm:$0xff]
        %v3396 = vld [vmem:[%s5 + $0x19b8] sm:$0xff]
        %v3397 = vld [vmem:[%s5 + $0x19c0] sm:$0xff]
        %v3398 = vld [vmem:[%s5 + $0x19c8] sm:$0xff]
        %v3399 = vld [vmem:[%s5 + $0x19d0] sm:$0xff]
        %v3400 = vld [vmem:[%s5 + $0x19d8] sm:$0xff]
        %v3401 = vld [vmem:[%s5 + $0x19e0] sm:$0xff]
        %v3402 = vld [vmem:[%s5 + $0x19e8] sm:$0xff]
        %v3403 = vld [vmem:[%s5 + $0x19f0] sm:$0xff]
        %v3404 = vld [vmem:[%s5 + $0x19f8] sm:$0xff]
        %v3405 = vld [vmem:[%s5 + $0x1a00] sm:$0xff]
        %v3406 = vld [vmem:[%s5 + $0x1a08] sm:$0xff]
        %v3407 = vld [vmem:[%s5 + $0x1a10] sm:$0xff]
        %v3408 = vld [vmem:[%s5 + $0x1a18] sm:$0xff]
        %v3409 = vld [vmem:[%s5 + $0x1a20] sm:$0xff]
        %v3410 = vld [vmem:[%s5 + $0x1a28] sm:$0xff]
        %v3411 = vld [vmem:[%s5 + $0x1a30] sm:$0xff]
        %v3412 = vld [vmem:[%s5 + $0x1a38] sm:$0xff]
        %v3413 = vld [vmem:[%s5 + $0x1a40] sm:$0xff]
        %v3414 = vld [vmem:[%s5 + $0x1a48] sm:$0xff]
        %v3415 = vld [vmem:[%s5 + $0x1a50] sm:$0xff]
        %v3416 = vld [vmem:[%s5 + $0x1a58] sm:$0xff]
        %v3417 = vld [vmem:[%s5 + $0x1a60] sm:$0xff]
        %v3418 = vld [vmem:[%s5 + $0x1a68] sm:$0xff]
        %v3419 = vld [vmem:[%s5 + $0x1a70] sm:$0xff]
        %v3420 = vld [vmem:[%s5 + $0x1a78] sm:$0xff]
        %v3421 = vld [vmem:[%s5 + $0x1a80] sm:$0xff]
        %v3422 = vld [vmem:[%s5 + $0x1a88] sm:$0xff]
        %v3423 = vld [vmem:[%s5 + $0x1a90] sm:$0xff]
        %v3424 = vld [vmem:[%s5 + $0x1a98] sm:$0xff]
        %v3425 = vld [vmem:[%s5 + $0x1aa0] sm:$0xff]
        %v3426 = vld [vmem:[%s5 + $0x1aa8] sm:$0xff]
        %v3427 = vld [vmem:[%s5 + $0x1ab0] sm:$0xff]
        %v3428 = vld [vmem:[%s5 + $0x1ab8] sm:$0xff]
        %v3429 = vld [vmem:[%s5 + $0x1ac0] sm:$0xff]
        %v3430 = vld [vmem:[%s5 + $0x1ac8] sm:$0xff]
        %v3431 = vld [vmem:[%s5 + $0x1ad0] sm:$0xff]
        %v3432 = vld [vmem:[%s5 + $0x1ad8] sm:$0xff]
        %v3433 = vld [vmem:[%s5 + $0x1ae0] sm:$0xff]
        %v3434 = vld [vmem:[%s5 + $0x1ae8] sm:$0xff]
        %v3435 = vld [vmem:[%s5 + $0x1af0] sm:$0xff]
        %v3436 = vld [vmem:[%s5 + $0x1af8] sm:$0xff]
        %v3437 = vld [vmem:[%s5 + $0x1b00] sm:$0xff]
        %v3438 = vld [vmem:[%s5 + $0x1b08] sm:$0xff]
        %v3439 = vld [vmem:[%s5 + $0x1b10] sm:$0xff]
        %v3440 = vld [vmem:[%s5 + $0x1b18] sm:$0xff]
        %v3441 = vld [vmem:[%s5 + $0x1b20] sm:$0xff]
        %v3442 = vld [vmem:[%s5 + $0x1b28] sm:$0xff]
        %v3443 = vld [vmem:[%s5 + $0x1b30] sm:$0xff]
        %v3444 = vld [vmem:[%s5 + $0x1b38] sm:$0xff]
        %v3445 = vld [vmem:[%s5 + $0x1b40] sm:$0xff]
        %v3446 = vld [vmem:[%s5 + $0x1b48] sm:$0xff]
        %v3447 = vld [vmem:[%s5 + $0x1b50] sm:$0xff]
        %v3448 = vld [vmem:[%s5 + $0x1b58] sm:$0xff]
        %v3449 = vld [vmem:[%s5 + $0x1b60] sm:$0xff]
        %v3450 = vld [vmem:[%s5 + $0x1b68] sm:$0xff]
        %v3451 = vld [vmem:[%s5 + $0x1b70] sm:$0xff]
        %v3452 = vld [vmem:[%s5 + $0x1b78] sm:$0xff]
        %v3453 = vld [vmem:[%s5 + $0x1b80] sm:$0xff]
        %v3454 = vld [vmem:[%s5 + $0x1b88] sm:$0xff]
        %v3455 = vld [vmem:[%s5 + $0x1b90] sm:$0xff]
        %v3456 = vld [vmem:[%s5 + $0x1b98] sm:$0xff]
        %v3457 = vld [vmem:[%s5 + $0x1ba0] sm:$0xff]
        %v3458 = vld [vmem:[%s5 + $0x1ba8] sm:$0xff]
        %v3459 = vld [vmem:[%s5 + $0x1bb0] sm:$0xff]
        %v3460 = vld [vmem:[%s5 + $0x1bb8] sm:$0xff]
        %v3461 = vld [vmem:[%s5 + $0x1bc0] sm:$0xff]
        %v3462 = vld [vmem:[%s5 + $0x1bc8] sm:$0xff]
        %v3463 = vld [vmem:[%s5 + $0x1bd0] sm:$0xff]
        %v3464 = vld [vmem:[%s5 + $0x1bd8] sm:$0xff]
        %v3465 = vld [vmem:[%s5 + $0x1be0] sm:$0xff]
        %v3466 = vld [vmem:[%s5 + $0x1be8] sm:$0xff]
        %v3467 = vld [vmem:[%s5 + $0x1bf0] sm:$0xff]
        %v3468 = vld [vmem:[%s5 + $0x1bf8] sm:$0xff]
        %v3469 = vld [vmem:[%s5 + $0x1c00] sm:$0xff]
        %v3470 = vld [vmem:[%s5 + $0x1c08] sm:$0xff]
        %v3471 = vld [vmem:[%s5 + $0x1c10] sm:$0xff]
        %v3472 = vld [vmem:[%s5 + $0x1c18] sm:$0xff]
        %v3473 = vld [vmem:[%s5 + $0x1c20] sm:$0xff]
        %v3474 = vld [vmem:[%s5 + $0x1c28] sm:$0xff]
        %v3475 = vld [vmem:[%s5 + $0x1c30] sm:$0xff]
        %v3476 = vld [vmem:[%s5 + $0x1c38] sm:$0xff]
        %v3477 = vld [vmem:[%s5 + $0x1c40] sm:$0xff]
        %v3478 = vld [vmem:[%s5 + $0x1c48] sm:$0xff]
        %v3479 = vld [vmem:[%s5 + $0x1c50] sm:$0xff]
        %v3480 = vld [vmem:[%s5 + $0x1c58] sm:$0xff]
        %v3481 = vld [vmem:[%s5 + $0x1c60] sm:$0xff]
        %v3482 = vld [vmem:[%s5 + $0x1c68] sm:$0xff]
        %v3483 = vld [vmem:[%s5 + $0x1c70] sm:$0xff]
        %v3484 = vld [vmem:[%s5 + $0x1c78] sm:$0xff]
        %v3485 = vld [vmem:[%s5 + $0x1c80] sm:$0xff]
        %v3486 = vld [vmem:[%s5 + $0x1c88] sm:$0xff]
        %v3487 = vld [vmem:[%s5 + $0x1c90] sm:$0xff]
        %v3488 = vld [vmem:[%s5 + $0x1c98] sm:$0xff]
        %v3489 = vld [vmem:[%s5 + $0x1ca0] sm:$0xff]
        %v3490 = vld [vmem:[%s5 + $0x1ca8] sm:$0xff]
        %v3491 = vld [vmem:[%s5 + $0x1cb0] sm:$0xff]
        %v3492 = vld [vmem:[%s5 + $0x1cb8] sm:$0xff]
        %v3493 = vld [vmem:[%s5 + $0x1cc0] sm:$0xff]
        %v3494 = vld [vmem:[%s5 + $0x1cc8] sm:$0xff]
        %v3495 = vld [vmem:[%s5 + $0x1cd0] sm:$0xff]
        %v3496 = vld [vmem:[%s5 + $0x1cd8] sm:$0xff]
        %v3497 = vld [vmem:[%s5 + $0x1ce0] sm:$0xff]
        %v3498 = vld [vmem:[%s5 + $0x1ce8] sm:$0xff]
        %v3499 = vld [vmem:[%s5 + $0x1cf0] sm:$0xff]
        %v3500 = vld [vmem:[%s5 + $0x1cf8] sm:$0xff]
        %v3501 = vld [vmem:[%s5 + $0x1d00] sm:$0xff]
        %v3502 = vld [vmem:[%s5 + $0x1d08] sm:$0xff]
        %v3503 = vld [vmem:[%s5 + $0x1d10] sm:$0xff]
        %v3504 = vld [vmem:[%s5 + $0x1d18] sm:$0xff]
        %v3505 = vld [vmem:[%s5 + $0x1d20] sm:$0xff]
        %v3506 = vld [vmem:[%s5 + $0x1d28] sm:$0xff]
        %v3507 = vld [vmem:[%s5 + $0x1d30] sm:$0xff]
        %v3508 = vld [vmem:[%s5 + $0x1d38] sm:$0xff]
        %v3509 = vld [vmem:[%s5 + $0x1d40] sm:$0xff]
        %v3510 = vld [vmem:[%s5 + $0x1d48] sm:$0xff]
        %v3511 = vld [vmem:[%s5 + $0x1d50] sm:$0xff]
        %v3512 = vld [vmem:[%s5 + $0x1d58] sm:$0xff]
        %v3513 = vld [vmem:[%s5 + $0x1d60] sm:$0xff]
        %v3514 = vld [vmem:[%s5 + $0x1d68] sm:$0xff]
        %v3515 = vld [vmem:[%s5 + $0x1d70] sm:$0xff]
        %v3516 = vld [vmem:[%s5 + $0x1d78] sm:$0xff]
        %v3517 = vld [vmem:[%s5 + $0x1d80] sm:$0xff]
        %v3518 = vld [vmem:[%s5 + $0x1d88] sm:$0xff]
        %v3519 = vld [vmem:[%s5 + $0x1d90] sm:$0xff]
        %v3520 = vld [vmem:[%s5 + $0x1d98] sm:$0xff]
        %v3521 = vld [vmem:[%s5 + $0x1da0] sm:$0xff]
        %v3522 = vld [vmem:[%s5 + $0x1da8] sm:$0xff]
        %v3523 = vld [vmem:[%s5 + $0x1db0] sm:$0xff]
        %v3524 = vld [vmem:[%s5 + $0x1db8] sm:$0xff]
        %v3525 = vld [vmem:[%s5 + $0x1dc0] sm:$0xff]
        %v3526 = vld [vmem:[%s5 + $0x1dc8] sm:$0xff]
        %v3527 = vld [vmem:[%s5 + $0x1dd0] sm:$0xff]
        %v3528 = vld [vmem:[%s5 + $0x1dd8] sm:$0xff]
        %v3529 = vld [vmem:[%s5 + $0x1de0] sm:$0xff]
        %v3530 = vld [vmem:[%s5 + $0x1de8] sm:$0xff]
        %v3531 = vld [vmem:[%s5 + $0x1df0] sm:$0xff]
        %v3532 = vld [vmem:[%s5 + $0x1df8] sm:$0xff]
        %v3533 = vld [vmem:[%s5 + $0x1e00] sm:$0xff]
        %v3534 = vld [vmem:[%s5 + $0x1e08] sm:$0xff]
        %v3535 = vld [vmem:[%s5 + $0x1e10] sm:$0xff]
        %v3536 = vld [vmem:[%s5 + $0x1e18] sm:$0xff]
        %v3537 = vld [vmem:[%s5 + $0x1e20] sm:$0xff]
        %v3538 = vld [vmem:[%s5 + $0x1e28] sm:$0xff]
        %v3539 = vld [vmem:[%s5 + $0x1e30] sm:$0xff]
        %v3540 = vld [vmem:[%s5 + $0x1e38] sm:$0xff]
        %v3541 = vld [vmem:[%s5 + $0x1e40] sm:$0xff]
        %v3542 = vld [vmem:[%s5 + $0x1e48] sm:$0xff]
        %v3543 = vld [vmem:[%s5 + $0x1e50] sm:$0xff]
        %v3544 = vld [vmem:[%s5 + $0x1e58] sm:$0xff]
        %v3545 = vld [vmem:[%s5 + $0x1e60] sm:$0xff]
        %v3546 = vld [vmem:[%s5 + $0x1e68] sm:$0xff]
        %v3547 = vld [vmem:[%s5 + $0x1e70] sm:$0xff]
        %v3548 = vld [vmem:[%s5 + $0x1e78] sm:$0xff]
        %v3549 = vld [vmem:[%s5 + $0x1e80] sm:$0xff]
        %v3550 = vld [vmem:[%s5 + $0x1e88] sm:$0xff]
        %v3551 = vld [vmem:[%s5 + $0x1e90] sm:$0xff]
        %v3552 = vld [vmem:[%s5 + $0x1e98] sm:$0xff]
        %v3553 = vld [vmem:[%s5 + $0x1ea0] sm:$0xff]
        %v3554 = vld [vmem:[%s5 + $0x1ea8] sm:$0xff]
        %v3555 = vld [vmem:[%s5 + $0x1eb0] sm:$0xff]
        %v3556 = vld [vmem:[%s5 + $0x1eb8] sm:$0xff]
        %v3557 = vld [vmem:[%s5 + $0x1ec0] sm:$0xff]
        %v3558 = vld [vmem:[%s5 + $0x1ec8] sm:$0xff]
        %v3559 = vld [vmem:[%s5 + $0x1ed0] sm:$0xff]
        %v3560 = vld [vmem:[%s5 + $0x1ed8] sm:$0xff]
        %v3561 = vld [vmem:[%s5 + $0x1ee0] sm:$0xff]
        %v3562 = vld [vmem:[%s5 + $0x1ee8] sm:$0xff]
        %v3563 = vld [vmem:[%s5 + $0x1ef0] sm:$0xff]
        %v3564 = vld [vmem:[%s5 + $0x1ef8] sm:$0xff]
        %v3565 = vld [vmem:[%s5 + $0x1f00] sm:$0xff]
        %v3566 = vld [vmem:[%s5 + $0x1f08] sm:$0xff]
        %v3567 = vld [vmem:[%s5 + $0x1f10] sm:$0xff]
        %v3568 = vld [vmem:[%s5 + $0x1f18] sm:$0xff]
        %v3569 = vld [vmem:[%s5 + $0x1f20] sm:$0xff]
        %v3570 = vld [vmem:[%s5 + $0x1f28] sm:$0xff]
        %v3571 = vld [vmem:[%s5 + $0x1f30] sm:$0xff]
        %v3572 = vld [vmem:[%s5 + $0x1f38] sm:$0xff]
        %v3573 = vld [vmem:[%s5 + $0x1f40] sm:$0xff]
        %v3574 = vld [vmem:[%s5 + $0x1f48] sm:$0xff]
        %v3575 = vld [vmem:[%s5 + $0x1f50] sm:$0xff]
        %v3576 = vld [vmem:[%s5 + $0x1f58] sm:$0xff]
        %v3577 = vld [vmem:[%s5 + $0x1f60] sm:$0xff]
        %v3578 = vld [vmem:[%s5 + $0x1f68] sm:$0xff]
        %v3579 = vld [vmem:[%s5 + $0x1f70] sm:$0xff]
        %v3580 = vld [vmem:[%s5 + $0x1f78] sm:$0xff]
        %v3581 = vld [vmem:[%s5 + $0x1f80] sm:$0xff]
        %v3582 = vld [vmem:[%s5 + $0x1f88] sm:$0xff]
        %v3583 = vld [vmem:[%s5 + $0x1f90] sm:$0xff]
        %v3584 = vld [vmem:[%s5 + $0x1f98] sm:$0xff]
        %v3585 = vld [vmem:[%s5 + $0x1fa0] sm:$0xff]
        %v3586 = vld [vmem:[%s5 + $0x1fa8] sm:$0xff]
        %v3587 = vld [vmem:[%s5 + $0x1fb0] sm:$0xff]
        %v3588 = vld [vmem:[%s5 + $0x1fb8] sm:$0xff]
        %v3589 = vld [vmem:[%s5 + $0x1fc0] sm:$0xff]
        %v3590 = vld [vmem:[%s5 + $0x1fc8] sm:$0xff]
        %v3591 = vld [vmem:[%s5 + $0x1fd0] sm:$0xff]
        %v3592 = vld [vmem:[%s5 + $0x1fd8] sm:$0xff]
        %v3593 = vld [vmem:[%s5 + $0x1fe0] sm:$0xff]
        %v3594 = vld [vmem:[%s5 + $0x1fe8] sm:$0xff]
        %v3595 = vld [vmem:[%s5 + $0x1ff0] sm:$0xff]
        %v3596 = vld [vmem:[%s5 + $0x1ff8] sm:$0xff]
        %v3597 = vld [vmem:[%s6] sm:$0x3]
        %v3599 = vlaneseq
        %v3600 = vshrl.u32 %v3599, 7
        %v3601 = vsub.s32 0, %v3600
        %v3602 = vrot.slane %v3597, %v3601
        %v3603 = vlaneseq
        %v3604 = vshrl.u32 %v3603, 7
        %v3605 = vsub.s32 1, %v3604
        %v3606 = vrot.slane %v3597, %v3605
        %3609 = vmatprep.subr.mxu0 %v2574
        %3610 = vmatpush1.msra.mxu0 %v2573
        %3611 = vmatprep.subr.mxu0 %v2576
        %3612 = vmatpush1.msra.mxu0 %v2575
        %3613 = vmatprep.subr.mxu0 %v2578
        %3614 = vmatpush1.msra.mxu0 %v2577
        %3615 = vmatprep.subr.mxu0 %v2580
        %3616 = vmatpush1.msra.mxu0 %v2579
        %3617 = vmatprep.subr.mxu0 %v2582
        %3618 = vmatpush1.msra.mxu0 %v2581
        %3619 = vmatprep.subr.mxu0 %v2584
        %3620 = vmatpush1.msra.mxu0 %v2583
        %3621 = vmatprep.subr.mxu0 %v2586
        %3622 = vmatpush1.msra.mxu0 %v2585
        %3623 = vmatprep.subr.mxu0 %v2588
        %3624 = vmatpush1.msra.mxu0 %v2587
        %3625 = vmatprep.subr.mxu0 %v2590
        %3626 = vmatpush1.msra.mxu0 %v2589
        %3627 = vmatprep.subr.mxu0 %v2592
        %3628 = vmatpush1.msra.mxu0 %v2591
        %3629 = vmatprep.subr.mxu0 %v2594
        %3630 = vmatpush1.msra.mxu0 %v2593
        %3631 = vmatprep.subr.mxu0 %v2596
        %3632 = vmatpush1.msra.mxu0 %v2595
        %3633 = vmatprep.subr.mxu0 %v2598
        %3634 = vmatpush1.msra.mxu0 %v2597
        %3635 = vmatprep.subr.mxu0 %v2600
        %3636 = vmatpush1.msra.mxu0 %v2599
        %3637 = vmatprep.subr.mxu0 %v2602
        %3638 = vmatpush1.msra.mxu0 %v2601
        %3639 = vmatprep.subr.mxu0 %v2604
        %3640 = vmatpush1.msra.mxu0 %v2603
        %3641 = vmatprep.subr.mxu0 %v2606
        %3642 = vmatpush1.msra.mxu0 %v2605
        %3643 = vmatprep.subr.mxu0 %v2608
        %3644 = vmatpush1.msra.mxu0 %v2607
        %3645 = vmatprep.subr.mxu0 %v2610
        %3646 = vmatpush1.msra.mxu0 %v2609
        %3647 = vmatprep.subr.mxu0 %v2612
        %3648 = vmatpush1.msra.mxu0 %v2611
        %3649 = vmatprep.subr.mxu0 %v2614
        %3650 = vmatpush1.msra.mxu0 %v2613
        %3651 = vmatprep.subr.mxu0 %v2616
        %3652 = vmatpush1.msra.mxu0 %v2615
        %3653 = vmatprep.subr.mxu0 %v2618
        %3654 = vmatpush1.msra.mxu0 %v2617
        %3655 = vmatprep.subr.mxu0 %v2620
        %3656 = vmatpush1.msra.mxu0 %v2619
        %3657 = vmatprep.subr.mxu0 %v2622
        %3658 = vmatpush1.msra.mxu0 %v2621
        %3659 = vmatprep.subr.mxu0 %v2624
        %3660 = vmatpush1.msra.mxu0 %v2623
        %3661 = vmatprep.subr.mxu0 %v2626
        %3662 = vmatpush1.msra.mxu0 %v2625
        %3663 = vmatprep.subr.mxu0 %v2628
        %3664 = vmatpush1.msra.mxu0 %v2627
        %3665 = vmatprep.subr.mxu0 %v2630
        %3666 = vmatpush1.msra.mxu0 %v2629
        %3667 = vmatprep.subr.mxu0 %v2632
        %3668 = vmatpush1.msra.mxu0 %v2631
        %3669 = vmatprep.subr.mxu0 %v2634
        %3670 = vmatpush1.msra.mxu0 %v2633
        %3671 = vmatprep.subr.mxu0 %v2636
        %3672 = vmatpush1.msra.mxu0 %v2635
        %3673 = vmatprep.mubr.f32.mxu0 %v2497
        %3674 = vmatmul.mubr.f32.gmra.mrb[0].mxu0 %v2465
        %v3675 = vpop.f32.mrb[0].mxu0
        %v3676 = vadd.f32 %v3602, %v3675
        %v3677 = vpop.f32.mrb[0].mxu0
        %v3678 = vadd.f32 %v3606, %v3677
        %3679 = vdwg.mxu0
        %3680 = vmatprep.subr.mxu0 %v2638
        %3681 = vmatpush1.msra.mxu0 %v2637
        %3682 = vmatprep.subr.mxu0 %v2640
        %3683 = vmatpush1.msra.mxu0 %v2639
        %3684 = vmatprep.subr.mxu0 %v2642
        %3685 = vmatpush1.msra.mxu0 %v2641
        %3686 = vmatprep.subr.mxu0 %v2644
        %3687 = vmatpush1.msra.mxu0 %v2643
        %3688 = vmatprep.subr.mxu0 %v2646
        %3689 = vmatpush1.msra.mxu0 %v2645
        %3690 = vmatprep.subr.mxu0 %v2648
        %3691 = vmatpush1.msra.mxu0 %v2647
        %3692 = vmatprep.subr.mxu0 %v2650
        %3693 = vmatpush1.msra.mxu0 %v2649
        %3694 = vmatprep.subr.mxu0 %v2652
        %3695 = vmatpush1.msra.mxu0 %v2651
        %3696 = vmatprep.subr.mxu0 %v2654
        %3697 = vmatpush1.msra.mxu0 %v2653
        %3698 = vmatprep.subr.mxu0 %v2656
        %3699 = vmatpush1.msra.mxu0 %v2655
        %3700 = vmatprep.subr.mxu0 %v2658
        %3701 = vmatpush1.msra.mxu0 %v2657
        %3702 = vmatprep.subr.mxu0 %v2660
        %3703 = vmatpush1.msra.mxu0 %v2659
        %3704 = vmatprep.subr.mxu0 %v2662
        %3705 = vmatpush1.msra.mxu0 %v2661
        %3706 = vmatprep.subr.mxu0 %v2664
        %3707 = vmatpush1.msra.mxu0 %v2663
        %3708 = vmatprep.subr.mxu0 %v2666
        %3709 = vmatpush1.msra.mxu0 %v2665
        %3710 = vmatprep.subr.mxu0 %v2668
        %3711 = vmatpush1.msra.mxu0 %v2667
        %3712 = vmatprep.subr.mxu0 %v2670
        %3713 = vmatpush1.msra.mxu0 %v2669
        %3714 = vmatprep.subr.mxu0 %v2672
        %3715 = vmatpush1.msra.mxu0 %v2671
        %3716 = vmatprep.subr.mxu0 %v2674
        %3717 = vmatpush1.msra.mxu0 %v2673
        %3718 = vmatprep.subr.mxu0 %v2676
        %3719 = vmatpush1.msra.mxu0 %v2675
        %3720 = vmatprep.subr.mxu0 %v2678
        %3721 = vmatpush1.msra.mxu0 %v2677
        %3722 = vmatprep.subr.mxu0 %v2680
        %3723 = vmatpush1.msra.mxu0 %v2679
        %3724 = vmatprep.subr.mxu0 %v2682
        %3725 = vmatpush1.msra.mxu0 %v2681
        %3726 = vmatprep.subr.mxu0 %v2684
        %3727 = vmatpush1.msra.mxu0 %v2683
        %3728 = vmatprep.subr.mxu0 %v2686
        %3729 = vmatpush1.msra.mxu0 %v2685
        %3730 = vmatprep.subr.mxu0 %v2688
        %3731 = vmatpush1.msra.mxu0 %v2687
        %3732 = vmatprep.subr.mxu0 %v2690
        %3733 = vmatpush1.msra.mxu0 %v2689
        %3734 = vmatprep.subr.mxu0 %v2692
        %3735 = vmatpush1.msra.mxu0 %v2691
        %3736 = vmatprep.subr.mxu0 %v2694
        %3737 = vmatpush1.msra.mxu0 %v2693
        %3738 = vmatprep.subr.mxu0 %v2696
        %3739 = vmatpush1.msra.mxu0 %v2695
        %3740 = vmatprep.subr.mxu0 %v2698
        %3741 = vmatpush1.msra.mxu0 %v2697
        %3742 = vmatprep.subr.mxu0 %v2700
        %3743 = vmatpush1.msra.mxu0 %v2699
        %3744 = vmatprep.mubr.f32.mxu0 %v2516
        %3745 = vmatmul.mubr.f32.gmra.mrb[0].mxu0 %v2515
        %v3746 = vpop.f32.mrb[0].mxu0
        %v3747 = vadd.f32 %v3676, %v3746
        %v3748 = vpop.f32.mrb[0].mxu0
        %v3749 = vadd.f32 %v3678, %v3748
        %3750 = vdwg.mxu0
        %3751 = vmatprep.subr.mxu0 %v2702
        %3752 = vmatpush1.msra.mxu0 %v2701
        %3753 = vmatprep.subr.mxu0 %v2704
        %3754 = vmatpush1.msra.mxu0 %v2703
        %3755 = vmatprep.subr.mxu0 %v2706
        %3756 = vmatpush1.msra.mxu0 %v2705
        %3757 = vmatprep.subr.mxu0 %v2708
        %3758 = vmatpush1.msra.mxu0 %v2707
        %3759 = vmatprep.subr.mxu0 %v2710
        %3760 = vmatpush1.msra.mxu0 %v2709
        %3761 = vmatprep.subr.mxu0 %v2712
        %3762 = vmatpush1.msra.mxu0 %v2711
        %3763 = vmatprep.subr.mxu0 %v2714
        %3764 = vmatpush1.msra.mxu0 %v2713
        %3765 = vmatprep.subr.mxu0 %v2716
        %3766 = vmatpush1.msra.mxu0 %v2715
        %3767 = vmatprep.subr.mxu0 %v2718
        %3768 = vmatpush1.msra.mxu0 %v2717
        %3769 = vmatprep.subr.mxu0 %v2720
        %3770 = vmatpush1.msra.mxu0 %v2719
        %3771 = vmatprep.subr.mxu0 %v2722
        %3772 = vmatpush1.msra.mxu0 %v2721
        %3773 = vmatprep.subr.mxu0 %v2724
        %3774 = vmatpush1.msra.mxu0 %v2723
        %3775 = vmatprep.subr.mxu0 %v2726
        %3776 = vmatpush1.msra.mxu0 %v2725
        %3777 = vmatprep.subr.mxu0 %v2728
        %3778 = vmatpush1.msra.mxu0 %v2727
        %3779 = vmatprep.subr.mxu0 %v2730
        %3780 = vmatpush1.msra.mxu0 %v2729
        %3781 = vmatprep.subr.mxu0 %v2732
        %3782 = vmatpush1.msra.mxu0 %v2731
        %3783 = vmatprep.subr.mxu0 %v2734
        %3784 = vmatpush1.msra.mxu0 %v2733
        %3785 = vmatprep.subr.mxu0 %v2736
        %3786 = vmatpush1.msra.mxu0 %v2735
        %3787 = vmatprep.subr.mxu0 %v2738
        %3788 = vmatpush1.msra.mxu0 %v2737
        %3789 = vmatprep.subr.mxu0 %v2740
        %3790 = vmatpush1.msra.mxu0 %v2739
        %3791 = vmatprep.subr.mxu0 %v2742
        %3792 = vmatpush1.msra.mxu0 %v2741
        %3793 = vmatprep.subr.mxu0 %v2744
        %3794 = vmatpush1.msra.mxu0 %v2743
        %3795 = vmatprep.subr.mxu0 %v2746
        %3796 = vmatpush1.msra.mxu0 %v2745
        %3797 = vmatprep.subr.mxu0 %v2748
        %3798 = vmatpush1.msra.mxu0 %v2747
        %3799 = vmatprep.subr.mxu0 %v2750
        %3800 = vmatpush1.msra.mxu0 %v2749
        %3801 = vmatprep.subr.mxu0 %v2752
        %3802 = vmatpush1.msra.mxu0 %v2751
        %3803 = vmatprep.subr.mxu0 %v2754
        %3804 = vmatpush1.msra.mxu0 %v2753
        %3805 = vmatprep.subr.mxu0 %v2756
        %3806 = vmatpush1.msra.mxu0 %v2755
        %3807 = vmatprep.subr.mxu0 %v2758
        %3808 = vmatpush1.msra.mxu0 %v2757
        %3809 = vmatprep.subr.mxu0 %v2760
        %3810 = vmatpush1.msra.mxu0 %v2759
        %3811 = vmatprep.subr.mxu0 %v2762
        %3812 = vmatpush1.msra.mxu0 %v2761
        %3813 = vmatprep.subr.mxu0 %v2764
        %3814 = vmatpush1.msra.mxu0 %v2763
        %3815 = vmatprep.mubr.f32.mxu0 %v2520
        %3816 = vmatmul.mubr.f32.gmra.mrb[0].mxu0 %v2519
        %v3817 = vpop.f32.mrb[0].mxu0
        %v3818 = vadd.f32 %v3747, %v3817
        %v3819 = vpop.f32.mrb[0].mxu0
        %v3820 = vadd.f32 %v3749, %v3819
        %3821 = vdwg.mxu0
        %3822 = vmatprep.subr.mxu0 %v2766
        %3823 = vmatpush1.msra.mxu0 %v2765
        %3824 = vmatprep.subr.mxu0 %v2768
        %3825 = vmatpush1.msra.mxu0 %v2767
        %3826 = vmatprep.subr.mxu0 %v2770
        %3827 = vmatpush1.msra.mxu0 %v2769
        %3828 = vmatprep.subr.mxu0 %v2772
        %3829 = vmatpush1.msra.mxu0 %v2771
        %3830 = vmatprep.subr.mxu0 %v2774
        %3831 = vmatpush1.msra.mxu0 %v2773
        %3832 = vmatprep.subr.mxu0 %v2776
        %3833 = vmatpush1.msra.mxu0 %v2775
        %3834 = vmatprep.subr.mxu0 %v2778
        %3835 = vmatpush1.msra.mxu0 %v2777
        %3836 = vmatprep.subr.mxu0 %v2780
        %3837 = vmatpush1.msra.mxu0 %v2779
        %3838 = vmatprep.subr.mxu0 %v2782
        %3839 = vmatpush1.msra.mxu0 %v2781
        %3840 = vmatprep.subr.mxu0 %v2784
        %3841 = vmatpush1.msra.mxu0 %v2783
        %3842 = vmatprep.subr.mxu0 %v2786
        %3843 = vmatpush1.msra.mxu0 %v2785
        %3844 = vmatprep.subr.mxu0 %v2788
        %3845 = vmatpush1.msra.mxu0 %v2787
        %3846 = vmatprep.subr.mxu0 %v2790
        %3847 = vmatpush1.msra.mxu0 %v2789
        %3848 = vmatprep.subr.mxu0 %v2792
        %3849 = vmatpush1.msra.mxu0 %v2791
        %3850 = vmatprep.subr.mxu0 %v2794
        %3851 = vmatpush1.msra.mxu0 %v2793
        %3852 = vmatprep.subr.mxu0 %v2796
        %3853 = vmatpush1.msra.mxu0 %v2795
        %3854 = vmatprep.subr.mxu0 %v2798
        %3855 = vmatpush1.msra.mxu0 %v2797
        %3856 = vmatprep.subr.mxu0 %v2800
        %3857 = vmatpush1.msra.mxu0 %v2799
        %3858 = vmatprep.subr.mxu0 %v2802
        %3859 = vmatpush1.msra.mxu0 %v2801
        %3860 = vmatprep.subr.mxu0 %v2804
        %3861 = vmatpush1.msra.mxu0 %v2803
        %3862 = vmatprep.subr.mxu0 %v2806
        %3863 = vmatpush1.msra.mxu0 %v2805
        %3864 = vmatprep.subr.mxu0 %v2808
        %3865 = vmatpush1.msra.mxu0 %v2807
        %3866 = vmatprep.subr.mxu0 %v2810
        %3867 = vmatpush1.msra.mxu0 %v2809
        %3868 = vmatprep.subr.mxu0 %v2812
        %3869 = vmatpush1.msra.mxu0 %v2811
        %3870 = vmatprep.subr.mxu0 %v2814
        %3871 = vmatpush1.msra.mxu0 %v2813
        %3872 = vmatprep.subr.mxu0 %v2816
        %3873 = vmatpush1.msra.mxu0 %v2815
        %3874 = vmatprep.subr.mxu0 %v2818
        %3875 = vmatpush1.msra.mxu0 %v2817
        %3876 = vmatprep.subr.mxu0 %v2820
        %3877 = vmatpush1.msra.mxu0 %v2819
        %3878 = vmatprep.subr.mxu0 %v2822
        %3879 = vmatpush1.msra.mxu0 %v2821
        %3880 = vmatprep.subr.mxu0 %v2824
        %3881 = vmatpush1.msra.mxu0 %v2823
        %3882 = vmatprep.subr.mxu0 %v2826
        %3883 = vmatpush1.msra.mxu0 %v2825
        %3884 = vmatprep.subr.mxu0 %v2828
        %3885 = vmatpush1.msra.mxu0 %v2827
        %3886 = vmatprep.mubr.f32.mxu0 %v2524
        %3887 = vmatmul.mubr.f32.gmra.mrb[0].mxu0 %v2523
        %v3888 = vpop.f32.mrb[0].mxu0
        %v3889 = vadd.f32 %v3818, %v3888
        %v3890 = vpop.f32.mrb[0].mxu0
        %v3891 = vadd.f32 %v3820, %v3890
        %3892 = vdwg.mxu0
        %3893 = vmatprep.subr.mxu0 %v2830
        %3894 = vmatpush1.msra.mxu0 %v2829
        %3895 = vmatprep.subr.mxu0 %v2832
        %3896 = vmatpush1.msra.mxu0 %v2831
        %3897 = vmatprep.subr.mxu0 %v2834
        %3898 = vmatpush1.msra.mxu0 %v2833
        %3899 = vmatprep.subr.mxu0 %v2836
        %3900 = vmatpush1.msra.mxu0 %v2835
        %3901 = vmatprep.subr.mxu0 %v2838
        %3902 = vmatpush1.msra.mxu0 %v2837
        %3903 = vmatprep.subr.mxu0 %v2840
        %3904 = vmatpush1.msra.mxu0 %v2839
        %3905 = vmatprep.subr.mxu0 %v2842
        %3906 = vmatpush1.msra.mxu0 %v2841
        %3907 = vmatprep.subr.mxu0 %v2844
        %3908 = vmatpush1.msra.mxu0 %v2843
        %3909 = vmatprep.subr.mxu0 %v2846
        %3910 = vmatpush1.msra.mxu0 %v2845
        %3911 = vmatprep.subr.mxu0 %v2848
        %3912 = vmatpush1.msra.mxu0 %v2847
        %3913 = vmatprep.subr.mxu0 %v2850
        %3914 = vmatpush1.msra.mxu0 %v2849
        %3915 = vmatprep.subr.mxu0 %v2852
        %3916 = vmatpush1.msra.mxu0 %v2851
        %3917 = vmatprep.subr.mxu0 %v2854
        %3918 = vmatpush1.msra.mxu0 %v2853
        %3919 = vmatprep.subr.mxu0 %v2856
        %3920 = vmatpush1.msra.mxu0 %v2855
        %3921 = vmatprep.subr.mxu0 %v2858
        %3922 = vmatpush1.msra.mxu0 %v2857
        %3923 = vmatprep.subr.mxu0 %v2860
        %3924 = vmatpush1.msra.mxu0 %v2859
        %3925 = vmatprep.subr.mxu0 %v2862
        %3926 = vmatpush1.msra.mxu0 %v2861
        %3927 = vmatprep.subr.mxu0 %v2864
        %3928 = vmatpush1.msra.mxu0 %v2863
        %3929 = vmatprep.subr.mxu0 %v2866
        %3930 = vmatpush1.msra.mxu0 %v2865
        %3931 = vmatprep.subr.mxu0 %v2868
        %3932 = vmatpush1.msra.mxu0 %v2867
        %3933 = vmatprep.subr.mxu0 %v2870
        %3934 = vmatpush1.msra.mxu0 %v2869
        %3935 = vmatprep.subr.mxu0 %v2872
        %3936 = vmatpush1.msra.mxu0 %v2871
        %3937 = vmatprep.subr.mxu0 %v2874
        %3938 = vmatpush1.msra.mxu0 %v2873
        %3939 = vmatprep.subr.mxu0 %v2876
        %3940 = vmatpush1.msra.mxu0 %v2875
        %3941 = vmatprep.subr.mxu0 %v2878
        %3942 = vmatpush1.msra.mxu0 %v2877
        %3943 = vmatprep.subr.mxu0 %v2880
        %3944 = vmatpush1.msra.mxu0 %v2879
        %3945 = vmatprep.subr.mxu0 %v2882
        %3946 = vmatpush1.msra.mxu0 %v2881
        %3947 = vmatprep.subr.mxu0 %v2884
        %3948 = vmatpush1.msra.mxu0 %v2883
        %3949 = vmatprep.subr.mxu0 %v2886
        %3950 = vmatpush1.msra.mxu0 %v2885
        %3951 = vmatprep.subr.mxu0 %v2888
        %3952 = vmatpush1.msra.mxu0 %v2887
        %3953 = vmatprep.subr.mxu0 %v2890
        %3954 = vmatpush1.msra.mxu0 %v2889
        %3955 = vmatprep.subr.mxu0 %v2892
        %3956 = vmatpush1.msra.mxu0 %v2891
        %3957 = vmatprep.mubr.f32.mxu0 %v2528
        %3958 = vmatmul.mubr.f32.gmra.mrb[0].mxu0 %v2527
        %v3959 = vpop.f32.mrb[0].mxu0
        %v3960 = vadd.f32 %v3889, %v3959
        %v3961 = vpop.f32.mrb[0].mxu0
        %v3962 = vadd.f32 %v3891, %v3961
        %3963 = vdwg.mxu0
        %3964 = vmatprep.subr.mxu0 %v2894
        %3965 = vmatpush1.msra.mxu0 %v2893
        %3966 = vmatprep.subr.mxu0 %v2896
        %3967 = vmatpush1.msra.mxu0 %v2895
        %3968 = vmatprep.subr.mxu0 %v2898
        %3969 = vmatpush1.msra.mxu0 %v2897
        %3970 = vmatprep.subr.mxu0 %v2900
        %3971 = vmatpush1.msra.mxu0 %v2899
        %3972 = vmatprep.subr.mxu0 %v2902
        %3973 = vmatpush1.msra.mxu0 %v2901
        %3974 = vmatprep.subr.mxu0 %v2904
        %3975 = vmatpush1.msra.mxu0 %v2903
        %3976 = vmatprep.subr.mxu0 %v2906
        %3977 = vmatpush1.msra.mxu0 %v2905
        %3978 = vmatprep.subr.mxu0 %v2908
        %3979 = vmatpush1.msra.mxu0 %v2907
        %3980 = vmatprep.subr.mxu0 %v2910
        %3981 = vmatpush1.msra.mxu0 %v2909
        %3982 = vmatprep.subr.mxu0 %v2912
        %3983 = vmatpush1.msra.mxu0 %v2911
        %3984 = vmatprep.subr.mxu0 %v2914
        %3985 = vmatpush1.msra.mxu0 %v2913
        %3986 = vmatprep.subr.mxu0 %v2916
        %3987 = vmatpush1.msra.mxu0 %v2915
        %3988 = vmatprep.subr.mxu0 %v2918
        %3989 = vmatpush1.msra.mxu0 %v2917
        %3990 = vmatprep.subr.mxu0 %v2920
        %3991 = vmatpush1.msra.mxu0 %v2919
        %3992 = vmatprep.subr.mxu0 %v2922
        %3993 = vmatpush1.msra.mxu0 %v2921
        %3994 = vmatprep.subr.mxu0 %v2924
        %3995 = vmatpush1.msra.mxu0 %v2923
        %3996 = vmatprep.subr.mxu0 %v2926
        %3997 = vmatpush1.msra.mxu0 %v2925
        %3998 = vmatprep.subr.mxu0 %v2928
        %3999 = vmatpush1.msra.mxu0 %v2927
        %4000 = vmatprep.subr.mxu0 %v2930
        %4001 = vmatpush1.msra.mxu0 %v2929
        %4002 = vmatprep.subr.mxu0 %v2932
        %4003 = vmatpush1.msra.mxu0 %v2931
        %4004 = vmatprep.subr.mxu0 %v2934
        %4005 = vmatpush1.msra.mxu0 %v2933
        %4006 = vmatprep.subr.mxu0 %v2936
        %4007 = vmatpush1.msra.mxu0 %v2935
        %4008 = vmatprep.subr.mxu0 %v2938
        %4009 = vmatpush1.msra.mxu0 %v2937
        %4010 = vmatprep.subr.mxu0 %v2940
        %4011 = vmatpush1.msra.mxu0 %v2939
        %4012 = vmatprep.subr.mxu0 %v2942
        %4013 = vmatpush1.msra.mxu0 %v2941
        %4014 = vmatprep.subr.mxu0 %v2944
        %4015 = vmatpush1.msra.mxu0 %v2943
        %4016 = vmatprep.subr.mxu0 %v2946
        %4017 = vmatpush1.msra.mxu0 %v2945
        %4018 = vmatprep.subr.mxu0 %v2948
        %4019 = vmatpush1.msra.mxu0 %v2947
        %4020 = vmatprep.subr.mxu0 %v2950
        %4021 = vmatpush1.msra.mxu0 %v2949
        %4022 = vmatprep.subr.mxu0 %v2952
        %4023 = vmatpush1.msra.mxu0 %v2951
        %4024 = vmatprep.subr.mxu0 %v2954
        %4025 = vmatpush1.msra.mxu0 %v2953
        %4026 = vmatprep.subr.mxu0 %v2956
        %4027 = vmatpush1.msra.mxu0 %v2955
        %4028 = vmatprep.mubr.f32.mxu0 %v2532
        %4029 = vmatmul.mubr.f32.gmra.mrb[0].mxu0 %v2531
        %v4030 = vpop.f32.mrb[0].mxu0
        %v4031 = vadd.f32 %v3960, %v4030
        %v4032 = vpop.f32.mrb[0].mxu0
        %v4033 = vadd.f32 %v3962, %v4032
        %4034 = vdwg.mxu0
        %4035 = vmatprep.subr.mxu0 %v2958
        %4036 = vmatpush1.msra.mxu0 %v2957
        %4037 = vmatprep.subr.mxu0 %v2960
        %4038 = vmatpush1.msra.mxu0 %v2959
        %4039 = vmatprep.subr.mxu0 %v2962
        %4040 = vmatpush1.msra.mxu0 %v2961
        %4041 = vmatprep.subr.mxu0 %v2964
        %4042 = vmatpush1.msra.mxu0 %v2963
        %4043 = vmatprep.subr.mxu0 %v2966
        %4044 = vmatpush1.msra.mxu0 %v2965
        %4045 = vmatprep.subr.mxu0 %v2968
        %4046 = vmatpush1.msra.mxu0 %v2967
        %4047 = vmatprep.subr.mxu0 %v2970
        %4048 = vmatpush1.msra.mxu0 %v2969
        %4049 = vmatprep.subr.mxu0 %v2972
        %4050 = vmatpush1.msra.mxu0 %v2971
        %4051 = vmatprep.subr.mxu0 %v2974
        %4052 = vmatpush1.msra.mxu0 %v2973
        %4053 = vmatprep.subr.mxu0 %v2976
        %4054 = vmatpush1.msra.mxu0 %v2975
        %4055 = vmatprep.subr.mxu0 %v2978
        %4056 = vmatpush1.msra.mxu0 %v2977
        %4057 = vmatprep.subr.mxu0 %v2980
        %4058 = vmatpush1.msra.mxu0 %v2979
        %4059 = vmatprep.subr.mxu0 %v2982
        %4060 = vmatpush1.msra.mxu0 %v2981
        %4061 = vmatprep.subr.mxu0 %v2984
        %4062 = vmatpush1.msra.mxu0 %v2983
        %4063 = vmatprep.subr.mxu0 %v2986
        %4064 = vmatpush1.msra.mxu0 %v2985
        %4065 = vmatprep.subr.mxu0 %v2988
        %4066 = vmatpush1.msra.mxu0 %v2987
        %4067 = vmatprep.subr.mxu0 %v2990
        %4068 = vmatpush1.msra.mxu0 %v2989
        %4069 = vmatprep.subr.mxu0 %v2992
        %4070 = vmatpush1.msra.mxu0 %v2991
        %4071 = vmatprep.subr.mxu0 %v2994
        %4072 = vmatpush1.msra.mxu0 %v2993
        %4073 = vmatprep.subr.mxu0 %v2996
        %4074 = vmatpush1.msra.mxu0 %v2995
        %4075 = vmatprep.subr.mxu0 %v2998
        %4076 = vmatpush1.msra.mxu0 %v2997
        %4077 = vmatprep.subr.mxu0 %v3000
        %4078 = vmatpush1.msra.mxu0 %v2999
        %4079 = vmatprep.subr.mxu0 %v3002
        %4080 = vmatpush1.msra.mxu0 %v3001
        %4081 = vmatprep.subr.mxu0 %v3004
        %4082 = vmatpush1.msra.mxu0 %v3003
        %4083 = vmatprep.subr.mxu0 %v3006
        %4084 = vmatpush1.msra.mxu0 %v3005
        %4085 = vmatprep.subr.mxu0 %v3008
        %4086 = vmatpush1.msra.mxu0 %v3007
        %4087 = vmatprep.subr.mxu0 %v3010
        %4088 = vmatpush1.msra.mxu0 %v3009
        %4089 = vmatprep.subr.mxu0 %v3012
        %4090 = vmatpush1.msra.mxu0 %v3011
        %4091 = vmatprep.subr.mxu0 %v3014
        %4092 = vmatpush1.msra.mxu0 %v3013
        %4093 = vmatprep.subr.mxu0 %v3016
        %4094 = vmatpush1.msra.mxu0 %v3015
        %4095 = vmatprep.subr.mxu0 %v3018
        %4096 = vmatpush1.msra.mxu0 %v3017
        %4097 = vmatprep.subr.mxu0 %v3020
        %4098 = vmatpush1.msra.mxu0 %v3019
        %4099 = vmatprep.mubr.f32.mxu0 %v2536
        %4100 = vmatmul.mubr.f32.gmra.mrb[0].mxu0 %v2535
        %v4101 = vpop.f32.mrb[0].mxu0
        %v4102 = vadd.f32 %v4031, %v4101
        %v4103 = vpop.f32.mrb[0].mxu0
        %v4104 = vadd.f32 %v4033, %v4103
        %4105 = vdwg.mxu0
        %4106 = vmatprep.subr.mxu0 %v3022
        %4107 = vmatpush1.msra.mxu0 %v3021
        %4108 = vmatprep.subr.mxu0 %v3024
        %4109 = vmatpush1.msra.mxu0 %v3023
        %4110 = vmatprep.subr.mxu0 %v3026
        %4111 = vmatpush1.msra.mxu0 %v3025
        %4112 = vmatprep.subr.mxu0 %v3028
        %4113 = vmatpush1.msra.mxu0 %v3027
        %4114 = vmatprep.subr.mxu0 %v3030
        %4115 = vmatpush1.msra.mxu0 %v3029
        %4116 = vmatprep.subr.mxu0 %v3032
        %4117 = vmatpush1.msra.mxu0 %v3031
        %4118 = vmatprep.subr.mxu0 %v3034
        %4119 = vmatpush1.msra.mxu0 %v3033
        %4120 = vmatprep.subr.mxu0 %v3036
        %4121 = vmatpush1.msra.mxu0 %v3035
        %4122 = vmatprep.subr.mxu0 %v3038
        %4123 = vmatpush1.msra.mxu0 %v3037
        %4124 = vmatprep.subr.mxu0 %v3040
        %4125 = vmatpush1.msra.mxu0 %v3039
        %4126 = vmatprep.subr.mxu0 %v3042
        %4127 = vmatpush1.msra.mxu0 %v3041
        %4128 = vmatprep.subr.mxu0 %v3044
        %4129 = vmatpush1.msra.mxu0 %v3043
        %4130 = vmatprep.subr.mxu0 %v3046
        %4131 = vmatpush1.msra.mxu0 %v3045
        %4132 = vmatprep.subr.mxu0 %v3048
        %4133 = vmatpush1.msra.mxu0 %v3047
        %4134 = vmatprep.subr.mxu0 %v3050
        %4135 = vmatpush1.msra.mxu0 %v3049
        %4136 = vmatprep.subr.mxu0 %v3052
        %4137 = vmatpush1.msra.mxu0 %v3051
        %4138 = vmatprep.subr.mxu0 %v3054
        %4139 = vmatpush1.msra.mxu0 %v3053
        %4140 = vmatprep.subr.mxu0 %v3056
        %4141 = vmatpush1.msra.mxu0 %v3055
        %4142 = vmatprep.subr.mxu0 %v3058
        %4143 = vmatpush1.msra.mxu0 %v3057
        %4144 = vmatprep.subr.mxu0 %v3060
        %4145 = vmatpush1.msra.mxu0 %v3059
        %4146 = vmatprep.subr.mxu0 %v3062
        %4147 = vmatpush1.msra.mxu0 %v3061
        %4148 = vmatprep.subr.mxu0 %v3064
        %4149 = vmatpush1.msra.mxu0 %v3063
        %4150 = vmatprep.subr.mxu0 %v3066
        %4151 = vmatpush1.msra.mxu0 %v3065
        %4152 = vmatprep.subr.mxu0 %v3068
        %4153 = vmatpush1.msra.mxu0 %v3067
        %4154 = vmatprep.subr.mxu0 %v3070
        %4155 = vmatpush1.msra.mxu0 %v3069
        %4156 = vmatprep.subr.mxu0 %v3072
        %4157 = vmatpush1.msra.mxu0 %v3071
        %4158 = vmatprep.subr.mxu0 %v3074
        %4159 = vmatpush1.msra.mxu0 %v3073
        %4160 = vmatprep.subr.mxu0 %v3076
        %4161 = vmatpush1.msra.mxu0 %v3075
        %4162 = vmatprep.subr.mxu0 %v3078
        %4163 = vmatpush1.msra.mxu0 %v3077
        %4164 = vmatprep.subr.mxu0 %v3080
        %4165 = vmatpush1.msra.mxu0 %v3079
        %4166 = vmatprep.subr.mxu0 %v3082
        %4167 = vmatpush1.msra.mxu0 %v3081
        %4168 = vmatprep.subr.mxu0 %v3084
        %4169 = vmatpush1.msra.mxu0 %v3083
        %4170 = vmatprep.mubr.f32.mxu0 %v2540
        %4171 = vmatmul.mubr.f32.gmra.mrb[0].mxu0 %v2539
        %v4172 = vpop.f32.mrb[0].mxu0
        %v4173 = vadd.f32 %v4102, %v4172
        %v4174 = vpop.f32.mrb[0].mxu0
        %v4175 = vadd.f32 %v4104, %v4174
        %4176 = vdwg.mxu0
        %4177 = vmatprep.subr.mxu0 %v3086
        %4178 = vmatpush1.msra.mxu0 %v3085
        %4179 = vmatprep.subr.mxu0 %v3088
        %4180 = vmatpush1.msra.mxu0 %v3087
        %4181 = vmatprep.subr.mxu0 %v3090
        %4182 = vmatpush1.msra.mxu0 %v3089
        %4183 = vmatprep.subr.mxu0 %v3092
        %4184 = vmatpush1.msra.mxu0 %v3091
        %4185 = vmatprep.subr.mxu0 %v3094
        %4186 = vmatpush1.msra.mxu0 %v3093
        %4187 = vmatprep.subr.mxu0 %v3096
        %4188 = vmatpush1.msra.mxu0 %v3095
        %4189 = vmatprep.subr.mxu0 %v3098
        %4190 = vmatpush1.msra.mxu0 %v3097
        %4191 = vmatprep.subr.mxu0 %v3100
        %4192 = vmatpush1.msra.mxu0 %v3099
        %4193 = vmatprep.subr.mxu0 %v3102
        %4194 = vmatpush1.msra.mxu0 %v3101
        %4195 = vmatprep.subr.mxu0 %v3104
        %4196 = vmatpush1.msra.mxu0 %v3103
        %4197 = vmatprep.subr.mxu0 %v3106
        %4198 = vmatpush1.msra.mxu0 %v3105
        %4199 = vmatprep.subr.mxu0 %v3108
        %4200 = vmatpush1.msra.mxu0 %v3107
        %4201 = vmatprep.subr.mxu0 %v3110
        %4202 = vmatpush1.msra.mxu0 %v3109
        %4203 = vmatprep.subr.mxu0 %v3112
        %4204 = vmatpush1.msra.mxu0 %v3111
        %4205 = vmatprep.subr.mxu0 %v3114
        %4206 = vmatpush1.msra.mxu0 %v3113
        %4207 = vmatprep.subr.mxu0 %v3116
        %4208 = vmatpush1.msra.mxu0 %v3115
        %4209 = vmatprep.subr.mxu0 %v3118
        %4210 = vmatpush1.msra.mxu0 %v3117
        %4211 = vmatprep.subr.mxu0 %v3120
        %4212 = vmatpush1.msra.mxu0 %v3119
        %4213 = vmatprep.subr.mxu0 %v3122
        %4214 = vmatpush1.msra.mxu0 %v3121
        %4215 = vmatprep.subr.mxu0 %v3124
        %4216 = vmatpush1.msra.mxu0 %v3123
        %4217 = vmatprep.subr.mxu0 %v3126
        %4218 = vmatpush1.msra.mxu0 %v3125
        %4219 = vmatprep.subr.mxu0 %v3128
        %4220 = vmatpush1.msra.mxu0 %v3127
        %4221 = vmatprep.subr.mxu0 %v3130
        %4222 = vmatpush1.msra.mxu0 %v3129
        %4223 = vmatprep.subr.mxu0 %v3132
        %4224 = vmatpush1.msra.mxu0 %v3131
        %4225 = vmatprep.subr.mxu0 %v3134
        %4226 = vmatpush1.msra.mxu0 %v3133
        %4227 = vmatprep.subr.mxu0 %v3136
        %4228 = vmatpush1.msra.mxu0 %v3135
        %4229 = vmatprep.subr.mxu0 %v3138
        %4230 = vmatpush1.msra.mxu0 %v3137
        %4231 = vmatprep.subr.mxu0 %v3140
        %4232 = vmatpush1.msra.mxu0 %v3139
        %4233 = vmatprep.subr.mxu0 %v3142
        %4234 = vmatpush1.msra.mxu0 %v3141
        %4235 = vmatprep.subr.mxu0 %v3144
        %4236 = vmatpush1.msra.mxu0 %v3143
        %4237 = vmatprep.subr.mxu0 %v3146
        %4238 = vmatpush1.msra.mxu0 %v3145
        %4239 = vmatprep.subr.mxu0 %v3148
        %4240 = vmatpush1.msra.mxu0 %v3147
        %4241 = vmatprep.mubr.f32.mxu0 %v2498
        %4242 = vmatmul.mubr.f32.gmra.mrb[0].mxu0 %v2466
        %v4243 = vpop.f32.mrb[0].mxu0
        %v4244 = vadd.f32 %v4173, %v4243
        %v4245 = vpop.f32.mrb[0].mxu0
        %v4246 = vadd.f32 %v4175, %v4245
        %4247 = vdwg.mxu0
        %4248 = vmatprep.subr.mxu0 %v3150
        %4249 = vmatpush1.msra.mxu0 %v3149
        %4250 = vmatprep.subr.mxu0 %v3152
        %4251 = vmatpush1.msra.mxu0 %v3151
        %4252 = vmatprep.subr.mxu0 %v3154
        %4253 = vmatpush1.msra.mxu0 %v3153
        %4254 = vmatprep.subr.mxu0 %v3156
        %4255 = vmatpush1.msra.mxu0 %v3155
        %4256 = vmatprep.subr.mxu0 %v3158
        %4257 = vmatpush1.msra.mxu0 %v3157
        %4258 = vmatprep.subr.mxu0 %v3160
        %4259 = vmatpush1.msra.mxu0 %v3159
        %4260 = vmatprep.subr.mxu0 %v3162
        %4261 = vmatpush1.msra.mxu0 %v3161
        %4262 = vmatprep.subr.mxu0 %v3164
        %4263 = vmatpush1.msra.mxu0 %v3163
        %4264 = vmatprep.subr.mxu0 %v3166
        %4265 = vmatpush1.msra.mxu0 %v3165
        %4266 = vmatprep.subr.mxu0 %v3168
        %4267 = vmatpush1.msra.mxu0 %v3167
        %4268 = vmatprep.subr.mxu0 %v3170
        %4269 = vmatpush1.msra.mxu0 %v3169
        %4270 = vmatprep.subr.mxu0 %v3172
        %4271 = vmatpush1.msra.mxu0 %v3171
        %4272 = vmatprep.subr.mxu0 %v3174
        %4273 = vmatpush1.msra.mxu0 %v3173
        %4274 = vmatprep.subr.mxu0 %v3176
        %4275 = vmatpush1.msra.mxu0 %v3175
        %4276 = vmatprep.subr.mxu0 %v3178
        %4277 = vmatpush1.msra.mxu0 %v3177
        %4278 = vmatprep.subr.mxu0 %v3180
        %4279 = vmatpush1.msra.mxu0 %v3179
        %4280 = vmatprep.subr.mxu0 %v3182
        %4281 = vmatpush1.msra.mxu0 %v3181
        %4282 = vmatprep.subr.mxu0 %v3184
        %4283 = vmatpush1.msra.mxu0 %v3183
        %4284 = vmatprep.subr.mxu0 %v3186
        %4285 = vmatpush1.msra.mxu0 %v3185
        %4286 = vmatprep.subr.mxu0 %v3188
        %4287 = vmatpush1.msra.mxu0 %v3187
        %4288 = vmatprep.subr.mxu0 %v3190
        %4289 = vmatpush1.msra.mxu0 %v3189
        %4290 = vmatprep.subr.mxu0 %v3192
        %4291 = vmatpush1.msra.mxu0 %v3191
        %4292 = vmatprep.subr.mxu0 %v3194
        %4293 = vmatpush1.msra.mxu0 %v3193
        %4294 = vmatprep.subr.mxu0 %v3196
        %4295 = vmatpush1.msra.mxu0 %v3195
        %4296 = vmatprep.subr.mxu0 %v3198
        %4297 = vmatpush1.msra.mxu0 %v3197
        %4298 = vmatprep.subr.mxu0 %v3200
        %4299 = vmatpush1.msra.mxu0 %v3199
        %4300 = vmatprep.subr.mxu0 %v3202
        %4301 = vmatpush1.msra.mxu0 %v3201
        %4302 = vmatprep.subr.mxu0 %v3204
        %4303 = vmatpush1.msra.mxu0 %v3203
        %4304 = vmatprep.subr.mxu0 %v3206
        %4305 = vmatpush1.msra.mxu0 %v3205
        %4306 = vmatprep.subr.mxu0 %v3208
        %4307 = vmatpush1.msra.mxu0 %v3207
        %4308 = vmatprep.subr.mxu0 %v3210
        %4309 = vmatpush1.msra.mxu0 %v3209
        %4310 = vmatprep.subr.mxu0 %v3212
        %4311 = vmatpush1.msra.mxu0 %v3211
        %4312 = vmatprep.mubr.f32.mxu0 %v2546
        %4313 = vmatmul.mubr.f32.gmra.mrb[0].mxu0 %v2545
        %v4314 = vpop.f32.mrb[0].mxu0
        %v4315 = vadd.f32 %v4244, %v4314
        %v4316 = vpop.f32.mrb[0].mxu0
        %v4317 = vadd.f32 %v4246, %v4316
        %4318 = vdwg.mxu0
        %4319 = vmatprep.subr.mxu0 %v3214
        %4320 = vmatpush1.msra.mxu0 %v3213
        %4321 = vmatprep.subr.mxu0 %v3216
        %4322 = vmatpush1.msra.mxu0 %v3215
        %4323 = vmatprep.subr.mxu0 %v3218
        %4324 = vmatpush1.msra.mxu0 %v3217
        %4325 = vmatprep.subr.mxu0 %v3220
        %4326 = vmatpush1.msra.mxu0 %v3219
        %4327 = vmatprep.subr.mxu0 %v3222
        %4328 = vmatpush1.msra.mxu0 %v3221
        %4329 = vmatprep.subr.mxu0 %v3224
        %4330 = vmatpush1.msra.mxu0 %v3223
        %4331 = vmatprep.subr.mxu0 %v3226
        %4332 = vmatpush1.msra.mxu0 %v3225
        %4333 = vmatprep.subr.mxu0 %v3228
        %4334 = vmatpush1.msra.mxu0 %v3227
        %4335 = vmatprep.subr.mxu0 %v3230
        %4336 = vmatpush1.msra.mxu0 %v3229
        %4337 = vmatprep.subr.mxu0 %v3232
        %4338 = vmatpush1.msra.mxu0 %v3231
        %4339 = vmatprep.subr.mxu0 %v3234
        %4340 = vmatpush1.msra.mxu0 %v3233
        %4341 = vmatprep.subr.mxu0 %v3236
        %4342 = vmatpush1.msra.mxu0 %v3235
        %4343 = vmatprep.subr.mxu0 %v3238
        %4344 = vmatpush1.msra.mxu0 %v3237
        %4345 = vmatprep.subr.mxu0 %v3240
        %4346 = vmatpush1.msra.mxu0 %v3239
        %4347 = vmatprep.subr.mxu0 %v3242
        %4348 = vmatpush1.msra.mxu0 %v3241
        %4349 = vmatprep.subr.mxu0 %v3244
        %4350 = vmatpush1.msra.mxu0 %v3243
        %4351 = vmatprep.subr.mxu0 %v3246
        %4352 = vmatpush1.msra.mxu0 %v3245
        %4353 = vmatprep.subr.mxu0 %v3248
        %4354 = vmatpush1.msra.mxu0 %v3247
        %4355 = vmatprep.subr.mxu0 %v3250
        %4356 = vmatpush1.msra.mxu0 %v3249
        %4357 = vmatprep.subr.mxu0 %v3252
        %4358 = vmatpush1.msra.mxu0 %v3251
        %4359 = vmatprep.subr.mxu0 %v3254
        %4360 = vmatpush1.msra.mxu0 %v3253
        %4361 = vmatprep.subr.mxu0 %v3256
        %4362 = vmatpush1.msra.mxu0 %v3255
        %4363 = vmatprep.subr.mxu0 %v3258
        %4364 = vmatpush1.msra.mxu0 %v3257
        %4365 = vmatprep.subr.mxu0 %v3260
        %4366 = vmatpush1.msra.mxu0 %v3259
        %4367 = vmatprep.subr.mxu0 %v3262
        %4368 = vmatpush1.msra.mxu0 %v3261
        %4369 = vmatprep.subr.mxu0 %v3264
        %4370 = vmatpush1.msra.mxu0 %v3263
        %4371 = vmatprep.subr.mxu0 %v3266
        %4372 = vmatpush1.msra.mxu0 %v3265
        %4373 = vmatprep.subr.mxu0 %v3268
        %4374 = vmatpush1.msra.mxu0 %v3267
        %4375 = vmatprep.subr.mxu0 %v3270
        %4376 = vmatpush1.msra.mxu0 %v3269
        %4377 = vmatprep.subr.mxu0 %v3272
        %4378 = vmatpush1.msra.mxu0 %v3271
        %4379 = vmatprep.subr.mxu0 %v3274
        %4380 = vmatpush1.msra.mxu0 %v3273
        %4381 = vmatprep.subr.mxu0 %v3276
        %4382 = vmatpush1.msra.mxu0 %v3275
        %4383 = vmatprep.mubr.f32.mxu0 %v2550
        %4384 = vmatmul.mubr.f32.gmra.mrb[0].mxu0 %v2549
        %v4385 = vpop.f32.mrb[0].mxu0
        %v4386 = vadd.f32 %v4315, %v4385
        %v4387 = vpop.f32.mrb[0].mxu0
        %v4388 = vadd.f32 %v4317, %v4387
        %4389 = vdwg.mxu0
        %4390 = vmatprep.subr.mxu0 %v3278
        %4391 = vmatpush1.msra.mxu0 %v3277
        %4392 = vmatprep.subr.mxu0 %v3280
        %4393 = vmatpush1.msra.mxu0 %v3279
        %4394 = vmatprep.subr.mxu0 %v3282
        %4395 = vmatpush1.msra.mxu0 %v3281
        %4396 = vmatprep.subr.mxu0 %v3284
        %4397 = vmatpush1.msra.mxu0 %v3283
        %4398 = vmatprep.subr.mxu0 %v3286
        %4399 = vmatpush1.msra.mxu0 %v3285
        %4400 = vmatprep.subr.mxu0 %v3288
        %4401 = vmatpush1.msra.mxu0 %v3287
        %4402 = vmatprep.subr.mxu0 %v3290
        %4403 = vmatpush1.msra.mxu0 %v3289
        %4404 = vmatprep.subr.mxu0 %v3292
        %4405 = vmatpush1.msra.mxu0 %v3291
        %4406 = vmatprep.subr.mxu0 %v3294
        %4407 = vmatpush1.msra.mxu0 %v3293
        %4408 = vmatprep.subr.mxu0 %v3296
        %4409 = vmatpush1.msra.mxu0 %v3295
        %4410 = vmatprep.subr.mxu0 %v3298
        %4411 = vmatpush1.msra.mxu0 %v3297
        %4412 = vmatprep.subr.mxu0 %v3300
        %4413 = vmatpush1.msra.mxu0 %v3299
        %4414 = vmatprep.subr.mxu0 %v3302
        %4415 = vmatpush1.msra.mxu0 %v3301
        %4416 = vmatprep.subr.mxu0 %v3304
        %4417 = vmatpush1.msra.mxu0 %v3303
        %4418 = vmatprep.subr.mxu0 %v3306
        %4419 = vmatpush1.msra.mxu0 %v3305
        %4420 = vmatprep.subr.mxu0 %v3308
        %4421 = vmatpush1.msra.mxu0 %v3307
        %4422 = vmatprep.subr.mxu0 %v3310
        %4423 = vmatpush1.msra.mxu0 %v3309
        %4424 = vmatprep.subr.mxu0 %v3312
        %4425 = vmatpush1.msra.mxu0 %v3311
        %4426 = vmatprep.subr.mxu0 %v3314
        %4427 = vmatpush1.msra.mxu0 %v3313
        %4428 = vmatprep.subr.mxu0 %v3316
        %4429 = vmatpush1.msra.mxu0 %v3315
        %4430 = vmatprep.subr.mxu0 %v3318
        %4431 = vmatpush1.msra.mxu0 %v3317
        %4432 = vmatprep.subr.mxu0 %v3320
        %4433 = vmatpush1.msra.mxu0 %v3319
        %4434 = vmatprep.subr.mxu0 %v3322
        %4435 = vmatpush1.msra.mxu0 %v3321
        %4436 = vmatprep.subr.mxu0 %v3324
        %4437 = vmatpush1.msra.mxu0 %v3323
        %4438 = vmatprep.subr.mxu0 %v3326
        %4439 = vmatpush1.msra.mxu0 %v3325
        %4440 = vmatprep.subr.mxu0 %v3328
        %4441 = vmatpush1.msra.mxu0 %v3327
        %4442 = vmatprep.subr.mxu0 %v3330
        %4443 = vmatpush1.msra.mxu0 %v3329
        %4444 = vmatprep.subr.mxu0 %v3332
        %4445 = vmatpush1.msra.mxu0 %v3331
        %4446 = vmatprep.subr.mxu0 %v3334
        %4447 = vmatpush1.msra.mxu0 %v3333
        %4448 = vmatprep.subr.mxu0 %v3336
        %4449 = vmatpush1.msra.mxu0 %v3335
        %4450 = vmatprep.subr.mxu0 %v3338
        %4451 = vmatpush1.msra.mxu0 %v3337
        %4452 = vmatprep.subr.mxu0 %v3340
        %4453 = vmatpush1.msra.mxu0 %v3339
        %4454 = vmatprep.mubr.f32.mxu0 %v2554
        %4455 = vmatmul.mubr.f32.gmra.mrb[0].mxu0 %v2553
        %v4456 = vpop.f32.mrb[0].mxu0
        %v4457 = vadd.f32 %v4386, %v4456
        %v4458 = vpop.f32.mrb[0].mxu0
        %v4459 = vadd.f32 %v4388, %v4458
        %4460 = vdwg.mxu0
        %4461 = vmatprep.subr.mxu0 %v3342
        %4462 = vmatpush1.msra.mxu0 %v3341
        %4463 = vmatprep.subr.mxu0 %v3344
        %4464 = vmatpush1.msra.mxu0 %v3343
        %4465 = vmatprep.subr.mxu0 %v3346
        %4466 = vmatpush1.msra.mxu0 %v3345
        %4467 = vmatprep.subr.mxu0 %v3348
        %4468 = vmatpush1.msra.mxu0 %v3347
        %4469 = vmatprep.subr.mxu0 %v3350
        %4470 = vmatpush1.msra.mxu0 %v3349
        %4471 = vmatprep.subr.mxu0 %v3352
        %4472 = vmatpush1.msra.mxu0 %v3351
        %4473 = vmatprep.subr.mxu0 %v3354
        %4474 = vmatpush1.msra.mxu0 %v3353
        %4475 = vmatprep.subr.mxu0 %v3356
        %4476 = vmatpush1.msra.mxu0 %v3355
        %4477 = vmatprep.subr.mxu0 %v3358
        %4478 = vmatpush1.msra.mxu0 %v3357
        %4479 = vmatprep.subr.mxu0 %v3360
        %4480 = vmatpush1.msra.mxu0 %v3359
        %4481 = vmatprep.subr.mxu0 %v3362
        %4482 = vmatpush1.msra.mxu0 %v3361
        %4483 = vmatprep.subr.mxu0 %v3364
        %4484 = vmatpush1.msra.mxu0 %v3363
        %4485 = vmatprep.subr.mxu0 %v3366
        %4486 = vmatpush1.msra.mxu0 %v3365
        %4487 = vmatprep.subr.mxu0 %v3368
        %4488 = vmatpush1.msra.mxu0 %v3367
        %4489 = vmatprep.subr.mxu0 %v3370
        %4490 = vmatpush1.msra.mxu0 %v3369
        %4491 = vmatprep.subr.mxu0 %v3372
        %4492 = vmatpush1.msra.mxu0 %v3371
        %4493 = vmatprep.subr.mxu0 %v3374
        %4494 = vmatpush1.msra.mxu0 %v3373
        %4495 = vmatprep.subr.mxu0 %v3376
        %4496 = vmatpush1.msra.mxu0 %v3375
        %4497 = vmatprep.subr.mxu0 %v3378
        %4498 = vmatpush1.msra.mxu0 %v3377
        %4499 = vmatprep.subr.mxu0 %v3380
        %4500 = vmatpush1.msra.mxu0 %v3379
        %4501 = vmatprep.subr.mxu0 %v3382
        %4502 = vmatpush1.msra.mxu0 %v3381
        %4503 = vmatprep.subr.mxu0 %v3384
        %4504 = vmatpush1.msra.mxu0 %v3383
        %4505 = vmatprep.subr.mxu0 %v3386
        %4506 = vmatpush1.msra.mxu0 %v3385
        %4507 = vmatprep.subr.mxu0 %v3388
        %4508 = vmatpush1.msra.mxu0 %v3387
        %4509 = vmatprep.subr.mxu0 %v3390
        %4510 = vmatpush1.msra.mxu0 %v3389
        %4511 = vmatprep.subr.mxu0 %v3392
        %4512 = vmatpush1.msra.mxu0 %v3391
        %4513 = vmatprep.subr.mxu0 %v3394
        %4514 = vmatpush1.msra.mxu0 %v3393
        %4515 = vmatprep.subr.mxu0 %v3396
        %4516 = vmatpush1.msra.mxu0 %v3395
        %4517 = vmatprep.subr.mxu0 %v3398
        %4518 = vmatpush1.msra.mxu0 %v3397
        %4519 = vmatprep.subr.mxu0 %v3400
        %4520 = vmatpush1.msra.mxu0 %v3399
        %4521 = vmatprep.subr.mxu0 %v3402
        %4522 = vmatpush1.msra.mxu0 %v3401
        %4523 = vmatprep.subr.mxu0 %v3404
        %4524 = vmatpush1.msra.mxu0 %v3403
        %4525 = vmatprep.mubr.f32.mxu0 %v2558
        %4526 = vmatmul.mubr.f32.gmra.mrb[0].mxu0 %v2557
        %v4527 = vpop.f32.mrb[0].mxu0
        %v4528 = vadd.f32 %v4457, %v4527
        %v4529 = vpop.f32.mrb[0].mxu0
        %v4530 = vadd.f32 %v4459, %v4529
        %4531 = vdwg.mxu0
        %4532 = vmatprep.subr.mxu0 %v3406
        %4533 = vmatpush1.msra.mxu0 %v3405
        %4534 = vmatprep.subr.mxu0 %v3408
        %4535 = vmatpush1.msra.mxu0 %v3407
        %4536 = vmatprep.subr.mxu0 %v3410
        %4537 = vmatpush1.msra.mxu0 %v3409
        %4538 = vmatprep.subr.mxu0 %v3412
        %4539 = vmatpush1.msra.mxu0 %v3411
        %4540 = vmatprep.subr.mxu0 %v3414
        %4541 = vmatpush1.msra.mxu0 %v3413
        %4542 = vmatprep.subr.mxu0 %v3416
        %4543 = vmatpush1.msra.mxu0 %v3415
        %4544 = vmatprep.subr.mxu0 %v3418
        %4545 = vmatpush1.msra.mxu0 %v3417
        %4546 = vmatprep.subr.mxu0 %v3420
        %4547 = vmatpush1.msra.mxu0 %v3419
        %4548 = vmatprep.subr.mxu0 %v3422
        %4549 = vmatpush1.msra.mxu0 %v3421
        %4550 = vmatprep.subr.mxu0 %v3424
        %4551 = vmatpush1.msra.mxu0 %v3423
        %4552 = vmatprep.subr.mxu0 %v3426
        %4553 = vmatpush1.msra.mxu0 %v3425
        %4554 = vmatprep.subr.mxu0 %v3428
        %4555 = vmatpush1.msra.mxu0 %v3427
        %4556 = vmatprep.subr.mxu0 %v3430
        %4557 = vmatpush1.msra.mxu0 %v3429
        %4558 = vmatprep.subr.mxu0 %v3432
        %4559 = vmatpush1.msra.mxu0 %v3431
        %4560 = vmatprep.subr.mxu0 %v3434
        %4561 = vmatpush1.msra.mxu0 %v3433
        %4562 = vmatprep.subr.mxu0 %v3436
        %4563 = vmatpush1.msra.mxu0 %v3435
        %4564 = vmatprep.subr.mxu0 %v3438
        %4565 = vmatpush1.msra.mxu0 %v3437
        %4566 = vmatprep.subr.mxu0 %v3440
        %4567 = vmatpush1.msra.mxu0 %v3439
        %4568 = vmatprep.subr.mxu0 %v3442
        %4569 = vmatpush1.msra.mxu0 %v3441
        %4570 = vmatprep.subr.mxu0 %v3444
        %4571 = vmatpush1.msra.mxu0 %v3443
        %4572 = vmatprep.subr.mxu0 %v3446
        %4573 = vmatpush1.msra.mxu0 %v3445
        %4574 = vmatprep.subr.mxu0 %v3448
        %4575 = vmatpush1.msra.mxu0 %v3447
        %4576 = vmatprep.subr.mxu0 %v3450
        %4577 = vmatpush1.msra.mxu0 %v3449
        %4578 = vmatprep.subr.mxu0 %v3452
        %4579 = vmatpush1.msra.mxu0 %v3451
        %4580 = vmatprep.subr.mxu0 %v3454
        %4581 = vmatpush1.msra.mxu0 %v3453
        %4582 = vmatprep.subr.mxu0 %v3456
        %4583 = vmatpush1.msra.mxu0 %v3455
        %4584 = vmatprep.subr.mxu0 %v3458
        %4585 = vmatpush1.msra.mxu0 %v3457
        %4586 = vmatprep.subr.mxu0 %v3460
        %4587 = vmatpush1.msra.mxu0 %v3459
        %4588 = vmatprep.subr.mxu0 %v3462
        %4589 = vmatpush1.msra.mxu0 %v3461
        %4590 = vmatprep.subr.mxu0 %v3464
        %4591 = vmatpush1.msra.mxu0 %v3463
        %4592 = vmatprep.subr.mxu0 %v3466
        %4593 = vmatpush1.msra.mxu0 %v3465
        %4594 = vmatprep.subr.mxu0 %v3468
        %4595 = vmatpush1.msra.mxu0 %v3467
        %4596 = vmatprep.mubr.f32.mxu0 %v2562
        %4597 = vmatmul.mubr.f32.gmra.mrb[0].mxu0 %v2561
        %v4598 = vpop.f32.mrb[0].mxu0
        %v4599 = vadd.f32 %v4528, %v4598
        %v4600 = vpop.f32.mrb[0].mxu0
        %v4601 = vadd.f32 %v4530, %v4600
        %4602 = vdwg.mxu0
        %4603 = vmatprep.subr.mxu0 %v3470
        %4604 = vmatpush1.msra.mxu0 %v3469
        %4605 = vmatprep.subr.mxu0 %v3472
        %4606 = vmatpush1.msra.mxu0 %v3471
        %4607 = vmatprep.subr.mxu0 %v3474
        %4608 = vmatpush1.msra.mxu0 %v3473
        %4609 = vmatprep.subr.mxu0 %v3476
        %4610 = vmatpush1.msra.mxu0 %v3475
        %4611 = vmatprep.subr.mxu0 %v3478
        %4612 = vmatpush1.msra.mxu0 %v3477
        %4613 = vmatprep.subr.mxu0 %v3480
        %4614 = vmatpush1.msra.mxu0 %v3479
        %4615 = vmatprep.subr.mxu0 %v3482
        %4616 = vmatpush1.msra.mxu0 %v3481
        %4617 = vmatprep.subr.mxu0 %v3484
        %4618 = vmatpush1.msra.mxu0 %v3483
        %4619 = vmatprep.subr.mxu0 %v3486
        %4620 = vmatpush1.msra.mxu0 %v3485
        %4621 = vmatprep.subr.mxu0 %v3488
        %4622 = vmatpush1.msra.mxu0 %v3487
        %4623 = vmatprep.subr.mxu0 %v3490
        %4624 = vmatpush1.msra.mxu0 %v3489
        %4625 = vmatprep.subr.mxu0 %v3492
        %4626 = vmatpush1.msra.mxu0 %v3491
        %4627 = vmatprep.subr.mxu0 %v3494
        %4628 = vmatpush1.msra.mxu0 %v3493
        %4629 = vmatprep.subr.mxu0 %v3496
        %4630 = vmatpush1.msra.mxu0 %v3495
        %4631 = vmatprep.subr.mxu0 %v3498
        %4632 = vmatpush1.msra.mxu0 %v3497
        %4633 = vmatprep.subr.mxu0 %v3500
        %4634 = vmatpush1.msra.mxu0 %v3499
        %4635 = vmatprep.subr.mxu0 %v3502
        %4636 = vmatpush1.msra.mxu0 %v3501
        %4637 = vmatprep.subr.mxu0 %v3504
        %4638 = vmatpush1.msra.mxu0 %v3503
        %4639 = vmatprep.subr.mxu0 %v3506
        %4640 = vmatpush1.msra.mxu0 %v3505
        %4641 = vmatprep.subr.mxu0 %v3508
        %4642 = vmatpush1.msra.mxu0 %v3507
        %4643 = vmatprep.subr.mxu0 %v3510
        %4644 = vmatpush1.msra.mxu0 %v3509
        %4645 = vmatprep.subr.mxu0 %v3512
        %4646 = vmatpush1.msra.mxu0 %v3511
        %4647 = vmatprep.subr.mxu0 %v3514
        %4648 = vmatpush1.msra.mxu0 %v3513
        %4649 = vmatprep.subr.mxu0 %v3516
        %4650 = vmatpush1.msra.mxu0 %v3515
        %4651 = vmatprep.subr.mxu0 %v3518
        %4652 = vmatpush1.msra.mxu0 %v3517
        %4653 = vmatprep.subr.mxu0 %v3520
        %4654 = vmatpush1.msra.mxu0 %v3519
        %4655 = vmatprep.subr.mxu0 %v3522
        %4656 = vmatpush1.msra.mxu0 %v3521
        %4657 = vmatprep.subr.mxu0 %v3524
        %4658 = vmatpush1.msra.mxu0 %v3523
        %4659 = vmatprep.subr.mxu0 %v3526
        %4660 = vmatpush1.msra.mxu0 %v3525
        %4661 = vmatprep.subr.mxu0 %v3528
        %4662 = vmatpush1.msra.mxu0 %v3527
        %4663 = vmatprep.subr.mxu0 %v3530
        %4664 = vmatpush1.msra.mxu0 %v3529
        %4665 = vmatprep.subr.mxu0 %v3532
        %4666 = vmatpush1.msra.mxu0 %v3531
        %4667 = vmatprep.mubr.f32.mxu0 %v2566
        %4668 = vmatmul.mubr.f32.gmra.mrb[0].mxu0 %v2565
        %v4669 = vpop.f32.mrb[0].mxu0
        %v4670 = vadd.f32 %v4599, %v4669
        %v4671 = vpop.f32.mrb[0].mxu0
        %v4672 = vadd.f32 %v4601, %v4671
        %4673 = vdwg.mxu0
        %4674 = vmatprep.subr.mxu0 %v3534
        %4675 = vmatpush1.msra.mxu0 %v3533
        %4676 = vmatprep.subr.mxu0 %v3536
        %4677 = vmatpush1.msra.mxu0 %v3535
        %4678 = vmatprep.subr.mxu0 %v3538
        %4679 = vmatpush1.msra.mxu0 %v3537
        %4680 = vmatprep.subr.mxu0 %v3540
        %4681 = vmatpush1.msra.mxu0 %v3539
        %4682 = vmatprep.subr.mxu0 %v3542
        %4683 = vmatpush1.msra.mxu0 %v3541
        %4684 = vmatprep.subr.mxu0 %v3544
        %4685 = vmatpush1.msra.mxu0 %v3543
        %4686 = vmatprep.subr.mxu0 %v3546
        %4687 = vmatpush1.msra.mxu0 %v3545
        %4688 = vmatprep.subr.mxu0 %v3548
        %4689 = vmatpush1.msra.mxu0 %v3547
        %4690 = vmatprep.subr.mxu0 %v3550
        %4691 = vmatpush1.msra.mxu0 %v3549
        %4692 = vmatprep.subr.mxu0 %v3552
        %4693 = vmatpush1.msra.mxu0 %v3551
        %4694 = vmatprep.subr.mxu0 %v3554
        %4695 = vmatpush1.msra.mxu0 %v3553
        %4696 = vmatprep.subr.mxu0 %v3556
        %4697 = vmatpush1.msra.mxu0 %v3555
        %4698 = vmatprep.subr.mxu0 %v3558
        %4699 = vmatpush1.msra.mxu0 %v3557
        %4700 = vmatprep.subr.mxu0 %v3560
        %4701 = vmatpush1.msra.mxu0 %v3559
        %4702 = vmatprep.subr.mxu0 %v3562
        %4703 = vmatpush1.msra.mxu0 %v3561
        %4704 = vmatprep.subr.mxu0 %v3564
        %4705 = vmatpush1.msra.mxu0 %v3563
        %4706 = vmatprep.subr.mxu0 %v3566
        %4707 = vmatpush1.msra.mxu0 %v3565
        %4708 = vmatprep.subr.mxu0 %v3568
        %4709 = vmatpush1.msra.mxu0 %v3567
        %4710 = vmatprep.subr.mxu0 %v3570
        %4711 = vmatpush1.msra.mxu0 %v3569
        %4712 = vmatprep.subr.mxu0 %v3572
        %4713 = vmatpush1.msra.mxu0 %v3571
        %4714 = vmatprep.subr.mxu0 %v3574
        %4715 = vmatpush1.msra.mxu0 %v3573
        %4716 = vmatprep.subr.mxu0 %v3576
        %4717 = vmatpush1.msra.mxu0 %v3575
        %4718 = vmatprep.subr.mxu0 %v3578
        %4719 = vmatpush1.msra.mxu0 %v3577
        %4720 = vmatprep.subr.mxu0 %v3580
        %4721 = vmatpush1.msra.mxu0 %v3579
        %4722 = vmatprep.subr.mxu0 %v3582
        %4723 = vmatpush1.msra.mxu0 %v3581
        %4724 = vmatprep.subr.mxu0 %v3584
        %4725 = vmatpush1.msra.mxu0 %v3583
        %4726 = vmatprep.subr.mxu0 %v3586
        %4727 = vmatpush1.msra.mxu0 %v3585
        %4728 = vmatprep.subr.mxu0 %v3588
        %4729 = vmatpush1.msra.mxu0 %v3587
        %4730 = vmatprep.subr.mxu0 %v3590
        %4731 = vmatpush1.msra.mxu0 %v3589
        %4732 = vmatprep.subr.mxu0 %v3592
        %4733 = vmatpush1.msra.mxu0 %v3591
        %4734 = vmatprep.subr.mxu0 %v3594
        %4735 = vmatpush1.msra.mxu0 %v3593
        %4736 = vmatprep.subr.mxu0 %v3596
        %4737 = vmatpush1.msra.mxu0 %v3595
        %4738 = vmatprep.mubr.f32.mxu0 %v2570
        %4739 = vmatmul.mubr.f32.gmra.mrb[0].mxu0 %v2569
        %v4740 = vpop.f32.mrb[0].mxu0
        %v4741 = vadd.f32 %v4670, %v4740
        %v4742 = vpop.f32.mrb[0].mxu0
        %v4743 = vadd.f32 %v4672, %v4742
        %4744 = vdwg.mxu0
        %v4745 = vmax.f32 %v4741, 0.0
        %v4746 = vmax.f32 %v4743, 0.0
        %v4747 = vld [vmem:[%s7] sm:$0xff]
        %v4748 = vld [vmem:[%s7 + $0x8] sm:$0xff]
        %v4749 = vld [vmem:[%s7 + $0x10] sm:$0xff]
        %v4750 = vld [vmem:[%s7 + $0x18] sm:$0xff]
        %v4751 = vld [vmem:[%s7 + $0x20] sm:$0xff]
        %v4752 = vld [vmem:[%s7 + $0x28] sm:$0xff]
        %v4753 = vld [vmem:[%s7 + $0x30] sm:$0xff]
        %v4754 = vld [vmem:[%s7 + $0x38] sm:$0xff]
        %v4755 = vld [vmem:[%s7 + $0x40] sm:$0xff]
        %v4756 = vld [vmem:[%s7 + $0x48] sm:$0xff]
        %v4757 = vld [vmem:[%s7 + $0x50] sm:$0xff]
        %v4758 = vld [vmem:[%s7 + $0x58] sm:$0xff]
        %v4759 = vld [vmem:[%s7 + $0x60] sm:$0xff]
        %v4760 = vld [vmem:[%s7 + $0x68] sm:$0xff]
        %v4761 = vld [vmem:[%s7 + $0x70] sm:$0xff]
        %v4762 = vld [vmem:[%s7 + $0x78] sm:$0xff]
        %v4763 = vld [vmem:[%s7 + $0x80] sm:$0xff]
        %v4764 = vld [vmem:[%s7 + $0x88] sm:$0xff]
        %v4765 = vld [vmem:[%s7 + $0x90] sm:$0xff]
        %v4766 = vld [vmem:[%s7 + $0x98] sm:$0xff]
        %v4767 = vld [vmem:[%s7 + $0xa0] sm:$0xff]
        %v4768 = vld [vmem:[%s7 + $0xa8] sm:$0xff]
        %v4769 = vld [vmem:[%s7 + $0xb0] sm:$0xff]
        %v4770 = vld [vmem:[%s7 + $0xb8] sm:$0xff]
        %v4771 = vld [vmem:[%s7 + $0xc0] sm:$0xff]
        %v4772 = vld [vmem:[%s7 + $0xc8] sm:$0xff]
        %v4773 = vld [vmem:[%s7 + $0xd0] sm:$0xff]
        %v4774 = vld [vmem:[%s7 + $0xd8] sm:$0xff]
        %v4775 = vld [vmem:[%s7 + $0xe0] sm:$0xff]
        %v4776 = vld [vmem:[%s7 + $0xe8] sm:$0xff]
        %v4777 = vld [vmem:[%s7 + $0xf0] sm:$0xff]
        %v4778 = vld [vmem:[%s7 + $0xf8] sm:$0xff]
        %v4779 = vld [vmem:[%s8] sm:$0x1]
        %4780 = vmatprep.subr.mxu0 0.0
        %4781 = vmatpush1.msra.mxu0 %v4747
        %4782 = vmatprep.subr.mxu0 0.0
        %4783 = vmatpush1.msra.mxu0 %v4748
        %4784 = vmatprep.subr.mxu0 0.0
        %4785 = vmatpush1.msra.mxu0 %v4749
        %4786 = vmatprep.subr.mxu0 0.0
        %4787 = vmatpush1.msra.mxu0 %v4750
        %4788 = vmatprep.subr.mxu0 0.0
        %4789 = vmatpush1.msra.mxu0 %v4751
        %4790 = vmatprep.subr.mxu0 0.0
        %4791 = vmatpush1.msra.mxu0 %v4752
        %4792 = vmatprep.subr.mxu0 0.0
        %4793 = vmatpush1.msra.mxu0 %v4753
        %4794 = vmatprep.subr.mxu0 0.0
        %4795 = vmatpush1.msra.mxu0 %v4754
        %4796 = vmatprep.subr.mxu0 0.0
        %4797 = vmatpush1.msra.mxu0 %v4755
        %4798 = vmatprep.subr.mxu0 0.0
        %4799 = vmatpush1.msra.mxu0 %v4756
        %4800 = vmatprep.subr.mxu0 0.0
        %4801 = vmatpush1.msra.mxu0 %v4757
        %4802 = vmatprep.subr.mxu0 0.0
        %4803 = vmatpush1.msra.mxu0 %v4758
        %4804 = vmatprep.subr.mxu0 0.0
        %4805 = vmatpush1.msra.mxu0 %v4759
        %4806 = vmatprep.subr.mxu0 0.0
        %4807 = vmatpush1.msra.mxu0 %v4760
        %4808 = vmatprep.subr.mxu0 0.0
        %4809 = vmatpush1.msra.mxu0 %v4761
        %4810 = vmatprep.subr.mxu0 0.0
        %4811 = vmatpush1.msra.mxu0 %v4762
        %4812 = vmatprep.subr.mxu0 0.0
        %4813 = vmatpush1.msra.mxu0 %v4763
        %4814 = vmatprep.subr.mxu0 0.0
        %4815 = vmatpush1.msra.mxu0 %v4764
        %4816 = vmatprep.subr.mxu0 0.0
        %4817 = vmatpush1.msra.mxu0 %v4765
        %4818 = vmatprep.subr.mxu0 0.0
        %4819 = vmatpush1.msra.mxu0 %v4766
        %4820 = vmatprep.subr.mxu0 0.0
        %4821 = vmatpush1.msra.mxu0 %v4767
        %4822 = vmatprep.subr.mxu0 0.0
        %4823 = vmatpush1.msra.mxu0 %v4768
        %4824 = vmatprep.subr.mxu0 0.0
        %4825 = vmatpush1.msra.mxu0 %v4769
        %4826 = vmatprep.subr.mxu0 0.0
        %4827 = vmatpush1.msra.mxu0 %v4770
        %4828 = vmatprep.subr.mxu0 0.0
        %4829 = vmatpush1.msra.mxu0 %v4771
        %4830 = vmatprep.subr.mxu0 0.0
        %4831 = vmatpush1.msra.mxu0 %v4772
        %4832 = vmatprep.subr.mxu0 0.0
        %4833 = vmatpush1.msra.mxu0 %v4773
        %4834 = vmatprep.subr.mxu0 0.0
        %4835 = vmatpush1.msra.mxu0 %v4774
        %4836 = vmatprep.subr.mxu0 0.0
        %4837 = vmatpush1.msra.mxu0 %v4775
        %4838 = vmatprep.subr.mxu0 0.0
        %4839 = vmatpush1.msra.mxu0 %v4776
        %4840 = vmatprep.subr.mxu0 0.0
        %4841 = vmatpush1.msra.mxu0 %v4777
        %4842 = vmatprep.subr.mxu0 0.0
        %4843 = vmatpush1.msra.mxu0 %v4778
        %4844 = vmatprep.mubr.f32.mxu0 %v4746
        %4845 = vmatmul.mubr.f32.gmra.mrb[0].mxu0 %v4745
        %v4846 = vpop.f32.mrb[0].mxu0
        %v4847 = vadd.f32 %v4779, %v4846
        %v4848 = vpop.f32.mrb[0].mxu0
        %4849 = vdwg.mxu0
        %4850 = vst [vmem:[%s324] sm:$0x1] %v4847
        %s4851 = sand.u32 %s225, 1
        %s4852 = scalar_lea.sflag [#allocation3], %s4851
        %s4853 = sand.u32 %s225, 1
        %s4854 = scalar_lea.vmem [#allocation2], %s4853
        // Predicated region
        $region57: #{policy_forward.1} parent=55 // pred_check
          %p4855 = pneg %p235
        $region58: #{policy_forward.1} parent=55 // pred_check_branch
          %4857 = sbr.rel (%p4855) target = $region60
        $region59: #{policy_forward.1} parent=55 // pred_region
          %s4859 = ssub.s32 16, 16
          %4860 = vsyncadd %s4852, %s4859
          %s4861 = smul.addr %s23, 16
          %s4862 = scalar_lea.hbm %s9, %s4861
          %s4864 = sshll.u32 %s4854, 4
          %s4865 = int_to_ptr.vmem [resolvable:$true] %s4864
          %4867 = dma.vmem_to_hbm [thread:$0]  %s4865, 16, %s4862, %s4852
        $region60: #{policy_forward.1} parent=55 // pred_fallthru
          _
      $region56: #{policy_forward.1} parent=5 // pred_fallthru
        _
      %p4868 = scmp.le.s32.totalorder 2, %s18
      // Predicated region
      $region61: #{policy_forward.1} parent=5 // pred_check
        %p4869 = pneg %p4868
      $region62: #{policy_forward.1} parent=5 // pred_check_branch
        %4871 = sbr.rel (%p4869) target = $region64
      $region63: #{policy_forward.1} parent=5 // pred_region
        %s4872 = ssub.s32 %s18, 2
        // Predicated region
        $region65: #{policy_forward.1} parent=63 // pred_check
          %p4873 = pneg %p241
        $region66: #{policy_forward.1} parent=63 // pred_check_branch
          %4875 = sbr.rel (%p4873) target = $region68
        $region67: #{policy_forward.1} parent=63 // pred_region
          %s4876 = sand.u32 %s226, 1
          %s4877 = scalar_lea.sflag [#allocation3], %s4876
          %s4878 = sand.u32 %s226, 1
          %s4879 = scalar_lea.vmem [#allocation2], %s4878
          %4880 = dma.done %s4877, 16
        $region68: #{policy_forward.1} parent=63 // pred_fallthru
          _
      $region64: #{policy_forward.1} parent=5 // pred_fallthru
        _
    $region6: #{policy_forward.1} parent=1 // loop_footer
      %s22 = sadd.s32 1, %s18
    $region7: #{policy_forward.1} parent=1 // loop_footer_branch
      %17 = sbr.rel target = $region3
    $region8: #{policy_forward.1} parent=1 // loop_exit
      _
    %4881 = vsyncpa [#allocation3], 1
    %s4882 = scalar_lea.sflag [#allocation3], 1
    %4883 = vsyncpa %s4882, 1

</llo_original>
